<compile_context>
chip_gen: v6e
topology: v6e:2x2x1
jax: 0.10.0
libtpu: 0.0.40
codegen_flags: <defaults>
</compile_context>

<pallas_src>
import jax
import jax.numpy as jnp
from jax.experimental import pallas as pl
from jax.experimental.pallas import tpu as pltpu

KH = KW = 7
PAD = 3
LANE = 128
WIN = 3 * LANE   # input-column window per 128-lane output tile (tile + one-tile halo each side)
ROW_PAD = 8      # aligned zero rows above/below each image for the 7 kh row shifts


def _spatial_gate_kernel(band_ref, b_ref, x_ref, o_ref):
    # band_ref: (2*KH, WIN, LANE) bf16 VMEM -- BN-folded conv weights, banded per output tile
    # b_ref:    (1,)              f32  SMEM -- BN-folded conv bias
    # x_ref:    (NB, C, Hp, Wp)        VMEM -- NB images of the (8,128)-padded input
    # o_ref:    (NB, 1, Hp, Wp)        VMEM
    NB, C, Hp, Wp = x_ref.shape
    n_wt = Wp // LANE
    M = NB * Hp

    # --- ChannelPool (f32, VPU): max & mean over C ---
    xb = x_ref[...].astype(jnp.float32)            # (NB, C, Hp, Wp)
    cmax = jnp.max(xb, axis=1)                     # (NB, Hp, Wp)
    cmean = jnp.sum(xb, axis=1) * (1.0 / C)        # (NB, Hp, Wp)

    # Zero-pad: one 128-lane tile left/right (halo for the banded matmul) and ROW_PAD zero
    # rows top/bottom *per image* (so kh shifts never leak across batch images). Cast to
    # bf16 only here, at the MXU boundary.
    def _pad(p):
        zc = jnp.zeros((NB, Hp, LANE), jnp.float32)
        p = jnp.concatenate([zc, p, zc], axis=-1)                       # (NB, Hp, Wp+2*LANE)
        zr = jnp.zeros((NB, ROW_PAD, Wp + 2 * LANE), jnp.float32)
        p = jnp.concatenate([zr, p, zr], axis=1)                        # (NB, Hp+16, Wp+2*LANE)
        return p.astype(jnp.bfloat16)

    pmax = _pad(cmax)
    pmean = _pad(cmean)

    bias = b_ref[0]
    for j in range(n_wt):                                               # 128-lane output tiles
        acc = jnp.zeros((M, LANE), jnp.float32)
        for kh in range(KH):                                            # 7 row shifts
            r0 = ROW_PAD - PAD + kh
            lmax = pmax[:, r0:r0 + Hp, j * LANE:j * LANE + WIN].reshape(M, WIN)
            lmean = pmean[:, r0:r0 + Hp, j * LANE:j * LANE + WIN].reshape(M, WIN)
            acc = acc + jax.lax.dot_general(
                lmax, band_ref[kh], (((1,), (0,)), ((), ())),
                preferred_element_type=jnp.float32)
            acc = acc + jax.lax.dot_general(
                lmean, band_ref[KH + kh], (((1,), (0,)), ((), ())),
                preferred_element_type=jnp.float32)
        out = acc + bias                                                # folded conv+BN bias
        out = out * jax.nn.sigmoid(out)                                 # out * sigmoid(out), f32
        o_ref[:, :, :, j * LANE:(j + 1) * LANE] = (
            out.reshape(NB, 1, Hp, LANE).astype(o_ref.dtype))           # lane-dense 128-wide store


def _build_band(w_eff):
    """(2*KH, WIN, LANE) bf16 banded weights for one 128-lane output tile.

    band[c*KH + kh, w_in, w_out] = w_eff[c, kh, w_in - w_out - (LANE - PAD)], zero outside
    the 7-tap band. w_in indexes the 3-tile input window whose *middle* tile is the output
    tile, i.e. w_in = LANE + w_out + kw - PAD. Independent of W (fixed ~1.3 MiB)."""
    w_in = jnp.arange(WIN)[:, None]
    w_out = jnp.arange(LANE)[None, :]
    kw = w_in - w_out - (LANE - PAD)
    valid = (kw >= 0) & (kw < KW)
    taps = w_eff[:, :, jnp.clip(kw, 0, KW - 1)]          # (2, KH, WIN, LANE)
    taps = jnp.where(valid[None, None], taps, 0.0)
    return taps.reshape(2 * KH, WIN, LANE).astype(jnp.bfloat16)


def _vmem_limit_bytes():
    cap = 64 * 1024 * 1024
    try:
        cap = int(getattr(pltpu.get_tpu_info(), "vmem_capacity_bytes", cap))
    except Exception:
        pass
    return (cap // 4) * 3    # ~96 MiB on v5e/v6e (128 MiB physical), ~48 MiB on v7x (64 MiB)


def spatial_gate(x, conv_w, conv_b, bn_gamma, bn_beta, bn_mean, bn_var, eps=1e-5):
    """x: (N, C, H, W). conv_w: (1, 2, 7, 7). conv_b / bn_*: (1,)."""
    N, C, H, W = x.shape

    # Fold BatchNorm (inference) into the conv:
    #   y = gamma * (conv(x) + b - mean) / sqrt(var + eps) + beta
    scale = bn_gamma / jnp.sqrt(bn_var + eps)                           # (1,)
    w_eff = (conv_w[0] * scale[0]).astype(jnp.float32)                  # (2, 7, 7)
    b_eff = ((conv_b - bn_mean) * scale + bn_beta).astype(jnp.float32)  # (1,)

    # (8,128)-dense layout: zero padding is exactly equivalent to the conv's own zero padding
    # (channel pool of zeros is zero); padded rows/cols are sliced off at the end.
    Hp = -(-H // 8) * 8
    Wp = -(-W // LANE) * LANE
    xp = x if (Hp, Wp) == (H, W) else jnp.pad(x, ((0, 0), (0, 0), (0, Hp - H), (0, Wp - W)))

    band = _build_band(w_eff)
    vmem_limit = _vmem_limit_bytes()
    itemsize = x.dtype.itemsize

    # Fold NB images per grid step so the MXU LHS has NB*Hp rows (target <= 512), capped so the
    # double-buffered input block stays well inside the VMEM budget.
    nb = 1
    for d in range(1, N + 1):
        if N % d == 0 and d * Hp <= 512 and 2 * d * C * Hp * Wp * itemsize <= vmem_limit // 3:
            nb = d

    macs = 2 * KH * WIN * N * Hp * Wp    # actual banded-matmul MACs (not the logical 98/pixel)
    cost = pl.CostEstimate(
        flops=int(2 * macs + 2 * N * C * Hp * Wp + 4 * N * Hp * Wp),
        transcendentals=int(N * Hp * Wp),
        bytes_accessed=int((N * C * Hp * Wp + N * Hp * Wp) * itemsize + band.size * 2 + 4),
    )

    # TODO(synk): for very large C*Hp*Wp blocks (v7x's 64 MiB VMEM), add H-tile (3-row halo)
    # and C-reduction grid axes with running max/sum scratch, and a second "parallel" spatial
    # grid axis so both v7x TensorCores stay busy when N//nb == 1.
    out_p = pl.pallas_call(
        _spatial_gate_kernel,
        out_shape=jax.ShapeDtypeStruct((N, 1, Hp, Wp), x.dtype),
        grid=(N // nb,),
        in_specs=[
            # Fixed-size, W-independent band; double-buffered copy is ~2.7 MiB -> negligible.
            pl.BlockSpec((2 * KH, WIN, LANE), lambda n: (0, 0, 0)),
            pl.BlockSpec(memory_space=pltpu.MemorySpace.SMEM),           # folded bias scalar
            pl.BlockSpec((nb, C, Hp, Wp), lambda n: (n, 0, 0, 0)),       # NB-image input block
        ],
        out_specs=pl.BlockSpec((nb, 1, Hp, Wp), lambda n: (n, 0, 0, 0)),
        compiler_params=pltpu.CompilerParams(
            dimension_semantics=("parallel",),
            vmem_limit_bytes=vmem_limit,
        ),
        cost_estimate=cost,
    )(band, b_eff, xp)

    return out_p[:, :, :H, :W]


def spatial_gate_reference(x, conv_w, conv_b, bn_gamma, bn_beta, bn_mean, bn_var, eps=1e-5):
    """Pure-JAX reference matching the PyTorch forward (BN in inference mode)."""
    cmax = jnp.max(x, axis=1, keepdims=True)
    cmean = jnp.mean(x, axis=1, keepdims=True)
    pooled = jnp.concatenate([cmax, cmean], axis=1)                      # (N, 2, H, W)
    conv = jax.lax.conv_general_dilated(
        pooled, conv_w, window_strides=(1, 1), padding=((PAD, PAD), (PAD, PAD)),
        dimension_numbers=("NCHW", "OIHW", "NCHW"))
    conv = conv + conv_b.reshape(1, -1, 1, 1)
    inv = bn_gamma.reshape(1, -1, 1, 1) / jnp.sqrt(bn_var.reshape(1, -1, 1, 1) + eps)
    bn = (conv - bn_mean.reshape(1, -1, 1, 1)) * inv + bn_beta.reshape(1, -1, 1, 1)
    return bn * jax.nn.sigmoid(bn)


if __name__ == "__main__":
    key = jax.random.PRNGKey(0)
    kx, kw_, kb = jax.random.split(key, 3)

    N, C, H, W = 2, 4, 16, 16
    x = jax.random.normal(kx, (N, C, H, W), dtype=jnp.float32)

    # Deterministic synthetic parameters (shapes from nn.Conv2d(2,1,7) + BatchNorm2d(1)),
    # with non-trivial BN stats so the BN fold is actually exercised.
    conv_w = 0.1 * jax.random.normal(kw_, (1, 2, KH, KW), dtype=jnp.float32)
    conv_b = 0.1 * jax.random.normal(kb, (1,), dtype=jnp.float32)
    bn_gamma = jnp.full((1,), 1.3, jnp.float32)
    bn_beta = jnp.full((1,), 0.1, jnp.float32)
    bn_mean = jnp.full((1,), 0.05, jnp.float32)
    bn_var = jnp.full((1,), 0.8, jnp.float32)

    out = spatial_gate(x, conv_w, conv_b, bn_gamma, bn_beta, bn_mean, bn_var)
    out = jax.block_until_ready(out)

    ref = spatial_gate_reference(x, conv_w, conv_b, bn_gamma, bn_beta, bn_mean, bn_var)
    assert out.shape == (N, 1, H, W)
    # bf16 MXU operands (f32 accumulation) over the 98-tap window -> worst-case few e-3 error.
    assert jnp.allclose(out, ref, atol=5e-3, rtol=5e-3), "Pallas kernel mismatch vs reference"

    print("KERNEL_OK")
</pallas_src>

<mosaic_0001>
module attributes {stable_mosaic.version = 11 : i64} {
  func.func @_spatial_gate_kernel(%arg0: i32, %arg1: memref<14x384x128xbf16, #tpu.memory_space<vmem>>, %arg2: memref<1xf32, #tpu.memory_space<smem>>, %arg3: memref<2x4x16x128xf32, #tpu.memory_space<vmem>>, %arg4: memref<2x1x16x128xf32, #tpu.memory_space<vmem>>) attributes {dimension_semantics = [#tpu.dimension_semantics<parallel>], iteration_bounds = array<i64: 1>, scalar_prefetch = 0 : i64, scratch_operands = 0 : i64, tpu.core_type = #tpu.core_type<tc>, window_params = [{pipeline_mode = #tpu.pipeline_mode<synchronous>, transform_indices = @transform_0, window_bounds = array<i64: 14, 384, 128>}, {transform_indices = @transform_1, window_bounds = array<i64: 1>}, {transform_indices = @transform_2, window_bounds = array<i64: 2, 4, 16, 128>}, {transform_indices = @transform_3, window_bounds = array<i64: 2, 1, 16, 128>}]} {
    %c0 = arith.constant 0 : index
    %c0_0 = arith.constant 0 : index
    %c0_1 = arith.constant 0 : index
    %c0_2 = arith.constant 0 : index
    %0 = vector.load %arg3[%c0, %c0_0, %c0_1, %c0_2] : memref<2x4x16x128xf32, #tpu.memory_space<vmem>>, vector<2x4x16x128xf32>
    %cst = arith.constant dense<0xFF800000> : vector<2x16x128xf32>
    %1 = vector.multi_reduction <maximumf>, %0, %cst [1] : vector<2x4x16x128xf32> to vector<2x16x128xf32>
    %cst_3 = arith.constant dense<0.000000e+00> : vector<2x16x128xf32>
    %2 = vector.multi_reduction <add>, %0, %cst_3 [1] : vector<2x4x16x128xf32> to vector<2x16x128xf32>
    %cst_4 = arith.constant 2.500000e-01 : f32
    %3 = vector.broadcast %cst_4 : f32 to vector<2x16x128xf32>
    %4 = arith.mulf %2, %3 : vector<2x16x128xf32>
    %cst_5 = arith.constant 0.000000e+00 : f32
    %5 = vector.broadcast %cst_5 : f32 to vector<2x16x128xf32>
    %6 = tpu.concatenate %5, %1, %5 in 2 : vector<2x16x128xf32>, vector<2x16x128xf32>, vector<2x16x128xf32> -> vector<2x16x384xf32>
    %cst_6 = arith.constant 0.000000e+00 : f32
    %7 = vector.broadcast %cst_6 : f32 to vector<2x8x384xf32>
    %8 = tpu.concatenate %7, %6, %7 in 1 : vector<2x8x384xf32>, vector<2x16x384xf32>, vector<2x8x384xf32> -> vector<2x32x384xf32>
    %9 = arith.truncf %8 : vector<2x32x384xf32> to vector<2x32x384xbf16>
    %cst_7 = arith.constant 0.000000e+00 : f32
    %10 = vector.broadcast %cst_7 : f32 to vector<2x16x128xf32>
    %11 = tpu.concatenate %10, %4, %10 in 2 : vector<2x16x128xf32>, vector<2x16x128xf32>, vector<2x16x128xf32> -> vector<2x16x384xf32>
    %cst_8 = arith.constant 0.000000e+00 : f32
    %12 = vector.broadcast %cst_8 : f32 to vector<2x8x384xf32>
    %13 = tpu.concatenate %12, %11, %12 in 1 : vector<2x8x384xf32>, vector<2x16x384xf32>, vector<2x8x384xf32> -> vector<2x32x384xf32>
    %14 = arith.truncf %13 : vector<2x32x384xf32> to vector<2x32x384xbf16>
    %c0_9 = arith.constant 0 : index
    %15 = memref.load %arg2[%c0_9] : memref<1xf32, #tpu.memory_space<smem>>
    %cst_10 = arith.constant 0.000000e+00 : f32
    %16 = vector.broadcast %cst_10 : f32 to vector<32x128xf32>
    %17 = vector.extract_strided_slice %9 {offsets = [0, 5, 0], sizes = [2, 16, 384], strides = [1, 1, 1]} : vector<2x32x384xbf16> to vector<2x16x384xbf16>
    %18 = vector.shape_cast %17 : vector<2x16x384xbf16> to vector<32x384xbf16>
    %19 = vector.extract_strided_slice %14 {offsets = [0, 5, 0], sizes = [2, 16, 384], strides = [1, 1, 1]} : vector<2x32x384xbf16> to vector<2x16x384xbf16>
    %20 = vector.shape_cast %19 : vector<2x16x384xbf16> to vector<32x384xbf16>
    %c0_11 = arith.constant 0 : index
    %c0_12 = arith.constant 0 : index
    %c0_13 = arith.constant 0 : index
    %21 = vector.load %arg1[%c0_11, %c0_12, %c0_13] : memref<14x384x128xbf16, #tpu.memory_space<vmem>>, vector<1x384x128xbf16>
    %22 = vector.shape_cast %21 : vector<1x384x128xbf16> to vector<384x128xbf16>
    %cst_14 = arith.constant dense<0.000000e+00> : vector<32x128xf32>
    %23 = tpu.matmul %18, %22, %cst_14 {dimension_numbers = #tpu.dot_dimension_numbers<[1], [0], [0], [1], [0, 0, 1, 1], [], []>} : vector<32x384xbf16>, vector<384x128xbf16>, vector<32x128xf32> -> vector<32x128xf32>
    %24 = arith.addf %16, %23 : vector<32x128xf32>
    %c7 = arith.constant 7 : index
    %c0_15 = arith.constant 0 : index
    %c0_16 = arith.constant 0 : index
    %25 = vector.load %arg1[%c7, %c0_15, %c0_16] : memref<14x384x128xbf16, #tpu.memory_space<vmem>>, vector<1x384x128xbf16>
    %26 = vector.shape_cast %25 : vector<1x384x128xbf16> to vector<384x128xbf16>
    %cst_17 = arith.constant dense<0.000000e+00> : vector<32x128xf32>
    %27 = tpu.matmul %20, %26, %cst_17 {dimension_numbers = #tpu.dot_dimension_numbers<[1], [0], [0], [1], [0, 0, 1, 1], [], []>} : vector<32x384xbf16>, vector<384x128xbf16>, vector<32x128xf32> -> vector<32x128xf32>
    %28 = arith.addf %24, %27 : vector<32x128xf32>
    %29 = vector.extract_strided_slice %9 {offsets = [0, 6, 0], sizes = [2, 16, 384], strides = [1, 1, 1]} : vector<2x32x384xbf16> to vector<2x16x384xbf16>
    %30 = vector.shape_cast %29 : vector<2x16x384xbf16> to vector<32x384xbf16>
    %31 = vector.extract_strided_slice %14 {offsets = [0, 6, 0], sizes = [2, 16, 384], strides = [1, 1, 1]} : vector<2x32x384xbf16> to vector<2x16x384xbf16>
    %32 = vector.shape_cast %31 : vector<2x16x384xbf16> to vector<32x384xbf16>
    %c1 = arith.constant 1 : index
    %c0_18 = arith.constant 0 : index
    %c0_19 = arith.constant 0 : index
    %33 = vector.load %arg1[%c1, %c0_18, %c0_19] : memref<14x384x128xbf16, #tpu.memory_space<vmem>>, vector<1x384x128xbf16>
    %34 = vector.shape_cast %33 : vector<1x384x128xbf16> to vector<384x128xbf16>
    %cst_20 = arith.constant dense<0.000000e+00> : vector<32x128xf32>
    %35 = tpu.matmul %30, %34, %cst_20 {dimension_numbers = #tpu.dot_dimension_numbers<[1], [0], [0], [1], [0, 0, 1, 1], [], []>} : vector<32x384xbf16>, vector<384x128xbf16>, vector<32x128xf32> -> vector<32x128xf32>
    %36 = arith.addf %28, %35 : vector<32x128xf32>
    %c8 = arith.constant 8 : index
    %c0_21 = arith.constant 0 : index
    %c0_22 = arith.constant 0 : index
    %37 = vector.load %arg1[%c8, %c0_21, %c0_22] : memref<14x384x128xbf16, #tpu.memory_space<vmem>>, vector<1x384x128xbf16>
    %38 = vector.shape_cast %37 : vector<1x384x128xbf16> to vector<384x128xbf16>
    %cst_23 = arith.constant dense<0.000000e+00> : vector<32x128xf32>
    %39 = tpu.matmul %32, %38, %cst_23 {dimension_numbers = #tpu.dot_dimension_numbers<[1], [0], [0], [1], [0, 0, 1, 1], [], []>} : vector<32x384xbf16>, vector<384x128xbf16>, vector<32x128xf32> -> vector<32x128xf32>
    %40 = arith.addf %36, %39 : vector<32x128xf32>
    %41 = vector.extract_strided_slice %9 {offsets = [0, 7, 0], sizes = [2, 16, 384], strides = [1, 1, 1]} : vector<2x32x384xbf16> to vector<2x16x384xbf16>
    %42 = vector.shape_cast %41 : vector<2x16x384xbf16> to vector<32x384xbf16>
    %43 = vector.extract_strided_slice %14 {offsets = [0, 7, 0], sizes = [2, 16, 384], strides = [1, 1, 1]} : vector<2x32x384xbf16> to vector<2x16x384xbf16>
    %44 = vector.shape_cast %43 : vector<2x16x384xbf16> to vector<32x384xbf16>
    %c2 = arith.constant 2 : index
    %c0_24 = arith.constant 0 : index
    %c0_25 = arith.constant 0 : index
    %45 = vector.load %arg1[%c2, %c0_24, %c0_25] : memref<14x384x128xbf16, #tpu.memory_space<vmem>>, vector<1x384x128xbf16>
    %46 = vector.shape_cast %45 : vector<1x384x128xbf16> to vector<384x128xbf16>
    %cst_26 = arith.constant dense<0.000000e+00> : vector<32x128xf32>
    %47 = tpu.matmul %42, %46, %cst_26 {dimension_numbers = #tpu.dot_dimension_numbers<[1], [0], [0], [1], [0, 0, 1, 1], [], []>} : vector<32x384xbf16>, vector<384x128xbf16>, vector<32x128xf32> -> vector<32x128xf32>
    %48 = arith.addf %40, %47 : vector<32x128xf32>
    %c9 = arith.constant 9 : index
    %c0_27 = arith.constant 0 : index
    %c0_28 = arith.constant 0 : index
    %49 = vector.load %arg1[%c9, %c0_27, %c0_28] : memref<14x384x128xbf16, #tpu.memory_space<vmem>>, vector<1x384x128xbf16>
    %50 = vector.shape_cast %49 : vector<1x384x128xbf16> to vector<384x128xbf16>
    %cst_29 = arith.constant dense<0.000000e+00> : vector<32x128xf32>
    %51 = tpu.matmul %44, %50, %cst_29 {dimension_numbers = #tpu.dot_dimension_numbers<[1], [0], [0], [1], [0, 0, 1, 1], [], []>} : vector<32x384xbf16>, vector<384x128xbf16>, vector<32x128xf32> -> vector<32x128xf32>
    %52 = arith.addf %48, %51 : vector<32x128xf32>
    %53 = vector.extract_strided_slice %9 {offsets = [0, 8, 0], sizes = [2, 16, 384], strides = [1, 1, 1]} : vector<2x32x384xbf16> to vector<2x16x384xbf16>
    %54 = vector.shape_cast %53 : vector<2x16x384xbf16> to vector<32x384xbf16>
    %55 = vector.extract_strided_slice %14 {offsets = [0, 8, 0], sizes = [2, 16, 384], strides = [1, 1, 1]} : vector<2x32x384xbf16> to vector<2x16x384xbf16>
    %56 = vector.shape_cast %55 : vector<2x16x384xbf16> to vector<32x384xbf16>
    %c3 = arith.constant 3 : index
    %c0_30 = arith.constant 0 : index
    %c0_31 = arith.constant 0 : index
    %57 = vector.load %arg1[%c3, %c0_30, %c0_31] : memref<14x384x128xbf16, #tpu.memory_space<vmem>>, vector<1x384x128xbf16>
    %58 = vector.shape_cast %57 : vector<1x384x128xbf16> to vector<384x128xbf16>
    %cst_32 = arith.constant dense<0.000000e+00> : vector<32x128xf32>
    %59 = tpu.matmul %54, %58, %cst_32 {dimension_numbers = #tpu.dot_dimension_numbers<[1], [0], [0], [1], [0, 0, 1, 1], [], []>} : vector<32x384xbf16>, vector<384x128xbf16>, vector<32x128xf32> -> vector<32x128xf32>
    %60 = arith.addf %52, %59 : vector<32x128xf32>
    %c10 = arith.constant 10 : index
    %c0_33 = arith.constant 0 : index
    %c0_34 = arith.constant 0 : index
    %61 = vector.load %arg1[%c10, %c0_33, %c0_34] : memref<14x384x128xbf16, #tpu.memory_space<vmem>>, vector<1x384x128xbf16>
    %62 = vector.shape_cast %61 : vector<1x384x128xbf16> to vector<384x128xbf16>
    %cst_35 = arith.constant dense<0.000000e+00> : vector<32x128xf32>
    %63 = tpu.matmul %56, %62, %cst_35 {dimension_numbers = #tpu.dot_dimension_numbers<[1], [0], [0], [1], [0, 0, 1, 1], [], []>} : vector<32x384xbf16>, vector<384x128xbf16>, vector<32x128xf32> -> vector<32x128xf32>
    %64 = arith.addf %60, %63 : vector<32x128xf32>
    %65 = vector.extract_strided_slice %9 {offsets = [0, 9, 0], sizes = [2, 16, 384], strides = [1, 1, 1]} : vector<2x32x384xbf16> to vector<2x16x384xbf16>
    %66 = vector.shape_cast %65 : vector<2x16x384xbf16> to vector<32x384xbf16>
    %67 = vector.extract_strided_slice %14 {offsets = [0, 9, 0], sizes = [2, 16, 384], strides = [1, 1, 1]} : vector<2x32x384xbf16> to vector<2x16x384xbf16>
    %68 = vector.shape_cast %67 : vector<2x16x384xbf16> to vector<32x384xbf16>
    %c4 = arith.constant 4 : index
    %c0_36 = arith.constant 0 : index
    %c0_37 = arith.constant 0 : index
    %69 = vector.load %arg1[%c4, %c0_36, %c0_37] : memref<14x384x128xbf16, #tpu.memory_space<vmem>>, vector<1x384x128xbf16>
    %70 = vector.shape_cast %69 : vector<1x384x128xbf16> to vector<384x128xbf16>
    %cst_38 = arith.constant dense<0.000000e+00> : vector<32x128xf32>
    %71 = tpu.matmul %66, %70, %cst_38 {dimension_numbers = #tpu.dot_dimension_numbers<[1], [0], [0], [1], [0, 0, 1, 1], [], []>} : vector<32x384xbf16>, vector<384x128xbf16>, vector<32x128xf32> -> vector<32x128xf32>
    %72 = arith.addf %64, %71 : vector<32x128xf32>
    %c11 = arith.constant 11 : index
    %c0_39 = arith.constant 0 : index
    %c0_40 = arith.constant 0 : index
    %73 = vector.load %arg1[%c11, %c0_39, %c0_40] : memref<14x384x128xbf16, #tpu.memory_space<vmem>>, vector<1x384x128xbf16>
    %74 = vector.shape_cast %73 : vector<1x384x128xbf16> to vector<384x128xbf16>
    %cst_41 = arith.constant dense<0.000000e+00> : vector<32x128xf32>
    %75 = tpu.matmul %68, %74, %cst_41 {dimension_numbers = #tpu.dot_dimension_numbers<[1], [0], [0], [1], [0, 0, 1, 1], [], []>} : vector<32x384xbf16>, vector<384x128xbf16>, vector<32x128xf32> -> vector<32x128xf32>
    %76 = arith.addf %72, %75 : vector<32x128xf32>
    %77 = vector.extract_strided_slice %9 {offsets = [0, 10, 0], sizes = [2, 16, 384], strides = [1, 1, 1]} : vector<2x32x384xbf16> to vector<2x16x384xbf16>
    %78 = vector.shape_cast %77 : vector<2x16x384xbf16> to vector<32x384xbf16>
    %79 = vector.extract_strided_slice %14 {offsets = [0, 10, 0], sizes = [2, 16, 384], strides = [1, 1, 1]} : vector<2x32x384xbf16> to vector<2x16x384xbf16>
    %80 = vector.shape_cast %79 : vector<2x16x384xbf16> to vector<32x384xbf16>
    %c5 = arith.constant 5 : index
    %c0_42 = arith.constant 0 : index
    %c0_43 = arith.constant 0 : index
    %81 = vector.load %arg1[%c5, %c0_42, %c0_43] : memref<14x384x128xbf16, #tpu.memory_space<vmem>>, vector<1x384x128xbf16>
    %82 = vector.shape_cast %81 : vector<1x384x128xbf16> to vector<384x128xbf16>
    %cst_44 = arith.constant dense<0.000000e+00> : vector<32x128xf32>
    %83 = tpu.matmul %78, %82, %cst_44 {dimension_numbers = #tpu.dot_dimension_numbers<[1], [0], [0], [1], [0, 0, 1, 1], [], []>} : vector<32x384xbf16>, vector<384x128xbf16>, vector<32x128xf32> -> vector<32x128xf32>
    %84 = arith.addf %76, %83 : vector<32x128xf32>
    %c12 = arith.constant 12 : index
    %c0_45 = arith.constant 0 : index
    %c0_46 = arith.constant 0 : index
    %85 = vector.load %arg1[%c12, %c0_45, %c0_46] : memref<14x384x128xbf16, #tpu.memory_space<vmem>>, vector<1x384x128xbf16>
    %86 = vector.shape_cast %85 : vector<1x384x128xbf16> to vector<384x128xbf16>
    %cst_47 = arith.constant dense<0.000000e+00> : vector<32x128xf32>
    %87 = tpu.matmul %80, %86, %cst_47 {dimension_numbers = #tpu.dot_dimension_numbers<[1], [0], [0], [1], [0, 0, 1, 1], [], []>} : vector<32x384xbf16>, vector<384x128xbf16>, vector<32x128xf32> -> vector<32x128xf32>
    %88 = arith.addf %84, %87 : vector<32x128xf32>
    %89 = vector.extract_strided_slice %9 {offsets = [0, 11, 0], sizes = [2, 16, 384], strides = [1, 1, 1]} : vector<2x32x384xbf16> to vector<2x16x384xbf16>
    %90 = vector.shape_cast %89 : vector<2x16x384xbf16> to vector<32x384xbf16>
    %91 = vector.extract_strided_slice %14 {offsets = [0, 11, 0], sizes = [2, 16, 384], strides = [1, 1, 1]} : vector<2x32x384xbf16> to vector<2x16x384xbf16>
    %92 = vector.shape_cast %91 : vector<2x16x384xbf16> to vector<32x384xbf16>
    %c6 = arith.constant 6 : index
    %c0_48 = arith.constant 0 : index
    %c0_49 = arith.constant 0 : index
    %93 = vector.load %arg1[%c6, %c0_48, %c0_49] : memref<14x384x128xbf16, #tpu.memory_space<vmem>>, vector<1x384x128xbf16>
    %94 = vector.shape_cast %93 : vector<1x384x128xbf16> to vector<384x128xbf16>
    %cst_50 = arith.constant dense<0.000000e+00> : vector<32x128xf32>
    %95 = tpu.matmul %90, %94, %cst_50 {dimension_numbers = #tpu.dot_dimension_numbers<[1], [0], [0], [1], [0, 0, 1, 1], [], []>} : vector<32x384xbf16>, vector<384x128xbf16>, vector<32x128xf32> -> vector<32x128xf32>
    %96 = arith.addf %88, %95 : vector<32x128xf32>
    %c13 = arith.constant 13 : index
    %c0_51 = arith.constant 0 : index
    %c0_52 = arith.constant 0 : index
    %97 = vector.load %arg1[%c13, %c0_51, %c0_52] : memref<14x384x128xbf16, #tpu.memory_space<vmem>>, vector<1x384x128xbf16>
    %98 = vector.shape_cast %97 : vector<1x384x128xbf16> to vector<384x128xbf16>
    %cst_53 = arith.constant dense<0.000000e+00> : vector<32x128xf32>
    %99 = tpu.matmul %92, %98, %cst_53 {dimension_numbers = #tpu.dot_dimension_numbers<[1], [0], [0], [1], [0, 0, 1, 1], [], []>} : vector<32x384xbf16>, vector<384x128xbf16>, vector<32x128xf32> -> vector<32x128xf32>
    %100 = arith.addf %96, %99 : vector<32x128xf32>
    %101 = vector.broadcast %15 : f32 to vector<32x128xf32>
    %102 = arith.addf %100, %101 : vector<32x128xf32>
    %103 = arith.negf %102 : vector<32x128xf32>
    %104 = math.exp %103 : vector<32x128xf32>
    %cst_54 = arith.constant 1.000000e+00 : f32
    %105 = vector.broadcast %cst_54 : f32 to vector<32x128xf32>
    %106 = arith.addf %105, %104 : vector<32x128xf32>
    %107 = arith.divf %105, %106 : vector<32x128xf32>
    %108 = arith.mulf %102, %107 : vector<32x128xf32>
    %109 = vector.shape_cast %108 : vector<32x128xf32> to vector<2x1x16x128xf32>
    %c0_55 = arith.constant 0 : index
    %c0_56 = arith.constant 0 : index
    %c0_57 = arith.constant 0 : index
    %c0_58 = arith.constant 0 : index
    %110 = vector.load %arg4[%c0_55, %c0_56, %c0_57, %c0_58] : memref<2x1x16x128xf32, #tpu.memory_space<vmem>>, vector<2x1x16x128xf32>
    tpu.vector_store %arg4[%c0_55, %c0_56, %c0_57, %c0_58], %109 {strides = array<i32>} : memref<2x1x16x128xf32, #tpu.memory_space<vmem>>, vector<2x1x16x128xf32>,
    return
  }
  func.func @transform_0(%arg0: i32) -> (i32, i32, i32) {
    %c0_i32 = arith.constant 0 : i32
    %c0_i32_0 = arith.constant 0 : i32
    %c0_i32_1 = arith.constant 0 : i32
    %c0_i32_2 = arith.constant 0 : i32
    return %c0_i32, %c0_i32_0, %c0_i32_1 : i32, i32, i32
  }
  func.func @transform_1(%arg0: i32) -> i32 {
    %c0_i32 = arith.constant 0 : i32
    %c0_i32_0 = arith.constant 0 : i32
    return %c0_i32 : i32
  }
  func.func @transform_2(%arg0: i32) -> (i32, i32, i32, i32) {
    %c0_i32 = arith.constant 0 : i32
    %c0_i32_0 = arith.constant 0 : i32
    %c0_i32_1 = arith.constant 0 : i32
    %c0_i32_2 = arith.constant 0 : i32
    return %arg0, %c0_i32, %c0_i32_0, %c0_i32_1 : i32, i32, i32, i32
  }
  func.func @transform_3(%arg0: i32) -> (i32, i32, i32, i32) {
    %c0_i32 = arith.constant 0 : i32
    %c0_i32_0 = arith.constant 0 : i32
    %c0_i32_1 = arith.constant 0 : i32
    %c0_i32_2 = arith.constant 0 : i32
    return %arg0, %c0_i32, %c0_i32_0, %c0_i32_1 : i32, i32, i32, i32
  }
}

</mosaic_0001>

<llo_original>
// kernel: tpu_custom_call.1
$region0: #{tpu_custom_call.1}
  #allocation0 [shape = 'u32[]', space=smem, size = 0x4, offset = 0x4, fixed_abs, tag = 'smem constant byte address 0x4 - core index']
  #allocation1 [shape = 'u32[144,128]{1,0:T(1,128)}', space=vmem, size = 0x12000, scoped, tag = 'internal scratch']
  #allocation2 [shape = 'f32[1]{0:T(128)S(6)}', space=smem, size = 0x200, scoped, tag = 'scoped memory for tpu_custom_call.1']
  %s0 = inlined_call_operand.hbm [shape: bf16[14,384,128], index: 0, kind: input, shape index: {}]
  %s1 = inlined_call_operand.<no memory space> [shape: f32[1], index: 1, kind: input, shape index: {}]
  %s2 = inlined_call_operand.hbm [shape: f32[2,4,16,128], index: 2, kind: input, shape index: {}]
  %s3 = inlined_call_operand.hbm [shape: f32[2,1,16,128], index: 3, kind: output, shape index: {}]
  %s4 = sld [smem:[#allocation0]]
  $region30: #{tpu_custom_call.1} parent=0
    _
  %s6 = ssub.s32 1, %s4
  %s7 = scalar_select 0, %s6, %s4
  %8 = sst [smem:[#allocation2]] %s1
  $region1: #{tpu_custom_call.1} parent=0
    #allocation3 [shape = 'u8[1376256]{0}', space=vmem, size = 0x150000, scoped, tag = 'input window, operand 0, single buffered']
    #allocation4 [shape = 's32[1]{0}', space=sflag, size = 0x4, scoped, tag = 'scoped memory for tpu_custom_call.1']
    #allocation5 [shape = 's32[1]{0}', space=sflag, size = 0x4, scoped, tag = 'scoped memory for tpu_custom_call.1']
    #allocation6 [shape = 'u8[65536]{0}', space=vmem, size = 0x10000, scoped, tag = 'input window, operand 2, single buffered']
    #allocation7 [shape = 's32[1]{0}', space=sflag, size = 0x4, scoped, tag = 'scoped memory for tpu_custom_call.1']
    #allocation8 [shape = 'u8[16384]{0}', space=vmem, size = 0x4000, scoped, tag = 'output window, operand 0, single buffered']
    %9 = vsyncpa [#allocation4], 0
    %10 = vsyncpa [#allocation7], 0
    %11 = vsyncpa [#allocation5], 0
    // Predicated region
    $region2: #{tpu_custom_call.1} parent=1 // pred_check
      _
    $region3: #{tpu_custom_call.1} parent=1 // pred_check_branch
      %13 = sbr.rel (0) target = $region5
    $region4: #{tpu_custom_call.1} parent=1 // pred_region
      %s15 = ssub.s32 43008, 43008
      %16 = vsyncadd [#allocation4], %s15
      %s17 = sshll.u32 [#allocation3], 4
      %s18 = int_to_ptr.vmem [resolvable:$true] %s17
      %23 = dma.hbm_to_vmem [thread:$0]  %s0, 43008, %s18, [#allocation4], 64, 64, 4
    $region5: #{tpu_custom_call.1} parent=1 // pred_fallthru
      _
    // Predicated region
    $region6: #{tpu_custom_call.1} parent=1 // pred_check
      _
    $region7: #{tpu_custom_call.1} parent=1 // pred_check_branch
      %25 = sbr.rel (0) target = $region9
    $region8: #{tpu_custom_call.1} parent=1 // pred_region
      _
    $region9: #{tpu_custom_call.1} parent=1 // pred_fallthru
      _
    // Predicated region
    $region10: #{tpu_custom_call.1} parent=1 // pred_check
      _
    $region11: #{tpu_custom_call.1} parent=1 // pred_check_branch
      %27 = sbr.rel (0) target = $region13
    $region12: #{tpu_custom_call.1} parent=1 // pred_region
      %s29 = ssub.s32 2048, 2048
      %30 = vsyncadd [#allocation7], %s29
      %s31 = sshll.u32 [#allocation6], 4
      %s32 = int_to_ptr.vmem [resolvable:$true] %s31
      %37 = dma.hbm_to_vmem [thread:$0]  %s2, 2048, %s32, [#allocation7], 128, 128, 8
    $region13: #{tpu_custom_call.1} parent=1 // pred_fallthru
      _
    // Predicated region
    $region14: #{tpu_custom_call.1} parent=1 // pred_check
      _
    $region15: #{tpu_custom_call.1} parent=1 // pred_check_branch
      %39 = sbr.rel (0) target = $region17
    $region16: #{tpu_custom_call.1} parent=1 // pred_region
      %40 = dma.done [#allocation4], 43008
    $region17: #{tpu_custom_call.1} parent=1 // pred_fallthru
      _
    // Predicated region
    $region18: #{tpu_custom_call.1} parent=1 // pred_check
      _
    $region19: #{tpu_custom_call.1} parent=1 // pred_check_branch
      %42 = sbr.rel (0) target = $region21
    $region20: #{tpu_custom_call.1} parent=1 // pred_region
      %43 = dma.done [#allocation7], 2048
    $region21: #{tpu_custom_call.1} parent=1 // pred_fallthru
      _
    %v45 = vld [vmem:[#allocation6] sm:$0xff]
    %v46 = vld [vmem:[#allocation6 + $0x8] sm:$0xff]
    %v47 = vld [vmem:[#allocation6 + $0x10] sm:$0xff]
    %v48 = vld [vmem:[#allocation6 + $0x18] sm:$0xff]
    %v49 = vld [vmem:[#allocation6 + $0x20] sm:$0xff]
    %v50 = vld [vmem:[#allocation6 + $0x28] sm:$0xff]
    %v51 = vld [vmem:[#allocation6 + $0x30] sm:$0xff]
    %v52 = vld [vmem:[#allocation6 + $0x38] sm:$0xff]
    %v53 = vld [vmem:[#allocation6 + $0x40] sm:$0xff]
    %v54 = vld [vmem:[#allocation6 + $0x48] sm:$0xff]
    %v55 = vld [vmem:[#allocation6 + $0x50] sm:$0xff]
    %v56 = vld [vmem:[#allocation6 + $0x58] sm:$0xff]
    %v57 = vld [vmem:[#allocation6 + $0x60] sm:$0xff]
    %v58 = vld [vmem:[#allocation6 + $0x68] sm:$0xff]
    %v59 = vld [vmem:[#allocation6 + $0x70] sm:$0xff]
    %v60 = vld [vmem:[#allocation6 + $0x78] sm:$0xff]
    %v61 = vmax.f32 %v45, %v47
    %v62 = vmax.f32 %v61, %v49
    %v63 = vmax.f32 %v62, %v51
    %v64 = vmax.f32 %v46, %v48
    %v65 = vmax.f32 %v64, %v50
    %v66 = vmax.f32 %v65, %v52
    %v67 = vmax.f32 %v53, %v55
    %v68 = vmax.f32 %v67, %v57
    %v69 = vmax.f32 %v68, %v59
    %v70 = vmax.f32 %v54, %v56
    %v71 = vmax.f32 %v70, %v58
    %v72 = vmax.f32 %v71, %v60
    %v73 = vadd.f32 %v45, %v47
    %v74 = vadd.f32 %v73, %v49
    %v75 = vadd.f32 %v74, %v51
    %v76 = vadd.f32 %v46, %v48
    %v77 = vadd.f32 %v76, %v50
    %v78 = vadd.f32 %v77, %v52
    %v79 = vadd.f32 %v53, %v55
    %v80 = vadd.f32 %v79, %v57
    %v81 = vadd.f32 %v80, %v59
    %v82 = vadd.f32 %v54, %v56
    %v83 = vadd.f32 %v82, %v58
    %v84 = vadd.f32 %v83, %v60
    %v85 = vmul.f32 %v75, 0.25
    %v86 = vmul.f32 %v78, 0.25
    %v87 = vmul.f32 %v81, 0.25
    %v88 = vmul.f32 %v84, 0.25
    %v89 = vpack.c.bf16 0.0, 0.0
    %v90 = vpack.c.bf16 %v63, 0.0
    %v91 = vpack.c.bf16 0.0, %v66
    %v92 = vpack.c.bf16 %v69, 0.0
    %v93 = vpack.c.bf16 0.0, %v72
    %v94 = vpack.c.bf16 %v85, 0.0
    %v95 = vpack.c.bf16 0.0, %v86
    %v96 = vpack.c.bf16 %v87, 0.0
    %v97 = vpack.c.bf16 0.0, %v88
    %s98 = sld [smem:[#allocation2]]
    %vm99 = vsmask.f32 5376
    %v101 = vshrl.u32 %v89, 16
    %v103 = vrot.slane %v101, 2
    %v104 = vshll.u32 %v89, 16
    %v106 = vrot.slane %v104, 3
    %v107 = vor.u32 %v103, %v106
    %v108 = vsel %vm99, %v107, %v107
    %v110 = vshrl.u32 %v90, 16
    %v112 = vrot.slane %v110, 2
    %v113 = vshll.u32 %v90, 16
    %v115 = vrot.slane %v113, 3
    %v116 = vor.u32 %v112, %v115
    %v118 = vshrl.u32 %v91, 16
    %v120 = vrot.slane %v118, 2
    %v121 = vshll.u32 %v91, 16
    %v123 = vrot.slane %v121, 3
    %v124 = vor.u32 %v120, %v123
    %v125 = vsel %vm99, %v116, %v124
    %v127 = vshrl.u32 %v92, 16
    %v129 = vrot.slane %v127, 2
    %v130 = vshll.u32 %v92, 16
    %v132 = vrot.slane %v130, 3
    %v133 = vor.u32 %v129, %v132
    %v135 = vshrl.u32 %v93, 16
    %v137 = vrot.slane %v135, 2
    %v138 = vshll.u32 %v93, 16
    %v140 = vrot.slane %v138, 3
    %v141 = vor.u32 %v137, %v140
    %v142 = vsel %vm99, %v133, %v141
    %v147 = vshrl.u32 %v94, 16
    %v149 = vrot.slane %v147, 2
    %v150 = vshll.u32 %v94, 16
    %v152 = vrot.slane %v150, 3
    %v153 = vor.u32 %v149, %v152
    %v155 = vshrl.u32 %v95, 16
    %v157 = vrot.slane %v155, 2
    %v158 = vshll.u32 %v95, 16
    %v160 = vrot.slane %v158, 3
    %v161 = vor.u32 %v157, %v160
    %v162 = vsel %vm99, %v153, %v161
    %v164 = vshrl.u32 %v96, 16
    %v166 = vrot.slane %v164, 2
    %v167 = vshll.u32 %v96, 16
    %v169 = vrot.slane %v167, 3
    %v170 = vor.u32 %v166, %v169
    %v172 = vshrl.u32 %v97, 16
    %v174 = vrot.slane %v172, 2
    %v175 = vshll.u32 %v97, 16
    %v177 = vrot.slane %v175, 3
    %v178 = vor.u32 %v174, %v177
    %v179 = vsel %vm99, %v170, %v178
    %v182 = vld [vmem:[#allocation3] sm:$0xf]
    %v183 = vld [vmem:[#allocation3 + $0x4] sm:$0xf]
    %v184 = vld [vmem:[#allocation3 + $0x8] sm:$0xf]
    %v185 = vld [vmem:[#allocation3 + $0xc] sm:$0xf]
    %v186 = vld [vmem:[#allocation3 + $0x10] sm:$0xf]
    %v187 = vld [vmem:[#allocation3 + $0x14] sm:$0xf]
    %v188 = vld [vmem:[#allocation3 + $0x18] sm:$0xf]
    %v189 = vld [vmem:[#allocation3 + $0x1c] sm:$0xf]
    %v190 = vld [vmem:[#allocation3 + $0x20] sm:$0xf]
    %v191 = vld [vmem:[#allocation3 + $0x24] sm:$0xf]
    %v192 = vld [vmem:[#allocation3 + $0x28] sm:$0xf]
    %v193 = vld [vmem:[#allocation3 + $0x2c] sm:$0xf]
    %v194 = vld [vmem:[#allocation3 + $0x30] sm:$0xf]
    %v195 = vld [vmem:[#allocation3 + $0x34] sm:$0xf]
    %v196 = vld [vmem:[#allocation3 + $0x38] sm:$0xf]
    %v197 = vld [vmem:[#allocation3 + $0x3c] sm:$0xf]
    %v198 = vld [vmem:[#allocation3 + $0x40] sm:$0xf]
    %v199 = vld [vmem:[#allocation3 + $0x44] sm:$0xf]
    %v200 = vld [vmem:[#allocation3 + $0x48] sm:$0xf]
    %v201 = vld [vmem:[#allocation3 + $0x4c] sm:$0xf]
    %v202 = vld [vmem:[#allocation3 + $0x50] sm:$0xf]
    %v203 = vld [vmem:[#allocation3 + $0x54] sm:$0xf]
    %v204 = vld [vmem:[#allocation3 + $0x58] sm:$0xf]
    %v205 = vld [vmem:[#allocation3 + $0x5c] sm:$0xf]
    %v206 = vld [vmem:[#allocation3 + $0x60] sm:$0xf]
    %v207 = vld [vmem:[#allocation3 + $0x64] sm:$0xf]
    %v208 = vld [vmem:[#allocation3 + $0x68] sm:$0xf]
    %v209 = vld [vmem:[#allocation3 + $0x6c] sm:$0xf]
    %v210 = vld [vmem:[#allocation3 + $0x70] sm:$0xf]
    %v211 = vld [vmem:[#allocation3 + $0x74] sm:$0xf]
    %v212 = vld [vmem:[#allocation3 + $0x78] sm:$0xf]
    %v213 = vld [vmem:[#allocation3 + $0x7c] sm:$0xf]
    %v214 = vld [vmem:[#allocation3 + $0x80] sm:$0xf]
    %v215 = vld [vmem:[#allocation3 + $0x84] sm:$0xf]
    %v216 = vld [vmem:[#allocation3 + $0x88] sm:$0xf]
    %v217 = vld [vmem:[#allocation3 + $0x8c] sm:$0xf]
    %v218 = vld [vmem:[#allocation3 + $0x90] sm:$0xf]
    %v219 = vld [vmem:[#allocation3 + $0x94] sm:$0xf]
    %v220 = vld [vmem:[#allocation3 + $0x98] sm:$0xf]
    %v221 = vld [vmem:[#allocation3 + $0x9c] sm:$0xf]
    %v222 = vld [vmem:[#allocation3 + $0xa0] sm:$0xf]
    %v223 = vld [vmem:[#allocation3 + $0xa4] sm:$0xf]
    %v224 = vld [vmem:[#allocation3 + $0xa8] sm:$0xf]
    %v225 = vld [vmem:[#allocation3 + $0xac] sm:$0xf]
    %v226 = vld [vmem:[#allocation3 + $0xb0] sm:$0xf]
    %v227 = vld [vmem:[#allocation3 + $0xb4] sm:$0xf]
    %v228 = vld [vmem:[#allocation3 + $0xb8] sm:$0xf]
    %v229 = vld [vmem:[#allocation3 + $0xbc] sm:$0xf]
    %s230 = scalar_lea.vmem [#allocation3], 1344
    %v231 = vld [vmem:[%s230] sm:$0xf]
    %v232 = vld [vmem:[%s230 + $0x4] sm:$0xf]
    %v233 = vld [vmem:[%s230 + $0x8] sm:$0xf]
    %v234 = vld [vmem:[%s230 + $0xc] sm:$0xf]
    %v235 = vld [vmem:[%s230 + $0x10] sm:$0xf]
    %v236 = vld [vmem:[%s230 + $0x14] sm:$0xf]
    %v237 = vld [vmem:[%s230 + $0x18] sm:$0xf]
    %v238 = vld [vmem:[%s230 + $0x1c] sm:$0xf]
    %v239 = vld [vmem:[%s230 + $0x20] sm:$0xf]
    %v240 = vld [vmem:[%s230 + $0x24] sm:$0xf]
    %v241 = vld [vmem:[%s230 + $0x28] sm:$0xf]
    %v242 = vld [vmem:[%s230 + $0x2c] sm:$0xf]
    %v243 = vld [vmem:[%s230 + $0x30] sm:$0xf]
    %v244 = vld [vmem:[%s230 + $0x34] sm:$0xf]
    %v245 = vld [vmem:[%s230 + $0x38] sm:$0xf]
    %v246 = vld [vmem:[%s230 + $0x3c] sm:$0xf]
    %v247 = vld [vmem:[%s230 + $0x40] sm:$0xf]
    %v248 = vld [vmem:[%s230 + $0x44] sm:$0xf]
    %v249 = vld [vmem:[%s230 + $0x48] sm:$0xf]
    %v250 = vld [vmem:[%s230 + $0x4c] sm:$0xf]
    %v251 = vld [vmem:[%s230 + $0x50] sm:$0xf]
    %v252 = vld [vmem:[%s230 + $0x54] sm:$0xf]
    %v253 = vld [vmem:[%s230 + $0x58] sm:$0xf]
    %v254 = vld [vmem:[%s230 + $0x5c] sm:$0xf]
    %v255 = vld [vmem:[%s230 + $0x60] sm:$0xf]
    %v256 = vld [vmem:[%s230 + $0x64] sm:$0xf]
    %v257 = vld [vmem:[%s230 + $0x68] sm:$0xf]
    %v258 = vld [vmem:[%s230 + $0x6c] sm:$0xf]
    %v259 = vld [vmem:[%s230 + $0x70] sm:$0xf]
    %v260 = vld [vmem:[%s230 + $0x74] sm:$0xf]
    %v261 = vld [vmem:[%s230 + $0x78] sm:$0xf]
    %v262 = vld [vmem:[%s230 + $0x7c] sm:$0xf]
    %v263 = vld [vmem:[%s230 + $0x80] sm:$0xf]
    %v264 = vld [vmem:[%s230 + $0x84] sm:$0xf]
    %v265 = vld [vmem:[%s230 + $0x88] sm:$0xf]
    %v266 = vld [vmem:[%s230 + $0x8c] sm:$0xf]
    %v267 = vld [vmem:[%s230 + $0x90] sm:$0xf]
    %v268 = vld [vmem:[%s230 + $0x94] sm:$0xf]
    %v269 = vld [vmem:[%s230 + $0x98] sm:$0xf]
    %v270 = vld [vmem:[%s230 + $0x9c] sm:$0xf]
    %v271 = vld [vmem:[%s230 + $0xa0] sm:$0xf]
    %v272 = vld [vmem:[%s230 + $0xa4] sm:$0xf]
    %v273 = vld [vmem:[%s230 + $0xa8] sm:$0xf]
    %v274 = vld [vmem:[%s230 + $0xac] sm:$0xf]
    %v275 = vld [vmem:[%s230 + $0xb0] sm:$0xf]
    %v276 = vld [vmem:[%s230 + $0xb4] sm:$0xf]
    %v277 = vld [vmem:[%s230 + $0xb8] sm:$0xf]
    %v278 = vld [vmem:[%s230 + $0xbc] sm:$0xf]
    %v327 = vunpack.c.l.b16 %v231
    %v328 = vunpack.c.l.b16 %v232
    %v329 = vunpack.c.l.b16 %v233
    %v330 = vunpack.c.l.b16 %v234
    %v331 = vunpack.c.l.b16 %v235
    %v332 = vunpack.c.l.b16 %v236
    %v333 = vunpack.c.l.b16 %v237
    %v334 = vunpack.c.l.b16 %v238
    %v335 = vunpack.c.l.b16 %v239
    %v336 = vunpack.c.l.b16 %v240
    %v337 = vunpack.c.l.b16 %v241
    %v338 = vunpack.c.l.b16 %v242
    %v339 = vunpack.c.l.b16 %v243
    %v340 = vunpack.c.l.b16 %v244
    %v341 = vunpack.c.l.b16 %v245
    %v342 = vunpack.c.l.b16 %v246
    %v343 = vunpack.c.l.b16 %v247
    %v344 = vunpack.c.l.b16 %v248
    %v345 = vunpack.c.l.b16 %v249
    %v346 = vunpack.c.l.b16 %v250
    %v347 = vunpack.c.l.b16 %v251
    %v348 = vunpack.c.l.b16 %v252
    %v349 = vunpack.c.l.b16 %v253
    %v350 = vunpack.c.l.b16 %v254
    %v351 = vunpack.c.l.b16 %v255
    %v352 = vunpack.c.l.b16 %v256
    %v353 = vunpack.c.l.b16 %v257
    %v354 = vunpack.c.l.b16 %v258
    %v355 = vunpack.c.l.b16 %v259
    %v356 = vunpack.c.l.b16 %v260
    %v357 = vunpack.c.l.b16 %v261
    %v358 = vunpack.c.l.b16 %v262
    %v359 = vunpack.c.l.b16 %v263
    %v360 = vunpack.c.l.b16 %v264
    %v361 = vunpack.c.l.b16 %v265
    %v362 = vunpack.c.l.b16 %v266
    %v363 = vunpack.c.l.b16 %v267
    %v364 = vunpack.c.l.b16 %v268
    %v365 = vunpack.c.l.b16 %v269
    %v366 = vunpack.c.l.b16 %v270
    %v367 = vunpack.c.l.b16 %v271
    %v368 = vunpack.c.l.b16 %v272
    %v369 = vunpack.c.l.b16 %v273
    %v370 = vunpack.c.l.b16 %v274
    %v371 = vunpack.c.l.b16 %v275
    %v372 = vunpack.c.l.b16 %v276
    %v373 = vunpack.c.l.b16 %v277
    %v374 = vunpack.c.l.b16 %v278
    %v375 = vpack.c.b16 %v328, %v327
    %v376 = vpack.c.b16 %v330, %v329
    %v377 = vpack.c.b16 %v332, %v331
    %v378 = vpack.c.b16 %v334, %v333
    %v379 = vpack.c.b16 %v336, %v335
    %v380 = vpack.c.b16 %v338, %v337
    %v381 = vpack.c.b16 %v340, %v339
    %v382 = vpack.c.b16 %v342, %v341
    %v383 = vpack.c.b16 %v344, %v343
    %v384 = vpack.c.b16 %v346, %v345
    %v385 = vpack.c.b16 %v348, %v347
    %v386 = vpack.c.b16 %v350, %v349
    %v387 = vpack.c.b16 %v352, %v351
    %v388 = vpack.c.b16 %v354, %v353
    %v389 = vpack.c.b16 %v356, %v355
    %v390 = vpack.c.b16 %v358, %v357
    %v391 = vpack.c.b16 %v360, %v359
    %v392 = vpack.c.b16 %v362, %v361
    %v393 = vpack.c.b16 %v364, %v363
    %v394 = vpack.c.b16 %v366, %v365
    %v395 = vpack.c.b16 %v368, %v367
    %v396 = vpack.c.b16 %v370, %v369
    %v397 = vpack.c.b16 %v372, %v371
    %v398 = vpack.c.b16 %v374, %v373
    %423 = vmatprep.subr.bf16.mxu0 0
    %424 = vmatpush1.bf16.msra.mxu0 %v382
    %425 = vmatprep.subr.bf16.mxu0 0
    %426 = vmatpush1.bf16.msra.mxu0 %v381
    %427 = vmatprep.subr.bf16.mxu0 0
    %428 = vmatpush1.bf16.msra.mxu0 %v380
    %429 = vmatprep.subr.bf16.mxu0 0
    %430 = vmatpush1.bf16.msra.mxu0 %v379
    %431 = vmatprep.subr.bf16.mxu0 0
    %432 = vmatpush1.bf16.msra.mxu0 %v378
    %433 = vmatprep.subr.bf16.mxu0 0
    %434 = vmatpush1.bf16.msra.mxu0 %v377
    %435 = vmatprep.subr.bf16.mxu0 0
    %436 = vmatpush1.bf16.msra.mxu0 %v376
    %437 = vmatprep.subr.bf16.mxu0 0
    %438 = vmatpush1.bf16.msra.mxu0 %v375
    %439 = vmatprep.subr.bf16.mxu0 0
    %440 = vmatpush2.bf16.msra.mxu0 %v390
    %441 = vmatprep.subr.bf16.mxu0 0
    %442 = vmatpush2.bf16.msra.mxu0 %v389
    %443 = vmatprep.subr.bf16.mxu0 0
    %444 = vmatpush2.bf16.msra.mxu0 %v388
    %445 = vmatprep.subr.bf16.mxu0 0
    %446 = vmatpush2.bf16.msra.mxu0 %v387
    %447 = vmatprep.subr.bf16.mxu0 0
    %448 = vmatpush2.bf16.msra.mxu0 %v386
    %449 = vmatprep.subr.bf16.mxu0 0
    %450 = vmatpush2.bf16.msra.mxu0 %v385
    %451 = vmatprep.subr.bf16.mxu0 0
    %452 = vmatpush2.bf16.msra.mxu0 %v384
    %453 = vmatprep.subr.bf16.mxu0 0
    %454 = vmatpush2.bf16.msra.mxu0 %v383
    %455 = vmatprep.mubr.bf16.mxu0 %v162
    %456 = vmatmul.mubr.bf16.gmra.mxu0 %v108
    %v457 = vpop.f32.mrf.mxu0
    %v458 = vadd.f32 0.0, %v457
    %v459 = vpop.f32.mrf.mxu0
    %v460 = vpop.f32.mrf.mxu0
    %v461 = vadd.f32 0.0, %v460
    %v462 = vpop.f32.mrf.mxu0
    %463 = vmatprep.mubr.bf16.mxu0 %v179
    %464 = vmatmul.mubr.bf16.gmra.mxu0 %v108
    %v465 = vpop.f32.mrf.mxu0
    %v466 = vadd.f32 0.0, %v465
    %v467 = vpop.f32.mrf.mxu0
    %v468 = vpop.f32.mrf.mxu0
    %v469 = vadd.f32 0.0, %v468
    %v470 = vpop.f32.mrf.mxu0
    %471 = vdwg.mxu0
    %472 = vmatprep.subr.bf16.mxu0 0
    %473 = vmatpush1.bf16.msra.mxu0 %v398
    %474 = vmatprep.subr.bf16.mxu0 0
    %475 = vmatpush1.bf16.msra.mxu0 %v397
    %476 = vmatprep.subr.bf16.mxu0 0
    %477 = vmatpush1.bf16.msra.mxu0 %v396
    %478 = vmatprep.subr.bf16.mxu0 0
    %479 = vmatpush1.bf16.msra.mxu0 %v395
    %480 = vmatprep.subr.bf16.mxu0 0
    %481 = vmatpush1.bf16.msra.mxu0 %v394
    %482 = vmatprep.subr.bf16.mxu0 0
    %483 = vmatpush1.bf16.msra.mxu0 %v393
    %484 = vmatprep.subr.bf16.mxu0 0
    %485 = vmatpush1.bf16.msra.mxu0 %v392
    %486 = vmatprep.subr.bf16.mxu0 0
    %487 = vmatpush1.bf16.msra.mxu0 %v391
    %488 = vmatprep.subr.bf16.mxu0 0
    %489 = vmatpush2.bf16.msra.mxu0 0
    %490 = vmatprep.subr.bf16.mxu0 0
    %491 = vmatpush2.bf16.msra.mxu0 0
    %492 = vmatprep.subr.bf16.mxu0 0
    %493 = vmatpush2.bf16.msra.mxu0 0
    %494 = vmatprep.subr.bf16.mxu0 0
    %495 = vmatpush2.bf16.msra.mxu0 0
    %496 = vmatprep.subr.bf16.mxu0 0
    %497 = vmatpush2.bf16.msra.mxu0 0
    %498 = vmatprep.subr.bf16.mxu0 0
    %499 = vmatpush2.bf16.msra.mxu0 0
    %500 = vmatprep.subr.bf16.mxu0 0
    %501 = vmatpush2.bf16.msra.mxu0 0
    %502 = vmatprep.subr.bf16.mxu0 0
    %503 = vmatpush2.bf16.msra.mxu0 0
    %504 = vmatprep.mubr.bf16.mxu0 0
    %505 = vmatmul.mubr.bf16.gmra.mxu0 %v108
    %v506 = vpop.f32.mrf.mxu0
    %v507 = vadd.f32 %v458, %v506
    %v508 = vpop.f32.mrf.mxu0
    %v509 = vpop.f32.mrf.mxu0
    %v510 = vadd.f32 %v461, %v509
    %v511 = vpop.f32.mrf.mxu0
    %512 = vmatprep.mubr.bf16.mxu0 0
    %513 = vmatmul.mubr.bf16.gmra.mxu0 %v108
    %v514 = vpop.f32.mrf.mxu0
    %v515 = vadd.f32 %v466, %v514
    %v516 = vpop.f32.mrf.mxu0
    %v517 = vpop.f32.mrf.mxu0
    %v518 = vadd.f32 %v469, %v517
    %v519 = vpop.f32.mrf.mxu0
    %520 = vdwg.mxu0
    %v569 = vunpack.c.l.b16 %v182
    %v570 = vunpack.c.l.b16 %v183
    %v571 = vunpack.c.l.b16 %v184
    %v572 = vunpack.c.l.b16 %v185
    %v573 = vunpack.c.l.b16 %v186
    %v574 = vunpack.c.l.b16 %v187
    %v575 = vunpack.c.l.b16 %v188
    %v576 = vunpack.c.l.b16 %v189
    %v577 = vunpack.c.l.b16 %v190
    %v578 = vunpack.c.l.b16 %v191
    %v579 = vunpack.c.l.b16 %v192
    %v580 = vunpack.c.l.b16 %v193
    %v581 = vunpack.c.l.b16 %v194
    %v582 = vunpack.c.l.b16 %v195
    %v583 = vunpack.c.l.b16 %v196
    %v584 = vunpack.c.l.b16 %v197
    %v585 = vunpack.c.l.b16 %v198
    %v586 = vunpack.c.l.b16 %v199
    %v587 = vunpack.c.l.b16 %v200
    %v588 = vunpack.c.l.b16 %v201
    %v589 = vunpack.c.l.b16 %v202
    %v590 = vunpack.c.l.b16 %v203
    %v591 = vunpack.c.l.b16 %v204
    %v592 = vunpack.c.l.b16 %v205
    %v593 = vunpack.c.l.b16 %v206
    %v594 = vunpack.c.l.b16 %v207
    %v595 = vunpack.c.l.b16 %v208
    %v596 = vunpack.c.l.b16 %v209
    %v597 = vunpack.c.l.b16 %v210
    %v598 = vunpack.c.l.b16 %v211
    %v599 = vunpack.c.l.b16 %v212
    %v600 = vunpack.c.l.b16 %v213
    %v601 = vunpack.c.l.b16 %v214
    %v602 = vunpack.c.l.b16 %v215
    %v603 = vunpack.c.l.b16 %v216
    %v604 = vunpack.c.l.b16 %v217
    %v605 = vunpack.c.l.b16 %v218
    %v606 = vunpack.c.l.b16 %v219
    %v607 = vunpack.c.l.b16 %v220
    %v608 = vunpack.c.l.b16 %v221
    %v609 = vunpack.c.l.b16 %v222
    %v610 = vunpack.c.l.b16 %v223
    %v611 = vunpack.c.l.b16 %v224
    %v612 = vunpack.c.l.b16 %v225
    %v613 = vunpack.c.l.b16 %v226
    %v614 = vunpack.c.l.b16 %v227
    %v615 = vunpack.c.l.b16 %v228
    %v616 = vunpack.c.l.b16 %v229
    %v617 = vpack.c.b16 %v570, %v569
    %v618 = vpack.c.b16 %v572, %v571
    %v619 = vpack.c.b16 %v574, %v573
    %v620 = vpack.c.b16 %v576, %v575
    %v621 = vpack.c.b16 %v578, %v577
    %v622 = vpack.c.b16 %v580, %v579
    %v623 = vpack.c.b16 %v582, %v581
    %v624 = vpack.c.b16 %v584, %v583
    %v625 = vpack.c.b16 %v586, %v585
    %v626 = vpack.c.b16 %v588, %v587
    %v627 = vpack.c.b16 %v590, %v589
    %v628 = vpack.c.b16 %v592, %v591
    %v629 = vpack.c.b16 %v594, %v593
    %v630 = vpack.c.b16 %v596, %v595
    %v631 = vpack.c.b16 %v598, %v597
    %v632 = vpack.c.b16 %v600, %v599
    %v633 = vpack.c.b16 %v602, %v601
    %v634 = vpack.c.b16 %v604, %v603
    %v635 = vpack.c.b16 %v606, %v605
    %v636 = vpack.c.b16 %v608, %v607
    %v637 = vpack.c.b16 %v610, %v609
    %v638 = vpack.c.b16 %v612, %v611
    %v639 = vpack.c.b16 %v614, %v613
    %v640 = vpack.c.b16 %v616, %v615
    %665 = vmatprep.subr.bf16.mxu0 0
    %666 = vmatpush1.bf16.msra.mxu0 %v624
    %667 = vmatprep.subr.bf16.mxu0 0
    %668 = vmatpush1.bf16.msra.mxu0 %v623
    %669 = vmatprep.subr.bf16.mxu0 0
    %670 = vmatpush1.bf16.msra.mxu0 %v622
    %671 = vmatprep.subr.bf16.mxu0 0
    %672 = vmatpush1.bf16.msra.mxu0 %v621
    %673 = vmatprep.subr.bf16.mxu0 0
    %674 = vmatpush1.bf16.msra.mxu0 %v620
    %675 = vmatprep.subr.bf16.mxu0 0
    %676 = vmatpush1.bf16.msra.mxu0 %v619
    %677 = vmatprep.subr.bf16.mxu0 0
    %678 = vmatpush1.bf16.msra.mxu0 %v618
    %679 = vmatprep.subr.bf16.mxu0 0
    %680 = vmatpush1.bf16.msra.mxu0 %v617
    %681 = vmatprep.subr.bf16.mxu0 0
    %682 = vmatpush2.bf16.msra.mxu0 %v632
    %683 = vmatprep.subr.bf16.mxu0 0
    %684 = vmatpush2.bf16.msra.mxu0 %v631
    %685 = vmatprep.subr.bf16.mxu0 0
    %686 = vmatpush2.bf16.msra.mxu0 %v630
    %687 = vmatprep.subr.bf16.mxu0 0
    %688 = vmatpush2.bf16.msra.mxu0 %v629
    %689 = vmatprep.subr.bf16.mxu0 0
    %690 = vmatpush2.bf16.msra.mxu0 %v628
    %691 = vmatprep.subr.bf16.mxu0 0
    %692 = vmatpush2.bf16.msra.mxu0 %v627
    %693 = vmatprep.subr.bf16.mxu0 0
    %694 = vmatpush2.bf16.msra.mxu0 %v626
    %695 = vmatprep.subr.bf16.mxu0 0
    %696 = vmatpush2.bf16.msra.mxu0 %v625
    %697 = vmatprep.mubr.bf16.mxu0 %v125
    %698 = vmatmul.mubr.bf16.gmra.mxu0 %v108
    %v699 = vpop.f32.mrf.mxu0
    %v700 = vadd.f32 %v507, %v699
    %v701 = vpop.f32.mrf.mxu0
    %v702 = vpop.f32.mrf.mxu0
    %v703 = vadd.f32 %v510, %v702
    %v704 = vpop.f32.mrf.mxu0
    %705 = vmatprep.mubr.bf16.mxu0 %v142
    %706 = vmatmul.mubr.bf16.gmra.mxu0 %v108
    %v707 = vpop.f32.mrf.mxu0
    %v708 = vadd.f32 %v515, %v707
    %v709 = vpop.f32.mrf.mxu0
    %v710 = vpop.f32.mrf.mxu0
    %v711 = vadd.f32 %v518, %v710
    %v712 = vpop.f32.mrf.mxu0
    %713 = vdwg.mxu0
    %714 = vmatprep.subr.bf16.mxu0 0
    %715 = vmatpush1.bf16.msra.mxu0 %v640
    %716 = vmatprep.subr.bf16.mxu0 0
    %717 = vmatpush1.bf16.msra.mxu0 %v639
    %718 = vmatprep.subr.bf16.mxu0 0
    %719 = vmatpush1.bf16.msra.mxu0 %v638
    %720 = vmatprep.subr.bf16.mxu0 0
    %721 = vmatpush1.bf16.msra.mxu0 %v637
    %722 = vmatprep.subr.bf16.mxu0 0
    %723 = vmatpush1.bf16.msra.mxu0 %v636
    %724 = vmatprep.subr.bf16.mxu0 0
    %725 = vmatpush1.bf16.msra.mxu0 %v635
    %726 = vmatprep.subr.bf16.mxu0 0
    %727 = vmatpush1.bf16.msra.mxu0 %v634
    %728 = vmatprep.subr.bf16.mxu0 0
    %729 = vmatpush1.bf16.msra.mxu0 %v633
    %730 = vmatprep.subr.bf16.mxu0 0
    %731 = vmatpush2.bf16.msra.mxu0 0
    %732 = vmatprep.subr.bf16.mxu0 0
    %733 = vmatpush2.bf16.msra.mxu0 0
    %734 = vmatprep.subr.bf16.mxu0 0
    %735 = vmatpush2.bf16.msra.mxu0 0
    %736 = vmatprep.subr.bf16.mxu0 0
    %737 = vmatpush2.bf16.msra.mxu0 0
    %738 = vmatprep.subr.bf16.mxu0 0
    %739 = vmatpush2.bf16.msra.mxu0 0
    %740 = vmatprep.subr.bf16.mxu0 0
    %741 = vmatpush2.bf16.msra.mxu0 0
    %742 = vmatprep.subr.bf16.mxu0 0
    %743 = vmatpush2.bf16.msra.mxu0 0
    %744 = vmatprep.subr.bf16.mxu0 0
    %745 = vmatpush2.bf16.msra.mxu0 0
    %746 = vmatprep.mubr.bf16.mxu0 0
    %747 = vmatmul.mubr.bf16.gmra.mxu0 %v108
    %v748 = vpop.f32.mrf.mxu0
    %v749 = vadd.f32 %v700, %v748
    %v750 = vpop.f32.mrf.mxu0
    %v751 = vpop.f32.mrf.mxu0
    %v752 = vadd.f32 %v703, %v751
    %v753 = vpop.f32.mrf.mxu0
    %754 = vmatprep.mubr.bf16.mxu0 0
    %755 = vmatmul.mubr.bf16.gmra.mxu0 %v108
    %v756 = vpop.f32.mrf.mxu0
    %v757 = vadd.f32 %v708, %v756
    %v758 = vpop.f32.mrf.mxu0
    %v759 = vpop.f32.mrf.mxu0
    %v760 = vadd.f32 %v711, %v759
    %v761 = vpop.f32.mrf.mxu0
    %762 = vdwg.mxu0
    %vm768 = vcmask 1044480
    %v769 = vrot.slane %v89, 3
    %v770 = vsel %vm768, %v769, %v769
    %v771 = vrot.slane %v90, 3
    %v772 = vrot.slane %v91, 3
    %v773 = vsel %vm768, %v771, %v772
    %v774 = vrot.slane %v92, 3
    %v775 = vrot.slane %v93, 3
    %v776 = vsel %vm768, %v774, %v775
    %v784 = vrot.slane %v94, 3
    %v785 = vrot.slane %v95, 3
    %v786 = vsel %vm768, %v784, %v785
    %v787 = vrot.slane %v96, 3
    %v788 = vrot.slane %v97, 3
    %v789 = vsel %vm768, %v787, %v788
    %s792 = scalar_lea.vmem [#allocation3], 192
    %v793 = vld [vmem:[%s792] sm:$0xf]
    %v794 = vld [vmem:[%s792 + $0x4] sm:$0xf]
    %v795 = vld [vmem:[%s792 + $0x8] sm:$0xf]
    %v796 = vld [vmem:[%s792 + $0xc] sm:$0xf]
    %v797 = vld [vmem:[%s792 + $0x10] sm:$0xf]
    %v798 = vld [vmem:[%s792 + $0x14] sm:$0xf]
    %v799 = vld [vmem:[%s792 + $0x18] sm:$0xf]
    %v800 = vld [vmem:[%s792 + $0x1c] sm:$0xf]
    %v801 = vld [vmem:[%s792 + $0x20] sm:$0xf]
    %v802 = vld [vmem:[%s792 + $0x24] sm:$0xf]
    %v803 = vld [vmem:[%s792 + $0x28] sm:$0xf]
    %v804 = vld [vmem:[%s792 + $0x2c] sm:$0xf]
    %v805 = vld [vmem:[%s792 + $0x30] sm:$0xf]
    %v806 = vld [vmem:[%s792 + $0x34] sm:$0xf]
    %v807 = vld [vmem:[%s792 + $0x38] sm:$0xf]
    %v808 = vld [vmem:[%s792 + $0x3c] sm:$0xf]
    %v809 = vld [vmem:[%s792 + $0x40] sm:$0xf]
    %v810 = vld [vmem:[%s792 + $0x44] sm:$0xf]
    %v811 = vld [vmem:[%s792 + $0x48] sm:$0xf]
    %v812 = vld [vmem:[%s792 + $0x4c] sm:$0xf]
    %v813 = vld [vmem:[%s792 + $0x50] sm:$0xf]
    %v814 = vld [vmem:[%s792 + $0x54] sm:$0xf]
    %v815 = vld [vmem:[%s792 + $0x58] sm:$0xf]
    %v816 = vld [vmem:[%s792 + $0x5c] sm:$0xf]
    %v817 = vld [vmem:[%s792 + $0x60] sm:$0xf]
    %v818 = vld [vmem:[%s792 + $0x64] sm:$0xf]
    %v819 = vld [vmem:[%s792 + $0x68] sm:$0xf]
    %v820 = vld [vmem:[%s792 + $0x6c] sm:$0xf]
    %v821 = vld [vmem:[%s792 + $0x70] sm:$0xf]
    %v822 = vld [vmem:[%s792 + $0x74] sm:$0xf]
    %v823 = vld [vmem:[%s792 + $0x78] sm:$0xf]
    %v824 = vld [vmem:[%s792 + $0x7c] sm:$0xf]
    %v825 = vld [vmem:[%s792 + $0x80] sm:$0xf]
    %v826 = vld [vmem:[%s792 + $0x84] sm:$0xf]
    %v827 = vld [vmem:[%s792 + $0x88] sm:$0xf]
    %v828 = vld [vmem:[%s792 + $0x8c] sm:$0xf]
    %v829 = vld [vmem:[%s792 + $0x90] sm:$0xf]
    %v830 = vld [vmem:[%s792 + $0x94] sm:$0xf]
    %v831 = vld [vmem:[%s792 + $0x98] sm:$0xf]
    %v832 = vld [vmem:[%s792 + $0x9c] sm:$0xf]
    %v833 = vld [vmem:[%s792 + $0xa0] sm:$0xf]
    %v834 = vld [vmem:[%s792 + $0xa4] sm:$0xf]
    %v835 = vld [vmem:[%s792 + $0xa8] sm:$0xf]
    %v836 = vld [vmem:[%s792 + $0xac] sm:$0xf]
    %v837 = vld [vmem:[%s792 + $0xb0] sm:$0xf]
    %v838 = vld [vmem:[%s792 + $0xb4] sm:$0xf]
    %v839 = vld [vmem:[%s792 + $0xb8] sm:$0xf]
    %v840 = vld [vmem:[%s792 + $0xbc] sm:$0xf]
    %v889 = vunpack.c.l.b16 %v793
    %v890 = vunpack.c.l.b16 %v794
    %v891 = vunpack.c.l.b16 %v795
    %v892 = vunpack.c.l.b16 %v796
    %v893 = vunpack.c.l.b16 %v797
    %v894 = vunpack.c.l.b16 %v798
    %v895 = vunpack.c.l.b16 %v799
    %v896 = vunpack.c.l.b16 %v800
    %v897 = vunpack.c.l.b16 %v801
    %v898 = vunpack.c.l.b16 %v802
    %v899 = vunpack.c.l.b16 %v803
    %v900 = vunpack.c.l.b16 %v804
    %v901 = vunpack.c.l.b16 %v805
    %v902 = vunpack.c.l.b16 %v806
    %v903 = vunpack.c.l.b16 %v807
    %v904 = vunpack.c.l.b16 %v808
    %v905 = vunpack.c.l.b16 %v809
    %v906 = vunpack.c.l.b16 %v810
    %v907 = vunpack.c.l.b16 %v811
    %v908 = vunpack.c.l.b16 %v812
    %v909 = vunpack.c.l.b16 %v813
    %v910 = vunpack.c.l.b16 %v814
    %v911 = vunpack.c.l.b16 %v815
    %v912 = vunpack.c.l.b16 %v816
    %v913 = vunpack.c.l.b16 %v817
    %v914 = vunpack.c.l.b16 %v818
    %v915 = vunpack.c.l.b16 %v819
    %v916 = vunpack.c.l.b16 %v820
    %v917 = vunpack.c.l.b16 %v821
    %v918 = vunpack.c.l.b16 %v822
    %v919 = vunpack.c.l.b16 %v823
    %v920 = vunpack.c.l.b16 %v824
    %v921 = vunpack.c.l.b16 %v825
    %v922 = vunpack.c.l.b16 %v826
    %v923 = vunpack.c.l.b16 %v827
    %v924 = vunpack.c.l.b16 %v828
    %v925 = vunpack.c.l.b16 %v829
    %v926 = vunpack.c.l.b16 %v830
    %v927 = vunpack.c.l.b16 %v831
    %v928 = vunpack.c.l.b16 %v832
    %v929 = vunpack.c.l.b16 %v833
    %v930 = vunpack.c.l.b16 %v834
    %v931 = vunpack.c.l.b16 %v835
    %v932 = vunpack.c.l.b16 %v836
    %v933 = vunpack.c.l.b16 %v837
    %v934 = vunpack.c.l.b16 %v838
    %v935 = vunpack.c.l.b16 %v839
    %v936 = vunpack.c.l.b16 %v840
    %v937 = vpack.c.b16 %v890, %v889
    %v938 = vpack.c.b16 %v892, %v891
    %v939 = vpack.c.b16 %v894, %v893
    %v940 = vpack.c.b16 %v896, %v895
    %v941 = vpack.c.b16 %v898, %v897
    %v942 = vpack.c.b16 %v900, %v899
    %v943 = vpack.c.b16 %v902, %v901
    %v944 = vpack.c.b16 %v904, %v903
    %v945 = vpack.c.b16 %v906, %v905
    %v946 = vpack.c.b16 %v908, %v907
    %v947 = vpack.c.b16 %v910, %v909
    %v948 = vpack.c.b16 %v912, %v911
    %v949 = vpack.c.b16 %v914, %v913
    %v950 = vpack.c.b16 %v916, %v915
    %v951 = vpack.c.b16 %v918, %v917
    %v952 = vpack.c.b16 %v920, %v919
    %v953 = vpack.c.b16 %v922, %v921
    %v954 = vpack.c.b16 %v924, %v923
    %v955 = vpack.c.b16 %v926, %v925
    %v956 = vpack.c.b16 %v928, %v927
    %v957 = vpack.c.b16 %v930, %v929
    %v958 = vpack.c.b16 %v932, %v931
    %v959 = vpack.c.b16 %v934, %v933
    %v960 = vpack.c.b16 %v936, %v935
    %985 = vmatprep.subr.bf16.mxu0 0
    %986 = vmatpush1.bf16.msra.mxu0 %v944
    %987 = vmatprep.subr.bf16.mxu0 0
    %988 = vmatpush1.bf16.msra.mxu0 %v943
    %989 = vmatprep.subr.bf16.mxu0 0
    %990 = vmatpush1.bf16.msra.mxu0 %v942
    %991 = vmatprep.subr.bf16.mxu0 0
    %992 = vmatpush1.bf16.msra.mxu0 %v941
    %993 = vmatprep.subr.bf16.mxu0 0
    %994 = vmatpush1.bf16.msra.mxu0 %v940
    %995 = vmatprep.subr.bf16.mxu0 0
    %996 = vmatpush1.bf16.msra.mxu0 %v939
    %997 = vmatprep.subr.bf16.mxu0 0
    %998 = vmatpush1.bf16.msra.mxu0 %v938
    %999 = vmatprep.subr.bf16.mxu0 0
    %1000 = vmatpush1.bf16.msra.mxu0 %v937
    %1001 = vmatprep.subr.bf16.mxu0 0
    %1002 = vmatpush2.bf16.msra.mxu0 %v952
    %1003 = vmatprep.subr.bf16.mxu0 0
    %1004 = vmatpush2.bf16.msra.mxu0 %v951
    %1005 = vmatprep.subr.bf16.mxu0 0
    %1006 = vmatpush2.bf16.msra.mxu0 %v950
    %1007 = vmatprep.subr.bf16.mxu0 0
    %1008 = vmatpush2.bf16.msra.mxu0 %v949
    %1009 = vmatprep.subr.bf16.mxu0 0
    %1010 = vmatpush2.bf16.msra.mxu0 %v948
    %1011 = vmatprep.subr.bf16.mxu0 0
    %1012 = vmatpush2.bf16.msra.mxu0 %v947
    %1013 = vmatprep.subr.bf16.mxu0 0
    %1014 = vmatpush2.bf16.msra.mxu0 %v946
    %1015 = vmatprep.subr.bf16.mxu0 0
    %1016 = vmatpush2.bf16.msra.mxu0 %v945
    %1017 = vmatprep.mubr.bf16.mxu0 %v773
    %1018 = vmatmul.mubr.bf16.gmra.mxu0 %v770
    %v1019 = vpop.f32.mrf.mxu0
    %v1020 = vadd.f32 0.0, %v1019
    %v1021 = vpop.f32.mrf.mxu0
    %v1022 = vpop.f32.mrf.mxu0
    %v1023 = vadd.f32 0.0, %v1022
    %v1024 = vpop.f32.mrf.mxu0
    %1025 = vmatprep.mubr.bf16.mxu0 %v776
    %1026 = vmatmul.mubr.bf16.gmra.mxu0 %v770
    %v1027 = vpop.f32.mrf.mxu0
    %v1028 = vadd.f32 0.0, %v1027
    %v1029 = vpop.f32.mrf.mxu0
    %v1030 = vpop.f32.mrf.mxu0
    %v1031 = vadd.f32 0.0, %v1030
    %v1032 = vpop.f32.mrf.mxu0
    %1033 = vdwg.mxu0
    %1034 = vmatprep.subr.bf16.mxu0 0
    %1035 = vmatpush1.bf16.msra.mxu0 %v960
    %1036 = vmatprep.subr.bf16.mxu0 0
    %1037 = vmatpush1.bf16.msra.mxu0 %v959
    %1038 = vmatprep.subr.bf16.mxu0 0
    %1039 = vmatpush1.bf16.msra.mxu0 %v958
    %1040 = vmatprep.subr.bf16.mxu0 0
    %1041 = vmatpush1.bf16.msra.mxu0 %v957
    %1042 = vmatprep.subr.bf16.mxu0 0
    %1043 = vmatpush1.bf16.msra.mxu0 %v956
    %1044 = vmatprep.subr.bf16.mxu0 0
    %1045 = vmatpush1.bf16.msra.mxu0 %v955
    %1046 = vmatprep.subr.bf16.mxu0 0
    %1047 = vmatpush1.bf16.msra.mxu0 %v954
    %1048 = vmatprep.subr.bf16.mxu0 0
    %1049 = vmatpush1.bf16.msra.mxu0 %v953
    %1050 = vmatprep.subr.bf16.mxu0 0
    %1051 = vmatpush2.bf16.msra.mxu0 0
    %1052 = vmatprep.subr.bf16.mxu0 0
    %1053 = vmatpush2.bf16.msra.mxu0 0
    %1054 = vmatprep.subr.bf16.mxu0 0
    %1055 = vmatpush2.bf16.msra.mxu0 0
    %1056 = vmatprep.subr.bf16.mxu0 0
    %1057 = vmatpush2.bf16.msra.mxu0 0
    %1058 = vmatprep.subr.bf16.mxu0 0
    %1059 = vmatpush2.bf16.msra.mxu0 0
    %1060 = vmatprep.subr.bf16.mxu0 0
    %1061 = vmatpush2.bf16.msra.mxu0 0
    %1062 = vmatprep.subr.bf16.mxu0 0
    %1063 = vmatpush2.bf16.msra.mxu0 0
    %1064 = vmatprep.subr.bf16.mxu0 0
    %1065 = vmatpush2.bf16.msra.mxu0 0
    %1066 = vmatprep.mubr.bf16.mxu0 0
    %1067 = vmatmul.mubr.bf16.gmra.mxu0 %v770
    %v1068 = vpop.f32.mrf.mxu0
    %v1069 = vadd.f32 %v1020, %v1068
    %v1070 = vpop.f32.mrf.mxu0
    %v1071 = vpop.f32.mrf.mxu0
    %v1072 = vadd.f32 %v1023, %v1071
    %v1073 = vpop.f32.mrf.mxu0
    %1074 = vmatprep.mubr.bf16.mxu0 0
    %1075 = vmatmul.mubr.bf16.gmra.mxu0 %v770
    %v1076 = vpop.f32.mrf.mxu0
    %v1077 = vadd.f32 %v1028, %v1076
    %v1078 = vpop.f32.mrf.mxu0
    %v1079 = vpop.f32.mrf.mxu0
    %v1080 = vadd.f32 %v1031, %v1079
    %v1081 = vpop.f32.mrf.mxu0
    %1082 = vdwg.mxu0
    %v1083 = vadd.f32 %v749, %v1069
    %v1084 = vadd.f32 %v752, %v1072
    %v1085 = vadd.f32 %v757, %v1077
    %v1086 = vadd.f32 %v760, %v1080
    %s1087 = scalar_lea.vmem [#allocation3], 1536
    %v1088 = vld [vmem:[%s1087] sm:$0xf]
    %v1089 = vld [vmem:[%s1087 + $0x4] sm:$0xf]
    %v1090 = vld [vmem:[%s1087 + $0x8] sm:$0xf]
    %v1091 = vld [vmem:[%s1087 + $0xc] sm:$0xf]
    %v1092 = vld [vmem:[%s1087 + $0x10] sm:$0xf]
    %v1093 = vld [vmem:[%s1087 + $0x14] sm:$0xf]
    %v1094 = vld [vmem:[%s1087 + $0x18] sm:$0xf]
    %v1095 = vld [vmem:[%s1087 + $0x1c] sm:$0xf]
    %v1096 = vld [vmem:[%s1087 + $0x20] sm:$0xf]
    %v1097 = vld [vmem:[%s1087 + $0x24] sm:$0xf]
    %v1098 = vld [vmem:[%s1087 + $0x28] sm:$0xf]
    %v1099 = vld [vmem:[%s1087 + $0x2c] sm:$0xf]
    %v1100 = vld [vmem:[%s1087 + $0x30] sm:$0xf]
    %v1101 = vld [vmem:[%s1087 + $0x34] sm:$0xf]
    %v1102 = vld [vmem:[%s1087 + $0x38] sm:$0xf]
    %v1103 = vld [vmem:[%s1087 + $0x3c] sm:$0xf]
    %v1104 = vld [vmem:[%s1087 + $0x40] sm:$0xf]
    %v1105 = vld [vmem:[%s1087 + $0x44] sm:$0xf]
    %v1106 = vld [vmem:[%s1087 + $0x48] sm:$0xf]
    %v1107 = vld [vmem:[%s1087 + $0x4c] sm:$0xf]
    %v1108 = vld [vmem:[%s1087 + $0x50] sm:$0xf]
    %v1109 = vld [vmem:[%s1087 + $0x54] sm:$0xf]
    %v1110 = vld [vmem:[%s1087 + $0x58] sm:$0xf]
    %v1111 = vld [vmem:[%s1087 + $0x5c] sm:$0xf]
    %v1112 = vld [vmem:[%s1087 + $0x60] sm:$0xf]
    %v1113 = vld [vmem:[%s1087 + $0x64] sm:$0xf]
    %v1114 = vld [vmem:[%s1087 + $0x68] sm:$0xf]
    %v1115 = vld [vmem:[%s1087 + $0x6c] sm:$0xf]
    %v1116 = vld [vmem:[%s1087 + $0x70] sm:$0xf]
    %v1117 = vld [vmem:[%s1087 + $0x74] sm:$0xf]
    %v1118 = vld [vmem:[%s1087 + $0x78] sm:$0xf]
    %v1119 = vld [vmem:[%s1087 + $0x7c] sm:$0xf]
    %v1120 = vld [vmem:[%s1087 + $0x80] sm:$0xf]
    %v1121 = vld [vmem:[%s1087 + $0x84] sm:$0xf]
    %v1122 = vld [vmem:[%s1087 + $0x88] sm:$0xf]
    %v1123 = vld [vmem:[%s1087 + $0x8c] sm:$0xf]
    %v1124 = vld [vmem:[%s1087 + $0x90] sm:$0xf]
    %v1125 = vld [vmem:[%s1087 + $0x94] sm:$0xf]
    %v1126 = vld [vmem:[%s1087 + $0x98] sm:$0xf]
    %v1127 = vld [vmem:[%s1087 + $0x9c] sm:$0xf]
    %v1128 = vld [vmem:[%s1087 + $0xa0] sm:$0xf]
    %v1129 = vld [vmem:[%s1087 + $0xa4] sm:$0xf]
    %v1130 = vld [vmem:[%s1087 + $0xa8] sm:$0xf]
    %v1131 = vld [vmem:[%s1087 + $0xac] sm:$0xf]
    %v1132 = vld [vmem:[%s1087 + $0xb0] sm:$0xf]
    %v1133 = vld [vmem:[%s1087 + $0xb4] sm:$0xf]
    %v1134 = vld [vmem:[%s1087 + $0xb8] sm:$0xf]
    %v1135 = vld [vmem:[%s1087 + $0xbc] sm:$0xf]
    %v1184 = vunpack.c.l.b16 %v1088
    %v1185 = vunpack.c.l.b16 %v1089
    %v1186 = vunpack.c.l.b16 %v1090
    %v1187 = vunpack.c.l.b16 %v1091
    %v1188 = vunpack.c.l.b16 %v1092
    %v1189 = vunpack.c.l.b16 %v1093
    %v1190 = vunpack.c.l.b16 %v1094
    %v1191 = vunpack.c.l.b16 %v1095
    %v1192 = vunpack.c.l.b16 %v1096
    %v1193 = vunpack.c.l.b16 %v1097
    %v1194 = vunpack.c.l.b16 %v1098
    %v1195 = vunpack.c.l.b16 %v1099
    %v1196 = vunpack.c.l.b16 %v1100
    %v1197 = vunpack.c.l.b16 %v1101
    %v1198 = vunpack.c.l.b16 %v1102
    %v1199 = vunpack.c.l.b16 %v1103
    %v1200 = vunpack.c.l.b16 %v1104
    %v1201 = vunpack.c.l.b16 %v1105
    %v1202 = vunpack.c.l.b16 %v1106
    %v1203 = vunpack.c.l.b16 %v1107
    %v1204 = vunpack.c.l.b16 %v1108
    %v1205 = vunpack.c.l.b16 %v1109
    %v1206 = vunpack.c.l.b16 %v1110
    %v1207 = vunpack.c.l.b16 %v1111
    %v1208 = vunpack.c.l.b16 %v1112
    %v1209 = vunpack.c.l.b16 %v1113
    %v1210 = vunpack.c.l.b16 %v1114
    %v1211 = vunpack.c.l.b16 %v1115
    %v1212 = vunpack.c.l.b16 %v1116
    %v1213 = vunpack.c.l.b16 %v1117
    %v1214 = vunpack.c.l.b16 %v1118
    %v1215 = vunpack.c.l.b16 %v1119
    %v1216 = vunpack.c.l.b16 %v1120
    %v1217 = vunpack.c.l.b16 %v1121
    %v1218 = vunpack.c.l.b16 %v1122
    %v1219 = vunpack.c.l.b16 %v1123
    %v1220 = vunpack.c.l.b16 %v1124
    %v1221 = vunpack.c.l.b16 %v1125
    %v1222 = vunpack.c.l.b16 %v1126
    %v1223 = vunpack.c.l.b16 %v1127
    %v1224 = vunpack.c.l.b16 %v1128
    %v1225 = vunpack.c.l.b16 %v1129
    %v1226 = vunpack.c.l.b16 %v1130
    %v1227 = vunpack.c.l.b16 %v1131
    %v1228 = vunpack.c.l.b16 %v1132
    %v1229 = vunpack.c.l.b16 %v1133
    %v1230 = vunpack.c.l.b16 %v1134
    %v1231 = vunpack.c.l.b16 %v1135
    %v1232 = vpack.c.b16 %v1185, %v1184
    %v1233 = vpack.c.b16 %v1187, %v1186
    %v1234 = vpack.c.b16 %v1189, %v1188
    %v1235 = vpack.c.b16 %v1191, %v1190
    %v1236 = vpack.c.b16 %v1193, %v1192
    %v1237 = vpack.c.b16 %v1195, %v1194
    %v1238 = vpack.c.b16 %v1197, %v1196
    %v1239 = vpack.c.b16 %v1199, %v1198
    %v1240 = vpack.c.b16 %v1201, %v1200
    %v1241 = vpack.c.b16 %v1203, %v1202
    %v1242 = vpack.c.b16 %v1205, %v1204
    %v1243 = vpack.c.b16 %v1207, %v1206
    %v1244 = vpack.c.b16 %v1209, %v1208
    %v1245 = vpack.c.b16 %v1211, %v1210
    %v1246 = vpack.c.b16 %v1213, %v1212
    %v1247 = vpack.c.b16 %v1215, %v1214
    %v1248 = vpack.c.b16 %v1217, %v1216
    %v1249 = vpack.c.b16 %v1219, %v1218
    %v1250 = vpack.c.b16 %v1221, %v1220
    %v1251 = vpack.c.b16 %v1223, %v1222
    %v1252 = vpack.c.b16 %v1225, %v1224
    %v1253 = vpack.c.b16 %v1227, %v1226
    %v1254 = vpack.c.b16 %v1229, %v1228
    %v1255 = vpack.c.b16 %v1231, %v1230
    %1280 = vmatprep.subr.bf16.mxu0 0
    %1281 = vmatpush1.bf16.msra.mxu0 %v1239
    %1282 = vmatprep.subr.bf16.mxu0 0
    %1283 = vmatpush1.bf16.msra.mxu0 %v1238
    %1284 = vmatprep.subr.bf16.mxu0 0
    %1285 = vmatpush1.bf16.msra.mxu0 %v1237
    %1286 = vmatprep.subr.bf16.mxu0 0
    %1287 = vmatpush1.bf16.msra.mxu0 %v1236
    %1288 = vmatprep.subr.bf16.mxu0 0
    %1289 = vmatpush1.bf16.msra.mxu0 %v1235
    %1290 = vmatprep.subr.bf16.mxu0 0
    %1291 = vmatpush1.bf16.msra.mxu0 %v1234
    %1292 = vmatprep.subr.bf16.mxu0 0
    %1293 = vmatpush1.bf16.msra.mxu0 %v1233
    %1294 = vmatprep.subr.bf16.mxu0 0
    %1295 = vmatpush1.bf16.msra.mxu0 %v1232
    %1296 = vmatprep.subr.bf16.mxu0 0
    %1297 = vmatpush2.bf16.msra.mxu0 %v1247
    %1298 = vmatprep.subr.bf16.mxu0 0
    %1299 = vmatpush2.bf16.msra.mxu0 %v1246
    %1300 = vmatprep.subr.bf16.mxu0 0
    %1301 = vmatpush2.bf16.msra.mxu0 %v1245
    %1302 = vmatprep.subr.bf16.mxu0 0
    %1303 = vmatpush2.bf16.msra.mxu0 %v1244
    %1304 = vmatprep.subr.bf16.mxu0 0
    %1305 = vmatpush2.bf16.msra.mxu0 %v1243
    %1306 = vmatprep.subr.bf16.mxu0 0
    %1307 = vmatpush2.bf16.msra.mxu0 %v1242
    %1308 = vmatprep.subr.bf16.mxu0 0
    %1309 = vmatpush2.bf16.msra.mxu0 %v1241
    %1310 = vmatprep.subr.bf16.mxu0 0
    %1311 = vmatpush2.bf16.msra.mxu0 %v1240
    %1312 = vmatprep.mubr.bf16.mxu0 %v786
    %1313 = vmatmul.mubr.bf16.gmra.mxu0 %v770
    %v1314 = vpop.f32.mrf.mxu0
    %v1315 = vadd.f32 0.0, %v1314
    %v1316 = vpop.f32.mrf.mxu0
    %v1317 = vpop.f32.mrf.mxu0
    %v1318 = vadd.f32 0.0, %v1317
    %v1319 = vpop.f32.mrf.mxu0
    %1320 = vmatprep.mubr.bf16.mxu0 %v789
    %1321 = vmatmul.mubr.bf16.gmra.mxu0 %v770
    %v1322 = vpop.f32.mrf.mxu0
    %v1323 = vadd.f32 0.0, %v1322
    %v1324 = vpop.f32.mrf.mxu0
    %v1325 = vpop.f32.mrf.mxu0
    %v1326 = vadd.f32 0.0, %v1325
    %v1327 = vpop.f32.mrf.mxu0
    %1328 = vdwg.mxu0
    %1329 = vmatprep.subr.bf16.mxu0 0
    %1330 = vmatpush1.bf16.msra.mxu0 %v1255
    %1331 = vmatprep.subr.bf16.mxu0 0
    %1332 = vmatpush1.bf16.msra.mxu0 %v1254
    %1333 = vmatprep.subr.bf16.mxu0 0
    %1334 = vmatpush1.bf16.msra.mxu0 %v1253
    %1335 = vmatprep.subr.bf16.mxu0 0
    %1336 = vmatpush1.bf16.msra.mxu0 %v1252
    %1337 = vmatprep.subr.bf16.mxu0 0
    %1338 = vmatpush1.bf16.msra.mxu0 %v1251
    %1339 = vmatprep.subr.bf16.mxu0 0
    %1340 = vmatpush1.bf16.msra.mxu0 %v1250
    %1341 = vmatprep.subr.bf16.mxu0 0
    %1342 = vmatpush1.bf16.msra.mxu0 %v1249
    %1343 = vmatprep.subr.bf16.mxu0 0
    %1344 = vmatpush1.bf16.msra.mxu0 %v1248
    %1345 = vmatprep.subr.bf16.mxu0 0
    %1346 = vmatpush2.bf16.msra.mxu0 0
    %1347 = vmatprep.subr.bf16.mxu0 0
    %1348 = vmatpush2.bf16.msra.mxu0 0
    %1349 = vmatprep.subr.bf16.mxu0 0
    %1350 = vmatpush2.bf16.msra.mxu0 0
    %1351 = vmatprep.subr.bf16.mxu0 0
    %1352 = vmatpush2.bf16.msra.mxu0 0
    %1353 = vmatprep.subr.bf16.mxu0 0
    %1354 = vmatpush2.bf16.msra.mxu0 0
    %1355 = vmatprep.subr.bf16.mxu0 0
    %1356 = vmatpush2.bf16.msra.mxu0 0
    %1357 = vmatprep.subr.bf16.mxu0 0
    %1358 = vmatpush2.bf16.msra.mxu0 0
    %1359 = vmatprep.subr.bf16.mxu0 0
    %1360 = vmatpush2.bf16.msra.mxu0 0
    %1361 = vmatprep.mubr.bf16.mxu0 0
    %1362 = vmatmul.mubr.bf16.gmra.mxu0 %v770
    %v1363 = vpop.f32.mrf.mxu0
    %v1364 = vadd.f32 %v1315, %v1363
    %v1365 = vpop.f32.mrf.mxu0
    %v1366 = vpop.f32.mrf.mxu0
    %v1367 = vadd.f32 %v1318, %v1366
    %v1368 = vpop.f32.mrf.mxu0
    %1369 = vmatprep.mubr.bf16.mxu0 0
    %1370 = vmatmul.mubr.bf16.gmra.mxu0 %v770
    %v1371 = vpop.f32.mrf.mxu0
    %v1372 = vadd.f32 %v1323, %v1371
    %v1373 = vpop.f32.mrf.mxu0
    %v1374 = vpop.f32.mrf.mxu0
    %v1375 = vadd.f32 %v1326, %v1374
    %v1376 = vpop.f32.mrf.mxu0
    %1377 = vdwg.mxu0
    %v1378 = vadd.f32 %v1083, %v1364
    %v1379 = vadd.f32 %v1084, %v1367
    %v1380 = vadd.f32 %v1085, %v1372
    %v1381 = vadd.f32 %v1086, %v1375
    %vm1382 = vsmask.f32 4352
    %v1383 = vrot.slane %v101, 3
    %v1384 = vrot.slane %v104, 4
    %v1385 = vor.u32 %v1383, %v1384
    %v1386 = vsel %vm1382, %v1385, %v1385
    %v1387 = vrot.slane %v110, 3
    %v1388 = vrot.slane %v113, 4
    %v1389 = vor.u32 %v1387, %v1388
    %v1390 = vrot.slane %v118, 3
    %v1391 = vrot.slane %v121, 4
    %v1392 = vor.u32 %v1390, %v1391
    %v1393 = vsel %vm1382, %v1389, %v1392
    %v1394 = vrot.slane %v127, 3
    %v1395 = vrot.slane %v130, 4
    %v1396 = vor.u32 %v1394, %v1395
    %v1397 = vrot.slane %v135, 3
    %v1398 = vrot.slane %v138, 4
    %v1399 = vor.u32 %v1397, %v1398
    %v1400 = vsel %vm1382, %v1396, %v1399
    %v1404 = vrot.slane %v147, 3
    %v1405 = vrot.slane %v150, 4
    %v1406 = vor.u32 %v1404, %v1405
    %v1407 = vrot.slane %v155, 3
    %v1408 = vrot.slane %v158, 4
    %v1409 = vor.u32 %v1407, %v1408
    %v1410 = vsel %vm1382, %v1406, %v1409
    %v1411 = vrot.slane %v164, 3
    %v1412 = vrot.slane %v167, 4
    %v1413 = vor.u32 %v1411, %v1412
    %v1414 = vrot.slane %v172, 3
    %v1415 = vrot.slane %v175, 4
    %v1416 = vor.u32 %v1414, %v1415
    %v1417 = vsel %vm1382, %v1413, %v1416
    %s1420 = scalar_lea.vmem [#allocation3], 384
    %v1421 = vld [vmem:[%s1420] sm:$0xf]
    %v1422 = vld [vmem:[%s1420 + $0x4] sm:$0xf]
    %v1423 = vld [vmem:[%s1420 + $0x8] sm:$0xf]
    %v1424 = vld [vmem:[%s1420 + $0xc] sm:$0xf]
    %v1425 = vld [vmem:[%s1420 + $0x10] sm:$0xf]
    %v1426 = vld [vmem:[%s1420 + $0x14] sm:$0xf]
    %v1427 = vld [vmem:[%s1420 + $0x18] sm:$0xf]
    %v1428 = vld [vmem:[%s1420 + $0x1c] sm:$0xf]
    %v1429 = vld [vmem:[%s1420 + $0x20] sm:$0xf]
    %v1430 = vld [vmem:[%s1420 + $0x24] sm:$0xf]
    %v1431 = vld [vmem:[%s1420 + $0x28] sm:$0xf]
    %v1432 = vld [vmem:[%s1420 + $0x2c] sm:$0xf]
    %v1433 = vld [vmem:[%s1420 + $0x30] sm:$0xf]
    %v1434 = vld [vmem:[%s1420 + $0x34] sm:$0xf]
    %v1435 = vld [vmem:[%s1420 + $0x38] sm:$0xf]
    %v1436 = vld [vmem:[%s1420 + $0x3c] sm:$0xf]
    %v1437 = vld [vmem:[%s1420 + $0x40] sm:$0xf]
    %v1438 = vld [vmem:[%s1420 + $0x44] sm:$0xf]
    %v1439 = vld [vmem:[%s1420 + $0x48] sm:$0xf]
    %v1440 = vld [vmem:[%s1420 + $0x4c] sm:$0xf]
    %v1441 = vld [vmem:[%s1420 + $0x50] sm:$0xf]
    %v1442 = vld [vmem:[%s1420 + $0x54] sm:$0xf]
    %v1443 = vld [vmem:[%s1420 + $0x58] sm:$0xf]
    %v1444 = vld [vmem:[%s1420 + $0x5c] sm:$0xf]
    %v1445 = vld [vmem:[%s1420 + $0x60] sm:$0xf]
    %v1446 = vld [vmem:[%s1420 + $0x64] sm:$0xf]
    %v1447 = vld [vmem:[%s1420 + $0x68] sm:$0xf]
    %v1448 = vld [vmem:[%s1420 + $0x6c] sm:$0xf]
    %v1449 = vld [vmem:[%s1420 + $0x70] sm:$0xf]
    %v1450 = vld [vmem:[%s1420 + $0x74] sm:$0xf]
    %v1451 = vld [vmem:[%s1420 + $0x78] sm:$0xf]
    %v1452 = vld [vmem:[%s1420 + $0x7c] sm:$0xf]
    %v1453 = vld [vmem:[%s1420 + $0x80] sm:$0xf]
    %v1454 = vld [vmem:[%s1420 + $0x84] sm:$0xf]
    %v1455 = vld [vmem:[%s1420 + $0x88] sm:$0xf]
    %v1456 = vld [vmem:[%s1420 + $0x8c] sm:$0xf]
    %v1457 = vld [vmem:[%s1420 + $0x90] sm:$0xf]
    %v1458 = vld [vmem:[%s1420 + $0x94] sm:$0xf]
    %v1459 = vld [vmem:[%s1420 + $0x98] sm:$0xf]
    %v1460 = vld [vmem:[%s1420 + $0x9c] sm:$0xf]
    %v1461 = vld [vmem:[%s1420 + $0xa0] sm:$0xf]
    %v1462 = vld [vmem:[%s1420 + $0xa4] sm:$0xf]
    %v1463 = vld [vmem:[%s1420 + $0xa8] sm:$0xf]
    %v1464 = vld [vmem:[%s1420 + $0xac] sm:$0xf]
    %v1465 = vld [vmem:[%s1420 + $0xb0] sm:$0xf]
    %v1466 = vld [vmem:[%s1420 + $0xb4] sm:$0xf]
    %v1467 = vld [vmem:[%s1420 + $0xb8] sm:$0xf]
    %v1468 = vld [vmem:[%s1420 + $0xbc] sm:$0xf]
    %v1517 = vunpack.c.l.b16 %v1421
    %v1518 = vunpack.c.l.b16 %v1422
    %v1519 = vunpack.c.l.b16 %v1423
    %v1520 = vunpack.c.l.b16 %v1424
    %v1521 = vunpack.c.l.b16 %v1425
    %v1522 = vunpack.c.l.b16 %v1426
    %v1523 = vunpack.c.l.b16 %v1427
    %v1524 = vunpack.c.l.b16 %v1428
    %v1525 = vunpack.c.l.b16 %v1429
    %v1526 = vunpack.c.l.b16 %v1430
    %v1527 = vunpack.c.l.b16 %v1431
    %v1528 = vunpack.c.l.b16 %v1432
    %v1529 = vunpack.c.l.b16 %v1433
    %v1530 = vunpack.c.l.b16 %v1434
    %v1531 = vunpack.c.l.b16 %v1435
    %v1532 = vunpack.c.l.b16 %v1436
    %v1533 = vunpack.c.l.b16 %v1437
    %v1534 = vunpack.c.l.b16 %v1438
    %v1535 = vunpack.c.l.b16 %v1439
    %v1536 = vunpack.c.l.b16 %v1440
    %v1537 = vunpack.c.l.b16 %v1441
    %v1538 = vunpack.c.l.b16 %v1442
    %v1539 = vunpack.c.l.b16 %v1443
    %v1540 = vunpack.c.l.b16 %v1444
    %v1541 = vunpack.c.l.b16 %v1445
    %v1542 = vunpack.c.l.b16 %v1446
    %v1543 = vunpack.c.l.b16 %v1447
    %v1544 = vunpack.c.l.b16 %v1448
    %v1545 = vunpack.c.l.b16 %v1449
    %v1546 = vunpack.c.l.b16 %v1450
    %v1547 = vunpack.c.l.b16 %v1451
    %v1548 = vunpack.c.l.b16 %v1452
    %v1549 = vunpack.c.l.b16 %v1453
    %v1550 = vunpack.c.l.b16 %v1454
    %v1551 = vunpack.c.l.b16 %v1455
    %v1552 = vunpack.c.l.b16 %v1456
    %v1553 = vunpack.c.l.b16 %v1457
    %v1554 = vunpack.c.l.b16 %v1458
    %v1555 = vunpack.c.l.b16 %v1459
    %v1556 = vunpack.c.l.b16 %v1460
    %v1557 = vunpack.c.l.b16 %v1461
    %v1558 = vunpack.c.l.b16 %v1462
    %v1559 = vunpack.c.l.b16 %v1463
    %v1560 = vunpack.c.l.b16 %v1464
    %v1561 = vunpack.c.l.b16 %v1465
    %v1562 = vunpack.c.l.b16 %v1466
    %v1563 = vunpack.c.l.b16 %v1467
    %v1564 = vunpack.c.l.b16 %v1468
    %v1565 = vpack.c.b16 %v1518, %v1517
    %v1566 = vpack.c.b16 %v1520, %v1519
    %v1567 = vpack.c.b16 %v1522, %v1521
    %v1568 = vpack.c.b16 %v1524, %v1523
    %v1569 = vpack.c.b16 %v1526, %v1525
    %v1570 = vpack.c.b16 %v1528, %v1527
    %v1571 = vpack.c.b16 %v1530, %v1529
    %v1572 = vpack.c.b16 %v1532, %v1531
    %v1573 = vpack.c.b16 %v1534, %v1533
    %v1574 = vpack.c.b16 %v1536, %v1535
    %v1575 = vpack.c.b16 %v1538, %v1537
    %v1576 = vpack.c.b16 %v1540, %v1539
    %v1577 = vpack.c.b16 %v1542, %v1541
    %v1578 = vpack.c.b16 %v1544, %v1543
    %v1579 = vpack.c.b16 %v1546, %v1545
    %v1580 = vpack.c.b16 %v1548, %v1547
    %v1581 = vpack.c.b16 %v1550, %v1549
    %v1582 = vpack.c.b16 %v1552, %v1551
    %v1583 = vpack.c.b16 %v1554, %v1553
    %v1584 = vpack.c.b16 %v1556, %v1555
    %v1585 = vpack.c.b16 %v1558, %v1557
    %v1586 = vpack.c.b16 %v1560, %v1559
    %v1587 = vpack.c.b16 %v1562, %v1561
    %v1588 = vpack.c.b16 %v1564, %v1563
    %1613 = vmatprep.subr.bf16.mxu0 0
    %1614 = vmatpush1.bf16.msra.mxu0 %v1572
    %1615 = vmatprep.subr.bf16.mxu0 0
    %1616 = vmatpush1.bf16.msra.mxu0 %v1571
    %1617 = vmatprep.subr.bf16.mxu0 0
    %1618 = vmatpush1.bf16.msra.mxu0 %v1570
    %1619 = vmatprep.subr.bf16.mxu0 0
    %1620 = vmatpush1.bf16.msra.mxu0 %v1569
    %1621 = vmatprep.subr.bf16.mxu0 0
    %1622 = vmatpush1.bf16.msra.mxu0 %v1568
    %1623 = vmatprep.subr.bf16.mxu0 0
    %1624 = vmatpush1.bf16.msra.mxu0 %v1567
    %1625 = vmatprep.subr.bf16.mxu0 0
    %1626 = vmatpush1.bf16.msra.mxu0 %v1566
    %1627 = vmatprep.subr.bf16.mxu0 0
    %1628 = vmatpush1.bf16.msra.mxu0 %v1565
    %1629 = vmatprep.subr.bf16.mxu0 0
    %1630 = vmatpush2.bf16.msra.mxu0 %v1580
    %1631 = vmatprep.subr.bf16.mxu0 0
    %1632 = vmatpush2.bf16.msra.mxu0 %v1579
    %1633 = vmatprep.subr.bf16.mxu0 0
    %1634 = vmatpush2.bf16.msra.mxu0 %v1578
    %1635 = vmatprep.subr.bf16.mxu0 0
    %1636 = vmatpush2.bf16.msra.mxu0 %v1577
    %1637 = vmatprep.subr.bf16.mxu0 0
    %1638 = vmatpush2.bf16.msra.mxu0 %v1576
    %1639 = vmatprep.subr.bf16.mxu0 0
    %1640 = vmatpush2.bf16.msra.mxu0 %v1575
    %1641 = vmatprep.subr.bf16.mxu0 0
    %1642 = vmatpush2.bf16.msra.mxu0 %v1574
    %1643 = vmatprep.subr.bf16.mxu0 0
    %1644 = vmatpush2.bf16.msra.mxu0 %v1573
    %1645 = vmatprep.mubr.bf16.mxu0 %v1393
    %1646 = vmatmul.mubr.bf16.gmra.mxu0 %v1386
    %v1647 = vpop.f32.mrf.mxu0
    %v1648 = vadd.f32 0.0, %v1647
    %v1649 = vpop.f32.mrf.mxu0
    %v1650 = vpop.f32.mrf.mxu0
    %v1651 = vadd.f32 0.0, %v1650
    %v1652 = vpop.f32.mrf.mxu0
    %1653 = vmatprep.mubr.bf16.mxu0 %v1400
    %1654 = vmatmul.mubr.bf16.gmra.mxu0 %v1386
    %v1655 = vpop.f32.mrf.mxu0
    %v1656 = vadd.f32 0.0, %v1655
    %v1657 = vpop.f32.mrf.mxu0
    %v1658 = vpop.f32.mrf.mxu0
    %v1659 = vadd.f32 0.0, %v1658
    %v1660 = vpop.f32.mrf.mxu0
    %1661 = vdwg.mxu0
    %1662 = vmatprep.subr.bf16.mxu0 0
    %1663 = vmatpush1.bf16.msra.mxu0 %v1588
    %1664 = vmatprep.subr.bf16.mxu0 0
    %1665 = vmatpush1.bf16.msra.mxu0 %v1587
    %1666 = vmatprep.subr.bf16.mxu0 0
    %1667 = vmatpush1.bf16.msra.mxu0 %v1586
    %1668 = vmatprep.subr.bf16.mxu0 0
    %1669 = vmatpush1.bf16.msra.mxu0 %v1585
    %1670 = vmatprep.subr.bf16.mxu0 0
    %1671 = vmatpush1.bf16.msra.mxu0 %v1584
    %1672 = vmatprep.subr.bf16.mxu0 0
    %1673 = vmatpush1.bf16.msra.mxu0 %v1583
    %1674 = vmatprep.subr.bf16.mxu0 0
    %1675 = vmatpush1.bf16.msra.mxu0 %v1582
    %1676 = vmatprep.subr.bf16.mxu0 0
    %1677 = vmatpush1.bf16.msra.mxu0 %v1581
    %1678 = vmatprep.subr.bf16.mxu0 0
    %1679 = vmatpush2.bf16.msra.mxu0 0
    %1680 = vmatprep.subr.bf16.mxu0 0
    %1681 = vmatpush2.bf16.msra.mxu0 0
    %1682 = vmatprep.subr.bf16.mxu0 0
    %1683 = vmatpush2.bf16.msra.mxu0 0
    %1684 = vmatprep.subr.bf16.mxu0 0
    %1685 = vmatpush2.bf16.msra.mxu0 0
    %1686 = vmatprep.subr.bf16.mxu0 0
    %1687 = vmatpush2.bf16.msra.mxu0 0
    %1688 = vmatprep.subr.bf16.mxu0 0
    %1689 = vmatpush2.bf16.msra.mxu0 0
    %1690 = vmatprep.subr.bf16.mxu0 0
    %1691 = vmatpush2.bf16.msra.mxu0 0
    %1692 = vmatprep.subr.bf16.mxu0 0
    %1693 = vmatpush2.bf16.msra.mxu0 0
    %1694 = vmatprep.mubr.bf16.mxu0 0
    %1695 = vmatmul.mubr.bf16.gmra.mxu0 %v1386
    %v1696 = vpop.f32.mrf.mxu0
    %v1697 = vadd.f32 %v1648, %v1696
    %v1698 = vpop.f32.mrf.mxu0
    %v1699 = vpop.f32.mrf.mxu0
    %v1700 = vadd.f32 %v1651, %v1699
    %v1701 = vpop.f32.mrf.mxu0
    %1702 = vmatprep.mubr.bf16.mxu0 0
    %1703 = vmatmul.mubr.bf16.gmra.mxu0 %v1386
    %v1704 = vpop.f32.mrf.mxu0
    %v1705 = vadd.f32 %v1656, %v1704
    %v1706 = vpop.f32.mrf.mxu0
    %v1707 = vpop.f32.mrf.mxu0
    %v1708 = vadd.f32 %v1659, %v1707
    %v1709 = vpop.f32.mrf.mxu0
    %1710 = vdwg.mxu0
    %v1711 = vadd.f32 %v1378, %v1697
    %v1712 = vadd.f32 %v1379, %v1700
    %v1713 = vadd.f32 %v1380, %v1705
    %v1714 = vadd.f32 %v1381, %v1708
    %s1715 = scalar_lea.vmem [#allocation3], 1728
    %v1716 = vld [vmem:[%s1715] sm:$0xf]
    %v1717 = vld [vmem:[%s1715 + $0x4] sm:$0xf]
    %v1718 = vld [vmem:[%s1715 + $0x8] sm:$0xf]
    %v1719 = vld [vmem:[%s1715 + $0xc] sm:$0xf]
    %v1720 = vld [vmem:[%s1715 + $0x10] sm:$0xf]
    %v1721 = vld [vmem:[%s1715 + $0x14] sm:$0xf]
    %v1722 = vld [vmem:[%s1715 + $0x18] sm:$0xf]
    %v1723 = vld [vmem:[%s1715 + $0x1c] sm:$0xf]
    %v1724 = vld [vmem:[%s1715 + $0x20] sm:$0xf]
    %v1725 = vld [vmem:[%s1715 + $0x24] sm:$0xf]
    %v1726 = vld [vmem:[%s1715 + $0x28] sm:$0xf]
    %v1727 = vld [vmem:[%s1715 + $0x2c] sm:$0xf]
    %v1728 = vld [vmem:[%s1715 + $0x30] sm:$0xf]
    %v1729 = vld [vmem:[%s1715 + $0x34] sm:$0xf]
    %v1730 = vld [vmem:[%s1715 + $0x38] sm:$0xf]
    %v1731 = vld [vmem:[%s1715 + $0x3c] sm:$0xf]
    %v1732 = vld [vmem:[%s1715 + $0x40] sm:$0xf]
    %v1733 = vld [vmem:[%s1715 + $0x44] sm:$0xf]
    %v1734 = vld [vmem:[%s1715 + $0x48] sm:$0xf]
    %v1735 = vld [vmem:[%s1715 + $0x4c] sm:$0xf]
    %v1736 = vld [vmem:[%s1715 + $0x50] sm:$0xf]
    %v1737 = vld [vmem:[%s1715 + $0x54] sm:$0xf]
    %v1738 = vld [vmem:[%s1715 + $0x58] sm:$0xf]
    %v1739 = vld [vmem:[%s1715 + $0x5c] sm:$0xf]
    %v1740 = vld [vmem:[%s1715 + $0x60] sm:$0xf]
    %v1741 = vld [vmem:[%s1715 + $0x64] sm:$0xf]
    %v1742 = vld [vmem:[%s1715 + $0x68] sm:$0xf]
    %v1743 = vld [vmem:[%s1715 + $0x6c] sm:$0xf]
    %v1744 = vld [vmem:[%s1715 + $0x70] sm:$0xf]
    %v1745 = vld [vmem:[%s1715 + $0x74] sm:$0xf]
    %v1746 = vld [vmem:[%s1715 + $0x78] sm:$0xf]
    %v1747 = vld [vmem:[%s1715 + $0x7c] sm:$0xf]
    %v1748 = vld [vmem:[%s1715 + $0x80] sm:$0xf]
    %v1749 = vld [vmem:[%s1715 + $0x84] sm:$0xf]
    %v1750 = vld [vmem:[%s1715 + $0x88] sm:$0xf]
    %v1751 = vld [vmem:[%s1715 + $0x8c] sm:$0xf]
    %v1752 = vld [vmem:[%s1715 + $0x90] sm:$0xf]
    %v1753 = vld [vmem:[%s1715 + $0x94] sm:$0xf]
    %v1754 = vld [vmem:[%s1715 + $0x98] sm:$0xf]
    %v1755 = vld [vmem:[%s1715 + $0x9c] sm:$0xf]
    %v1756 = vld [vmem:[%s1715 + $0xa0] sm:$0xf]
    %v1757 = vld [vmem:[%s1715 + $0xa4] sm:$0xf]
    %v1758 = vld [vmem:[%s1715 + $0xa8] sm:$0xf]
    %v1759 = vld [vmem:[%s1715 + $0xac] sm:$0xf]
    %v1760 = vld [vmem:[%s1715 + $0xb0] sm:$0xf]
    %v1761 = vld [vmem:[%s1715 + $0xb4] sm:$0xf]
    %v1762 = vld [vmem:[%s1715 + $0xb8] sm:$0xf]
    %v1763 = vld [vmem:[%s1715 + $0xbc] sm:$0xf]
    %v1812 = vunpack.c.l.b16 %v1716
    %v1813 = vunpack.c.l.b16 %v1717
    %v1814 = vunpack.c.l.b16 %v1718
    %v1815 = vunpack.c.l.b16 %v1719
    %v1816 = vunpack.c.l.b16 %v1720
    %v1817 = vunpack.c.l.b16 %v1721
    %v1818 = vunpack.c.l.b16 %v1722
    %v1819 = vunpack.c.l.b16 %v1723
    %v1820 = vunpack.c.l.b16 %v1724
    %v1821 = vunpack.c.l.b16 %v1725
    %v1822 = vunpack.c.l.b16 %v1726
    %v1823 = vunpack.c.l.b16 %v1727
    %v1824 = vunpack.c.l.b16 %v1728
    %v1825 = vunpack.c.l.b16 %v1729
    %v1826 = vunpack.c.l.b16 %v1730
    %v1827 = vunpack.c.l.b16 %v1731
    %v1828 = vunpack.c.l.b16 %v1732
    %v1829 = vunpack.c.l.b16 %v1733
    %v1830 = vunpack.c.l.b16 %v1734
    %v1831 = vunpack.c.l.b16 %v1735
    %v1832 = vunpack.c.l.b16 %v1736
    %v1833 = vunpack.c.l.b16 %v1737
    %v1834 = vunpack.c.l.b16 %v1738
    %v1835 = vunpack.c.l.b16 %v1739
    %v1836 = vunpack.c.l.b16 %v1740
    %v1837 = vunpack.c.l.b16 %v1741
    %v1838 = vunpack.c.l.b16 %v1742
    %v1839 = vunpack.c.l.b16 %v1743
    %v1840 = vunpack.c.l.b16 %v1744
    %v1841 = vunpack.c.l.b16 %v1745
    %v1842 = vunpack.c.l.b16 %v1746
    %v1843 = vunpack.c.l.b16 %v1747
    %v1844 = vunpack.c.l.b16 %v1748
    %v1845 = vunpack.c.l.b16 %v1749
    %v1846 = vunpack.c.l.b16 %v1750
    %v1847 = vunpack.c.l.b16 %v1751
    %v1848 = vunpack.c.l.b16 %v1752
    %v1849 = vunpack.c.l.b16 %v1753
    %v1850 = vunpack.c.l.b16 %v1754
    %v1851 = vunpack.c.l.b16 %v1755
    %v1852 = vunpack.c.l.b16 %v1756
    %v1853 = vunpack.c.l.b16 %v1757
    %v1854 = vunpack.c.l.b16 %v1758
    %v1855 = vunpack.c.l.b16 %v1759
    %v1856 = vunpack.c.l.b16 %v1760
    %v1857 = vunpack.c.l.b16 %v1761
    %v1858 = vunpack.c.l.b16 %v1762
    %v1859 = vunpack.c.l.b16 %v1763
    %v1860 = vpack.c.b16 %v1813, %v1812
    %v1861 = vpack.c.b16 %v1815, %v1814
    %v1862 = vpack.c.b16 %v1817, %v1816
    %v1863 = vpack.c.b16 %v1819, %v1818
    %v1864 = vpack.c.b16 %v1821, %v1820
    %v1865 = vpack.c.b16 %v1823, %v1822
    %v1866 = vpack.c.b16 %v1825, %v1824
    %v1867 = vpack.c.b16 %v1827, %v1826
    %v1868 = vpack.c.b16 %v1829, %v1828
    %v1869 = vpack.c.b16 %v1831, %v1830
    %v1870 = vpack.c.b16 %v1833, %v1832
    %v1871 = vpack.c.b16 %v1835, %v1834
    %v1872 = vpack.c.b16 %v1837, %v1836
    %v1873 = vpack.c.b16 %v1839, %v1838
    %v1874 = vpack.c.b16 %v1841, %v1840
    %v1875 = vpack.c.b16 %v1843, %v1842
    %v1876 = vpack.c.b16 %v1845, %v1844
    %v1877 = vpack.c.b16 %v1847, %v1846
    %v1878 = vpack.c.b16 %v1849, %v1848
    %v1879 = vpack.c.b16 %v1851, %v1850
    %v1880 = vpack.c.b16 %v1853, %v1852
    %v1881 = vpack.c.b16 %v1855, %v1854
    %v1882 = vpack.c.b16 %v1857, %v1856
    %v1883 = vpack.c.b16 %v1859, %v1858
    %1908 = vmatprep.subr.bf16.mxu0 0
    %1909 = vmatpush1.bf16.msra.mxu0 %v1867
    %1910 = vmatprep.subr.bf16.mxu0 0
    %1911 = vmatpush1.bf16.msra.mxu0 %v1866
    %1912 = vmatprep.subr.bf16.mxu0 0
    %1913 = vmatpush1.bf16.msra.mxu0 %v1865
    %1914 = vmatprep.subr.bf16.mxu0 0
    %1915 = vmatpush1.bf16.msra.mxu0 %v1864
    %1916 = vmatprep.subr.bf16.mxu0 0
    %1917 = vmatpush1.bf16.msra.mxu0 %v1863
    %1918 = vmatprep.subr.bf16.mxu0 0
    %1919 = vmatpush1.bf16.msra.mxu0 %v1862
    %1920 = vmatprep.subr.bf16.mxu0 0
    %1921 = vmatpush1.bf16.msra.mxu0 %v1861
    %1922 = vmatprep.subr.bf16.mxu0 0
    %1923 = vmatpush1.bf16.msra.mxu0 %v1860
    %1924 = vmatprep.subr.bf16.mxu0 0
    %1925 = vmatpush2.bf16.msra.mxu0 %v1875
    %1926 = vmatprep.subr.bf16.mxu0 0
    %1927 = vmatpush2.bf16.msra.mxu0 %v1874
    %1928 = vmatprep.subr.bf16.mxu0 0
    %1929 = vmatpush2.bf16.msra.mxu0 %v1873
    %1930 = vmatprep.subr.bf16.mxu0 0
    %1931 = vmatpush2.bf16.msra.mxu0 %v1872
    %1932 = vmatprep.subr.bf16.mxu0 0
    %1933 = vmatpush2.bf16.msra.mxu0 %v1871
    %1934 = vmatprep.subr.bf16.mxu0 0
    %1935 = vmatpush2.bf16.msra.mxu0 %v1870
    %1936 = vmatprep.subr.bf16.mxu0 0
    %1937 = vmatpush2.bf16.msra.mxu0 %v1869
    %1938 = vmatprep.subr.bf16.mxu0 0
    %1939 = vmatpush2.bf16.msra.mxu0 %v1868
    %1940 = vmatprep.mubr.bf16.mxu0 %v1410
    %1941 = vmatmul.mubr.bf16.gmra.mxu0 %v1386
    %v1942 = vpop.f32.mrf.mxu0
    %v1943 = vadd.f32 0.0, %v1942
    %v1944 = vpop.f32.mrf.mxu0
    %v1945 = vpop.f32.mrf.mxu0
    %v1946 = vadd.f32 0.0, %v1945
    %v1947 = vpop.f32.mrf.mxu0
    %1948 = vmatprep.mubr.bf16.mxu0 %v1417
    %1949 = vmatmul.mubr.bf16.gmra.mxu0 %v1386
    %v1950 = vpop.f32.mrf.mxu0
    %v1951 = vadd.f32 0.0, %v1950
    %v1952 = vpop.f32.mrf.mxu0
    %v1953 = vpop.f32.mrf.mxu0
    %v1954 = vadd.f32 0.0, %v1953
    %v1955 = vpop.f32.mrf.mxu0
    %1956 = vdwg.mxu0
    %1957 = vmatprep.subr.bf16.mxu0 0
    %1958 = vmatpush1.bf16.msra.mxu0 %v1883
    %1959 = vmatprep.subr.bf16.mxu0 0
    %1960 = vmatpush1.bf16.msra.mxu0 %v1882
    %1961 = vmatprep.subr.bf16.mxu0 0
    %1962 = vmatpush1.bf16.msra.mxu0 %v1881
    %1963 = vmatprep.subr.bf16.mxu0 0
    %1964 = vmatpush1.bf16.msra.mxu0 %v1880
    %1965 = vmatprep.subr.bf16.mxu0 0
    %1966 = vmatpush1.bf16.msra.mxu0 %v1879
    %1967 = vmatprep.subr.bf16.mxu0 0
    %1968 = vmatpush1.bf16.msra.mxu0 %v1878
    %1969 = vmatprep.subr.bf16.mxu0 0
    %1970 = vmatpush1.bf16.msra.mxu0 %v1877
    %1971 = vmatprep.subr.bf16.mxu0 0
    %1972 = vmatpush1.bf16.msra.mxu0 %v1876
    %1973 = vmatprep.subr.bf16.mxu0 0
    %1974 = vmatpush2.bf16.msra.mxu0 0
    %1975 = vmatprep.subr.bf16.mxu0 0
    %1976 = vmatpush2.bf16.msra.mxu0 0
    %1977 = vmatprep.subr.bf16.mxu0 0
    %1978 = vmatpush2.bf16.msra.mxu0 0
    %1979 = vmatprep.subr.bf16.mxu0 0
    %1980 = vmatpush2.bf16.msra.mxu0 0
    %1981 = vmatprep.subr.bf16.mxu0 0
    %1982 = vmatpush2.bf16.msra.mxu0 0
    %1983 = vmatprep.subr.bf16.mxu0 0
    %1984 = vmatpush2.bf16.msra.mxu0 0
    %1985 = vmatprep.subr.bf16.mxu0 0
    %1986 = vmatpush2.bf16.msra.mxu0 0
    %1987 = vmatprep.subr.bf16.mxu0 0
    %1988 = vmatpush2.bf16.msra.mxu0 0
    %1989 = vmatprep.mubr.bf16.mxu0 0
    %1990 = vmatmul.mubr.bf16.gmra.mxu0 %v1386
    %v1991 = vpop.f32.mrf.mxu0
    %v1992 = vadd.f32 %v1943, %v1991
    %v1993 = vpop.f32.mrf.mxu0
    %v1994 = vpop.f32.mrf.mxu0
    %v1995 = vadd.f32 %v1946, %v1994
    %v1996 = vpop.f32.mrf.mxu0
    %1997 = vmatprep.mubr.bf16.mxu0 0
    %1998 = vmatmul.mubr.bf16.gmra.mxu0 %v1386
    %v1999 = vpop.f32.mrf.mxu0
    %v2000 = vadd.f32 %v1951, %v1999
    %v2001 = vpop.f32.mrf.mxu0
    %v2002 = vpop.f32.mrf.mxu0
    %v2003 = vadd.f32 %v1954, %v2002
    %v2004 = vpop.f32.mrf.mxu0
    %2005 = vdwg.mxu0
    %v2006 = vadd.f32 %v1711, %v1992
    %v2007 = vadd.f32 %v1712, %v1995
    %v2008 = vadd.f32 %v1713, %v2000
    %v2009 = vadd.f32 %v1714, %v2003
    %vm2010 = vcmask 1043456
    %v2011 = vrot.slane %v89, 4
    %v2012 = vsel %vm2010, %v2011, %v2011
    %v2013 = vrot.slane %v90, 4
    %v2014 = vrot.slane %v91, 4
    %v2015 = vsel %vm2010, %v2013, %v2014
    %v2016 = vrot.slane %v92, 4
    %v2017 = vrot.slane %v93, 4
    %v2018 = vsel %vm2010, %v2016, %v2017
    %v2022 = vrot.slane %v94, 4
    %v2023 = vrot.slane %v95, 4
    %v2024 = vsel %vm2010, %v2022, %v2023
    %v2025 = vrot.slane %v96, 4
    %v2026 = vrot.slane %v97, 4
    %v2027 = vsel %vm2010, %v2025, %v2026
    %s2030 = scalar_lea.vmem [#allocation3], 576
    %v2031 = vld [vmem:[%s2030] sm:$0xf]
    %v2032 = vld [vmem:[%s2030 + $0x4] sm:$0xf]
    %v2033 = vld [vmem:[%s2030 + $0x8] sm:$0xf]
    %v2034 = vld [vmem:[%s2030 + $0xc] sm:$0xf]
    %v2035 = vld [vmem:[%s2030 + $0x10] sm:$0xf]
    %v2036 = vld [vmem:[%s2030 + $0x14] sm:$0xf]
    %v2037 = vld [vmem:[%s2030 + $0x18] sm:$0xf]
    %v2038 = vld [vmem:[%s2030 + $0x1c] sm:$0xf]
    %v2039 = vld [vmem:[%s2030 + $0x20] sm:$0xf]
    %v2040 = vld [vmem:[%s2030 + $0x24] sm:$0xf]
    %v2041 = vld [vmem:[%s2030 + $0x28] sm:$0xf]
    %v2042 = vld [vmem:[%s2030 + $0x2c] sm:$0xf]
    %v2043 = vld [vmem:[%s2030 + $0x30] sm:$0xf]
    %v2044 = vld [vmem:[%s2030 + $0x34] sm:$0xf]
    %v2045 = vld [vmem:[%s2030 + $0x38] sm:$0xf]
    %v2046 = vld [vmem:[%s2030 + $0x3c] sm:$0xf]
    %v2047 = vld [vmem:[%s2030 + $0x40] sm:$0xf]
    %v2048 = vld [vmem:[%s2030 + $0x44] sm:$0xf]
    %v2049 = vld [vmem:[%s2030 + $0x48] sm:$0xf]
    %v2050 = vld [vmem:[%s2030 + $0x4c] sm:$0xf]
    %v2051 = vld [vmem:[%s2030 + $0x50] sm:$0xf]
    %v2052 = vld [vmem:[%s2030 + $0x54] sm:$0xf]
    %v2053 = vld [vmem:[%s2030 + $0x58] sm:$0xf]
    %v2054 = vld [vmem:[%s2030 + $0x5c] sm:$0xf]
    %v2055 = vld [vmem:[%s2030 + $0x60] sm:$0xf]
    %v2056 = vld [vmem:[%s2030 + $0x64] sm:$0xf]
    %v2057 = vld [vmem:[%s2030 + $0x68] sm:$0xf]
    %v2058 = vld [vmem:[%s2030 + $0x6c] sm:$0xf]
    %v2059 = vld [vmem:[%s2030 + $0x70] sm:$0xf]
    %v2060 = vld [vmem:[%s2030 + $0x74] sm:$0xf]
    %v2061 = vld [vmem:[%s2030 + $0x78] sm:$0xf]
    %v2062 = vld [vmem:[%s2030 + $0x7c] sm:$0xf]
    %v2063 = vld [vmem:[%s2030 + $0x80] sm:$0xf]
    %v2064 = vld [vmem:[%s2030 + $0x84] sm:$0xf]
    %v2065 = vld [vmem:[%s2030 + $0x88] sm:$0xf]
    %v2066 = vld [vmem:[%s2030 + $0x8c] sm:$0xf]
    %v2067 = vld [vmem:[%s2030 + $0x90] sm:$0xf]
    %v2068 = vld [vmem:[%s2030 + $0x94] sm:$0xf]
    %v2069 = vld [vmem:[%s2030 + $0x98] sm:$0xf]
    %v2070 = vld [vmem:[%s2030 + $0x9c] sm:$0xf]
    %v2071 = vld [vmem:[%s2030 + $0xa0] sm:$0xf]
    %v2072 = vld [vmem:[%s2030 + $0xa4] sm:$0xf]
    %v2073 = vld [vmem:[%s2030 + $0xa8] sm:$0xf]
    %v2074 = vld [vmem:[%s2030 + $0xac] sm:$0xf]
    %v2075 = vld [vmem:[%s2030 + $0xb0] sm:$0xf]
    %v2076 = vld [vmem:[%s2030 + $0xb4] sm:$0xf]
    %v2077 = vld [vmem:[%s2030 + $0xb8] sm:$0xf]
    %v2078 = vld [vmem:[%s2030 + $0xbc] sm:$0xf]
    %v2127 = vunpack.c.l.b16 %v2031
    %v2128 = vunpack.c.l.b16 %v2032
    %v2129 = vunpack.c.l.b16 %v2033
    %v2130 = vunpack.c.l.b16 %v2034
    %v2131 = vunpack.c.l.b16 %v2035
    %v2132 = vunpack.c.l.b16 %v2036
    %v2133 = vunpack.c.l.b16 %v2037
    %v2134 = vunpack.c.l.b16 %v2038
    %v2135 = vunpack.c.l.b16 %v2039
    %v2136 = vunpack.c.l.b16 %v2040
    %v2137 = vunpack.c.l.b16 %v2041
    %v2138 = vunpack.c.l.b16 %v2042
    %v2139 = vunpack.c.l.b16 %v2043
    %v2140 = vunpack.c.l.b16 %v2044
    %v2141 = vunpack.c.l.b16 %v2045
    %v2142 = vunpack.c.l.b16 %v2046
    %v2143 = vunpack.c.l.b16 %v2047
    %v2144 = vunpack.c.l.b16 %v2048
    %v2145 = vunpack.c.l.b16 %v2049
    %v2146 = vunpack.c.l.b16 %v2050
    %v2147 = vunpack.c.l.b16 %v2051
    %v2148 = vunpack.c.l.b16 %v2052
    %v2149 = vunpack.c.l.b16 %v2053
    %v2150 = vunpack.c.l.b16 %v2054
    %v2151 = vunpack.c.l.b16 %v2055
    %v2152 = vunpack.c.l.b16 %v2056
    %v2153 = vunpack.c.l.b16 %v2057
    %v2154 = vunpack.c.l.b16 %v2058
    %v2155 = vunpack.c.l.b16 %v2059
    %v2156 = vunpack.c.l.b16 %v2060
    %v2157 = vunpack.c.l.b16 %v2061
    %v2158 = vunpack.c.l.b16 %v2062
    %v2159 = vunpack.c.l.b16 %v2063
    %v2160 = vunpack.c.l.b16 %v2064
    %v2161 = vunpack.c.l.b16 %v2065
    %v2162 = vunpack.c.l.b16 %v2066
    %v2163 = vunpack.c.l.b16 %v2067
    %v2164 = vunpack.c.l.b16 %v2068
    %v2165 = vunpack.c.l.b16 %v2069
    %v2166 = vunpack.c.l.b16 %v2070
    %v2167 = vunpack.c.l.b16 %v2071
    %v2168 = vunpack.c.l.b16 %v2072
    %v2169 = vunpack.c.l.b16 %v2073
    %v2170 = vunpack.c.l.b16 %v2074
    %v2171 = vunpack.c.l.b16 %v2075
    %v2172 = vunpack.c.l.b16 %v2076
    %v2173 = vunpack.c.l.b16 %v2077
    %v2174 = vunpack.c.l.b16 %v2078
    %v2175 = vpack.c.b16 %v2128, %v2127
    %v2176 = vpack.c.b16 %v2130, %v2129
    %v2177 = vpack.c.b16 %v2132, %v2131
    %v2178 = vpack.c.b16 %v2134, %v2133
    %v2179 = vpack.c.b16 %v2136, %v2135
    %v2180 = vpack.c.b16 %v2138, %v2137
    %v2181 = vpack.c.b16 %v2140, %v2139
    %v2182 = vpack.c.b16 %v2142, %v2141
    %v2183 = vpack.c.b16 %v2144, %v2143
    %v2184 = vpack.c.b16 %v2146, %v2145
    %v2185 = vpack.c.b16 %v2148, %v2147
    %v2186 = vpack.c.b16 %v2150, %v2149
    %v2187 = vpack.c.b16 %v2152, %v2151
    %v2188 = vpack.c.b16 %v2154, %v2153
    %v2189 = vpack.c.b16 %v2156, %v2155
    %v2190 = vpack.c.b16 %v2158, %v2157
    %v2191 = vpack.c.b16 %v2160, %v2159
    %v2192 = vpack.c.b16 %v2162, %v2161
    %v2193 = vpack.c.b16 %v2164, %v2163
    %v2194 = vpack.c.b16 %v2166, %v2165
    %v2195 = vpack.c.b16 %v2168, %v2167
    %v2196 = vpack.c.b16 %v2170, %v2169
    %v2197 = vpack.c.b16 %v2172, %v2171
    %v2198 = vpack.c.b16 %v2174, %v2173
    %2223 = vmatprep.subr.bf16.mxu0 0
    %2224 = vmatpush1.bf16.msra.mxu0 %v2182
    %2225 = vmatprep.subr.bf16.mxu0 0
    %2226 = vmatpush1.bf16.msra.mxu0 %v2181
    %2227 = vmatprep.subr.bf16.mxu0 0
    %2228 = vmatpush1.bf16.msra.mxu0 %v2180
    %2229 = vmatprep.subr.bf16.mxu0 0
    %2230 = vmatpush1.bf16.msra.mxu0 %v2179
    %2231 = vmatprep.subr.bf16.mxu0 0
    %2232 = vmatpush1.bf16.msra.mxu0 %v2178
    %2233 = vmatprep.subr.bf16.mxu0 0
    %2234 = vmatpush1.bf16.msra.mxu0 %v2177
    %2235 = vmatprep.subr.bf16.mxu0 0
    %2236 = vmatpush1.bf16.msra.mxu0 %v2176
    %2237 = vmatprep.subr.bf16.mxu0 0
    %2238 = vmatpush1.bf16.msra.mxu0 %v2175
    %2239 = vmatprep.subr.bf16.mxu0 0
    %2240 = vmatpush2.bf16.msra.mxu0 %v2190
    %2241 = vmatprep.subr.bf16.mxu0 0
    %2242 = vmatpush2.bf16.msra.mxu0 %v2189
    %2243 = vmatprep.subr.bf16.mxu0 0
    %2244 = vmatpush2.bf16.msra.mxu0 %v2188
    %2245 = vmatprep.subr.bf16.mxu0 0
    %2246 = vmatpush2.bf16.msra.mxu0 %v2187
    %2247 = vmatprep.subr.bf16.mxu0 0
    %2248 = vmatpush2.bf16.msra.mxu0 %v2186
    %2249 = vmatprep.subr.bf16.mxu0 0
    %2250 = vmatpush2.bf16.msra.mxu0 %v2185
    %2251 = vmatprep.subr.bf16.mxu0 0
    %2252 = vmatpush2.bf16.msra.mxu0 %v2184
    %2253 = vmatprep.subr.bf16.mxu0 0
    %2254 = vmatpush2.bf16.msra.mxu0 %v2183
    %2255 = vmatprep.mubr.bf16.mxu0 %v2015
    %2256 = vmatmul.mubr.bf16.gmra.mxu0 %v2012
    %v2257 = vpop.f32.mrf.mxu0
    %v2258 = vadd.f32 0.0, %v2257
    %v2259 = vpop.f32.mrf.mxu0
    %v2260 = vpop.f32.mrf.mxu0
    %v2261 = vadd.f32 0.0, %v2260
    %v2262 = vpop.f32.mrf.mxu0
    %2263 = vmatprep.mubr.bf16.mxu0 %v2018
    %2264 = vmatmul.mubr.bf16.gmra.mxu0 %v2012
    %v2265 = vpop.f32.mrf.mxu0
    %v2266 = vadd.f32 0.0, %v2265
    %v2267 = vpop.f32.mrf.mxu0
    %v2268 = vpop.f32.mrf.mxu0
    %v2269 = vadd.f32 0.0, %v2268
    %v2270 = vpop.f32.mrf.mxu0
    %2271 = vdwg.mxu0
    %2272 = vmatprep.subr.bf16.mxu0 0
    %2273 = vmatpush1.bf16.msra.mxu0 %v2198
    %2274 = vmatprep.subr.bf16.mxu0 0
    %2275 = vmatpush1.bf16.msra.mxu0 %v2197
    %2276 = vmatprep.subr.bf16.mxu0 0
    %2277 = vmatpush1.bf16.msra.mxu0 %v2196
    %2278 = vmatprep.subr.bf16.mxu0 0
    %2279 = vmatpush1.bf16.msra.mxu0 %v2195
    %2280 = vmatprep.subr.bf16.mxu0 0
    %2281 = vmatpush1.bf16.msra.mxu0 %v2194
    %2282 = vmatprep.subr.bf16.mxu0 0
    %2283 = vmatpush1.bf16.msra.mxu0 %v2193
    %2284 = vmatprep.subr.bf16.mxu0 0
    %2285 = vmatpush1.bf16.msra.mxu0 %v2192
    %2286 = vmatprep.subr.bf16.mxu0 0
    %2287 = vmatpush1.bf16.msra.mxu0 %v2191
    %2288 = vmatprep.subr.bf16.mxu0 0
    %2289 = vmatpush2.bf16.msra.mxu0 0
    %2290 = vmatprep.subr.bf16.mxu0 0
    %2291 = vmatpush2.bf16.msra.mxu0 0
    %2292 = vmatprep.subr.bf16.mxu0 0
    %2293 = vmatpush2.bf16.msra.mxu0 0
    %2294 = vmatprep.subr.bf16.mxu0 0
    %2295 = vmatpush2.bf16.msra.mxu0 0
    %2296 = vmatprep.subr.bf16.mxu0 0
    %2297 = vmatpush2.bf16.msra.mxu0 0
    %2298 = vmatprep.subr.bf16.mxu0 0
    %2299 = vmatpush2.bf16.msra.mxu0 0
    %2300 = vmatprep.subr.bf16.mxu0 0
    %2301 = vmatpush2.bf16.msra.mxu0 0
    %2302 = vmatprep.subr.bf16.mxu0 0
    %2303 = vmatpush2.bf16.msra.mxu0 0
    %2304 = vmatprep.mubr.bf16.mxu0 0
    %2305 = vmatmul.mubr.bf16.gmra.mxu0 %v2012
    %v2306 = vpop.f32.mrf.mxu0
    %v2307 = vadd.f32 %v2258, %v2306
    %v2308 = vpop.f32.mrf.mxu0
    %v2309 = vpop.f32.mrf.mxu0
    %v2310 = vadd.f32 %v2261, %v2309
    %v2311 = vpop.f32.mrf.mxu0
    %2312 = vmatprep.mubr.bf16.mxu0 0
    %2313 = vmatmul.mubr.bf16.gmra.mxu0 %v2012
    %v2314 = vpop.f32.mrf.mxu0
    %v2315 = vadd.f32 %v2266, %v2314
    %v2316 = vpop.f32.mrf.mxu0
    %v2317 = vpop.f32.mrf.mxu0
    %v2318 = vadd.f32 %v2269, %v2317
    %v2319 = vpop.f32.mrf.mxu0
    %2320 = vdwg.mxu0
    %v2321 = vadd.f32 %v2006, %v2307
    %v2322 = vadd.f32 %v2007, %v2310
    %v2323 = vadd.f32 %v2008, %v2315
    %v2324 = vadd.f32 %v2009, %v2318
    %s2325 = scalar_lea.vmem [#allocation3], 1920
    %v2326 = vld [vmem:[%s2325] sm:$0xf]
    %v2327 = vld [vmem:[%s2325 + $0x4] sm:$0xf]
    %v2328 = vld [vmem:[%s2325 + $0x8] sm:$0xf]
    %v2329 = vld [vmem:[%s2325 + $0xc] sm:$0xf]
    %v2330 = vld [vmem:[%s2325 + $0x10] sm:$0xf]
    %v2331 = vld [vmem:[%s2325 + $0x14] sm:$0xf]
    %v2332 = vld [vmem:[%s2325 + $0x18] sm:$0xf]
    %v2333 = vld [vmem:[%s2325 + $0x1c] sm:$0xf]
    %v2334 = vld [vmem:[%s2325 + $0x20] sm:$0xf]
    %v2335 = vld [vmem:[%s2325 + $0x24] sm:$0xf]
    %v2336 = vld [vmem:[%s2325 + $0x28] sm:$0xf]
    %v2337 = vld [vmem:[%s2325 + $0x2c] sm:$0xf]
    %v2338 = vld [vmem:[%s2325 + $0x30] sm:$0xf]
    %v2339 = vld [vmem:[%s2325 + $0x34] sm:$0xf]
    %v2340 = vld [vmem:[%s2325 + $0x38] sm:$0xf]
    %v2341 = vld [vmem:[%s2325 + $0x3c] sm:$0xf]
    %v2342 = vld [vmem:[%s2325 + $0x40] sm:$0xf]
    %v2343 = vld [vmem:[%s2325 + $0x44] sm:$0xf]
    %v2344 = vld [vmem:[%s2325 + $0x48] sm:$0xf]
    %v2345 = vld [vmem:[%s2325 + $0x4c] sm:$0xf]
    %v2346 = vld [vmem:[%s2325 + $0x50] sm:$0xf]
    %v2347 = vld [vmem:[%s2325 + $0x54] sm:$0xf]
    %v2348 = vld [vmem:[%s2325 + $0x58] sm:$0xf]
    %v2349 = vld [vmem:[%s2325 + $0x5c] sm:$0xf]
    %v2350 = vld [vmem:[%s2325 + $0x60] sm:$0xf]
    %v2351 = vld [vmem:[%s2325 + $0x64] sm:$0xf]
    %v2352 = vld [vmem:[%s2325 + $0x68] sm:$0xf]
    %v2353 = vld [vmem:[%s2325 + $0x6c] sm:$0xf]
    %v2354 = vld [vmem:[%s2325 + $0x70] sm:$0xf]
    %v2355 = vld [vmem:[%s2325 + $0x74] sm:$0xf]
    %v2356 = vld [vmem:[%s2325 + $0x78] sm:$0xf]
    %v2357 = vld [vmem:[%s2325 + $0x7c] sm:$0xf]
    %v2358 = vld [vmem:[%s2325 + $0x80] sm:$0xf]
    %v2359 = vld [vmem:[%s2325 + $0x84] sm:$0xf]
    %v2360 = vld [vmem:[%s2325 + $0x88] sm:$0xf]
    %v2361 = vld [vmem:[%s2325 + $0x8c] sm:$0xf]
    %v2362 = vld [vmem:[%s2325 + $0x90] sm:$0xf]
    %v2363 = vld [vmem:[%s2325 + $0x94] sm:$0xf]
    %v2364 = vld [vmem:[%s2325 + $0x98] sm:$0xf]
    %v2365 = vld [vmem:[%s2325 + $0x9c] sm:$0xf]
    %v2366 = vld [vmem:[%s2325 + $0xa0] sm:$0xf]
    %v2367 = vld [vmem:[%s2325 + $0xa4] sm:$0xf]
    %v2368 = vld [vmem:[%s2325 + $0xa8] sm:$0xf]
    %v2369 = vld [vmem:[%s2325 + $0xac] sm:$0xf]
    %v2370 = vld [vmem:[%s2325 + $0xb0] sm:$0xf]
    %v2371 = vld [vmem:[%s2325 + $0xb4] sm:$0xf]
    %v2372 = vld [vmem:[%s2325 + $0xb8] sm:$0xf]
    %v2373 = vld [vmem:[%s2325 + $0xbc] sm:$0xf]
    %v2422 = vunpack.c.l.b16 %v2326
    %v2423 = vunpack.c.l.b16 %v2327
    %v2424 = vunpack.c.l.b16 %v2328
    %v2425 = vunpack.c.l.b16 %v2329
    %v2426 = vunpack.c.l.b16 %v2330
    %v2427 = vunpack.c.l.b16 %v2331
    %v2428 = vunpack.c.l.b16 %v2332
    %v2429 = vunpack.c.l.b16 %v2333
    %v2430 = vunpack.c.l.b16 %v2334
    %v2431 = vunpack.c.l.b16 %v2335
    %v2432 = vunpack.c.l.b16 %v2336
    %v2433 = vunpack.c.l.b16 %v2337
    %v2434 = vunpack.c.l.b16 %v2338
    %v2435 = vunpack.c.l.b16 %v2339
    %v2436 = vunpack.c.l.b16 %v2340
    %v2437 = vunpack.c.l.b16 %v2341
    %v2438 = vunpack.c.l.b16 %v2342
    %v2439 = vunpack.c.l.b16 %v2343
    %v2440 = vunpack.c.l.b16 %v2344
    %v2441 = vunpack.c.l.b16 %v2345
    %v2442 = vunpack.c.l.b16 %v2346
    %v2443 = vunpack.c.l.b16 %v2347
    %v2444 = vunpack.c.l.b16 %v2348
    %v2445 = vunpack.c.l.b16 %v2349
    %v2446 = vunpack.c.l.b16 %v2350
    %v2447 = vunpack.c.l.b16 %v2351
    %v2448 = vunpack.c.l.b16 %v2352
    %v2449 = vunpack.c.l.b16 %v2353
    %v2450 = vunpack.c.l.b16 %v2354
    %v2451 = vunpack.c.l.b16 %v2355
    %v2452 = vunpack.c.l.b16 %v2356
    %v2453 = vunpack.c.l.b16 %v2357
    %v2454 = vunpack.c.l.b16 %v2358
    %v2455 = vunpack.c.l.b16 %v2359
    %v2456 = vunpack.c.l.b16 %v2360
    %v2457 = vunpack.c.l.b16 %v2361
    %v2458 = vunpack.c.l.b16 %v2362
    %v2459 = vunpack.c.l.b16 %v2363
    %v2460 = vunpack.c.l.b16 %v2364
    %v2461 = vunpack.c.l.b16 %v2365
    %v2462 = vunpack.c.l.b16 %v2366
    %v2463 = vunpack.c.l.b16 %v2367
    %v2464 = vunpack.c.l.b16 %v2368
    %v2465 = vunpack.c.l.b16 %v2369
    %v2466 = vunpack.c.l.b16 %v2370
    %v2467 = vunpack.c.l.b16 %v2371
    %v2468 = vunpack.c.l.b16 %v2372
    %v2469 = vunpack.c.l.b16 %v2373
    %v2470 = vpack.c.b16 %v2423, %v2422
    %v2471 = vpack.c.b16 %v2425, %v2424
    %v2472 = vpack.c.b16 %v2427, %v2426
    %v2473 = vpack.c.b16 %v2429, %v2428
    %v2474 = vpack.c.b16 %v2431, %v2430
    %v2475 = vpack.c.b16 %v2433, %v2432
    %v2476 = vpack.c.b16 %v2435, %v2434
    %v2477 = vpack.c.b16 %v2437, %v2436
    %v2478 = vpack.c.b16 %v2439, %v2438
    %v2479 = vpack.c.b16 %v2441, %v2440
    %v2480 = vpack.c.b16 %v2443, %v2442
    %v2481 = vpack.c.b16 %v2445, %v2444
    %v2482 = vpack.c.b16 %v2447, %v2446
    %v2483 = vpack.c.b16 %v2449, %v2448
    %v2484 = vpack.c.b16 %v2451, %v2450
    %v2485 = vpack.c.b16 %v2453, %v2452
    %v2486 = vpack.c.b16 %v2455, %v2454
    %v2487 = vpack.c.b16 %v2457, %v2456
    %v2488 = vpack.c.b16 %v2459, %v2458
    %v2489 = vpack.c.b16 %v2461, %v2460
    %v2490 = vpack.c.b16 %v2463, %v2462
    %v2491 = vpack.c.b16 %v2465, %v2464
    %v2492 = vpack.c.b16 %v2467, %v2466
    %v2493 = vpack.c.b16 %v2469, %v2468
    %2518 = vmatprep.subr.bf16.mxu0 0
    %2519 = vmatpush1.bf16.msra.mxu0 %v2477
    %2520 = vmatprep.subr.bf16.mxu0 0
    %2521 = vmatpush1.bf16.msra.mxu0 %v2476
    %2522 = vmatprep.subr.bf16.mxu0 0
    %2523 = vmatpush1.bf16.msra.mxu0 %v2475
    %2524 = vmatprep.subr.bf16.mxu0 0
    %2525 = vmatpush1.bf16.msra.mxu0 %v2474
    %2526 = vmatprep.subr.bf16.mxu0 0
    %2527 = vmatpush1.bf16.msra.mxu0 %v2473
    %2528 = vmatprep.subr.bf16.mxu0 0
    %2529 = vmatpush1.bf16.msra.mxu0 %v2472
    %2530 = vmatprep.subr.bf16.mxu0 0
    %2531 = vmatpush1.bf16.msra.mxu0 %v2471
    %2532 = vmatprep.subr.bf16.mxu0 0
    %2533 = vmatpush1.bf16.msra.mxu0 %v2470
    %2534 = vmatprep.subr.bf16.mxu0 0
    %2535 = vmatpush2.bf16.msra.mxu0 %v2485
    %2536 = vmatprep.subr.bf16.mxu0 0
    %2537 = vmatpush2.bf16.msra.mxu0 %v2484
    %2538 = vmatprep.subr.bf16.mxu0 0
    %2539 = vmatpush2.bf16.msra.mxu0 %v2483
    %2540 = vmatprep.subr.bf16.mxu0 0
    %2541 = vmatpush2.bf16.msra.mxu0 %v2482
    %2542 = vmatprep.subr.bf16.mxu0 0
    %2543 = vmatpush2.bf16.msra.mxu0 %v2481
    %2544 = vmatprep.subr.bf16.mxu0 0
    %2545 = vmatpush2.bf16.msra.mxu0 %v2480
    %2546 = vmatprep.subr.bf16.mxu0 0
    %2547 = vmatpush2.bf16.msra.mxu0 %v2479
    %2548 = vmatprep.subr.bf16.mxu0 0
    %2549 = vmatpush2.bf16.msra.mxu0 %v2478
    %2550 = vmatprep.mubr.bf16.mxu0 %v2024
    %2551 = vmatmul.mubr.bf16.gmra.mxu0 %v2012
    %v2552 = vpop.f32.mrf.mxu0
    %v2553 = vadd.f32 0.0, %v2552
    %v2554 = vpop.f32.mrf.mxu0
    %v2555 = vpop.f32.mrf.mxu0
    %v2556 = vadd.f32 0.0, %v2555
    %v2557 = vpop.f32.mrf.mxu0
    %2558 = vmatprep.mubr.bf16.mxu0 %v2027
    %2559 = vmatmul.mubr.bf16.gmra.mxu0 %v2012
    %v2560 = vpop.f32.mrf.mxu0
    %v2561 = vadd.f32 0.0, %v2560
    %v2562 = vpop.f32.mrf.mxu0
    %v2563 = vpop.f32.mrf.mxu0
    %v2564 = vadd.f32 0.0, %v2563
    %v2565 = vpop.f32.mrf.mxu0
    %2566 = vdwg.mxu0
    %2567 = vmatprep.subr.bf16.mxu0 0
    %2568 = vmatpush1.bf16.msra.mxu0 %v2493
    %2569 = vmatprep.subr.bf16.mxu0 0
    %2570 = vmatpush1.bf16.msra.mxu0 %v2492
    %2571 = vmatprep.subr.bf16.mxu0 0
    %2572 = vmatpush1.bf16.msra.mxu0 %v2491
    %2573 = vmatprep.subr.bf16.mxu0 0
    %2574 = vmatpush1.bf16.msra.mxu0 %v2490
    %2575 = vmatprep.subr.bf16.mxu0 0
    %2576 = vmatpush1.bf16.msra.mxu0 %v2489
    %2577 = vmatprep.subr.bf16.mxu0 0
    %2578 = vmatpush1.bf16.msra.mxu0 %v2488
    %2579 = vmatprep.subr.bf16.mxu0 0
    %2580 = vmatpush1.bf16.msra.mxu0 %v2487
    %2581 = vmatprep.subr.bf16.mxu0 0
    %2582 = vmatpush1.bf16.msra.mxu0 %v2486
    %2583 = vmatprep.subr.bf16.mxu0 0
    %2584 = vmatpush2.bf16.msra.mxu0 0
    %2585 = vmatprep.subr.bf16.mxu0 0
    %2586 = vmatpush2.bf16.msra.mxu0 0
    %2587 = vmatprep.subr.bf16.mxu0 0
    %2588 = vmatpush2.bf16.msra.mxu0 0
    %2589 = vmatprep.subr.bf16.mxu0 0
    %2590 = vmatpush2.bf16.msra.mxu0 0
    %2591 = vmatprep.subr.bf16.mxu0 0
    %2592 = vmatpush2.bf16.msra.mxu0 0
    %2593 = vmatprep.subr.bf16.mxu0 0
    %2594 = vmatpush2.bf16.msra.mxu0 0
    %2595 = vmatprep.subr.bf16.mxu0 0
    %2596 = vmatpush2.bf16.msra.mxu0 0
    %2597 = vmatprep.subr.bf16.mxu0 0
    %2598 = vmatpush2.bf16.msra.mxu0 0
    %2599 = vmatprep.mubr.bf16.mxu0 0
    %2600 = vmatmul.mubr.bf16.gmra.mxu0 %v2012
    %v2601 = vpop.f32.mrf.mxu0
    %v2602 = vadd.f32 %v2553, %v2601
    %v2603 = vpop.f32.mrf.mxu0
    %v2604 = vpop.f32.mrf.mxu0
    %v2605 = vadd.f32 %v2556, %v2604
    %v2606 = vpop.f32.mrf.mxu0
    %2607 = vmatprep.mubr.bf16.mxu0 0
    %2608 = vmatmul.mubr.bf16.gmra.mxu0 %v2012
    %v2609 = vpop.f32.mrf.mxu0
    %v2610 = vadd.f32 %v2561, %v2609
    %v2611 = vpop.f32.mrf.mxu0
    %v2612 = vpop.f32.mrf.mxu0
    %v2613 = vadd.f32 %v2564, %v2612
    %v2614 = vpop.f32.mrf.mxu0
    %2615 = vdwg.mxu0
    %v2616 = vadd.f32 %v2321, %v2602
    %v2617 = vadd.f32 %v2322, %v2605
    %v2618 = vadd.f32 %v2323, %v2610
    %v2619 = vadd.f32 %v2324, %v2613
    %vm2620 = vsmask.f32 3328
    %v2621 = vrot.slane %v101, 4
    %v2622 = vrot.slane %v104, 5
    %v2623 = vor.u32 %v2621, %v2622
    %v2624 = vsel %vm2620, %v2623, %v2623
    %v2625 = vrot.slane %v110, 4
    %v2626 = vrot.slane %v113, 5
    %v2627 = vor.u32 %v2625, %v2626
    %v2628 = vrot.slane %v118, 4
    %v2629 = vrot.slane %v121, 5
    %v2630 = vor.u32 %v2628, %v2629
    %v2631 = vsel %vm2620, %v2627, %v2630
    %v2632 = vrot.slane %v127, 4
    %v2633 = vrot.slane %v130, 5
    %v2634 = vor.u32 %v2632, %v2633
    %v2635 = vrot.slane %v135, 4
    %v2636 = vrot.slane %v138, 5
    %v2637 = vor.u32 %v2635, %v2636
    %v2638 = vsel %vm2620, %v2634, %v2637
    %v2642 = vrot.slane %v147, 4
    %v2643 = vrot.slane %v150, 5
    %v2644 = vor.u32 %v2642, %v2643
    %v2645 = vrot.slane %v155, 4
    %v2646 = vrot.slane %v158, 5
    %v2647 = vor.u32 %v2645, %v2646
    %v2648 = vsel %vm2620, %v2644, %v2647
    %v2649 = vrot.slane %v164, 4
    %v2650 = vrot.slane %v167, 5
    %v2651 = vor.u32 %v2649, %v2650
    %v2652 = vrot.slane %v172, 4
    %v2653 = vrot.slane %v175, 5
    %v2654 = vor.u32 %v2652, %v2653
    %v2655 = vsel %vm2620, %v2651, %v2654
    %s2658 = scalar_lea.vmem [#allocation3], 768
    %v2659 = vld [vmem:[%s2658] sm:$0xf]
    %v2660 = vld [vmem:[%s2658 + $0x4] sm:$0xf]
    %v2661 = vld [vmem:[%s2658 + $0x8] sm:$0xf]
    %v2662 = vld [vmem:[%s2658 + $0xc] sm:$0xf]
    %v2663 = vld [vmem:[%s2658 + $0x10] sm:$0xf]
    %v2664 = vld [vmem:[%s2658 + $0x14] sm:$0xf]
    %v2665 = vld [vmem:[%s2658 + $0x18] sm:$0xf]
    %v2666 = vld [vmem:[%s2658 + $0x1c] sm:$0xf]
    %v2667 = vld [vmem:[%s2658 + $0x20] sm:$0xf]
    %v2668 = vld [vmem:[%s2658 + $0x24] sm:$0xf]
    %v2669 = vld [vmem:[%s2658 + $0x28] sm:$0xf]
    %v2670 = vld [vmem:[%s2658 + $0x2c] sm:$0xf]
    %v2671 = vld [vmem:[%s2658 + $0x30] sm:$0xf]
    %v2672 = vld [vmem:[%s2658 + $0x34] sm:$0xf]
    %v2673 = vld [vmem:[%s2658 + $0x38] sm:$0xf]
    %v2674 = vld [vmem:[%s2658 + $0x3c] sm:$0xf]
    %v2675 = vld [vmem:[%s2658 + $0x40] sm:$0xf]
    %v2676 = vld [vmem:[%s2658 + $0x44] sm:$0xf]
    %v2677 = vld [vmem:[%s2658 + $0x48] sm:$0xf]
    %v2678 = vld [vmem:[%s2658 + $0x4c] sm:$0xf]
    %v2679 = vld [vmem:[%s2658 + $0x50] sm:$0xf]
    %v2680 = vld [vmem:[%s2658 + $0x54] sm:$0xf]
    %v2681 = vld [vmem:[%s2658 + $0x58] sm:$0xf]
    %v2682 = vld [vmem:[%s2658 + $0x5c] sm:$0xf]
    %v2683 = vld [vmem:[%s2658 + $0x60] sm:$0xf]
    %v2684 = vld [vmem:[%s2658 + $0x64] sm:$0xf]
    %v2685 = vld [vmem:[%s2658 + $0x68] sm:$0xf]
    %v2686 = vld [vmem:[%s2658 + $0x6c] sm:$0xf]
    %v2687 = vld [vmem:[%s2658 + $0x70] sm:$0xf]
    %v2688 = vld [vmem:[%s2658 + $0x74] sm:$0xf]
    %v2689 = vld [vmem:[%s2658 + $0x78] sm:$0xf]
    %v2690 = vld [vmem:[%s2658 + $0x7c] sm:$0xf]
    %v2691 = vld [vmem:[%s2658 + $0x80] sm:$0xf]
    %v2692 = vld [vmem:[%s2658 + $0x84] sm:$0xf]
    %v2693 = vld [vmem:[%s2658 + $0x88] sm:$0xf]
    %v2694 = vld [vmem:[%s2658 + $0x8c] sm:$0xf]
    %v2695 = vld [vmem:[%s2658 + $0x90] sm:$0xf]
    %v2696 = vld [vmem:[%s2658 + $0x94] sm:$0xf]
    %v2697 = vld [vmem:[%s2658 + $0x98] sm:$0xf]
    %v2698 = vld [vmem:[%s2658 + $0x9c] sm:$0xf]
    %v2699 = vld [vmem:[%s2658 + $0xa0] sm:$0xf]
    %v2700 = vld [vmem:[%s2658 + $0xa4] sm:$0xf]
    %v2701 = vld [vmem:[%s2658 + $0xa8] sm:$0xf]
    %v2702 = vld [vmem:[%s2658 + $0xac] sm:$0xf]
    %v2703 = vld [vmem:[%s2658 + $0xb0] sm:$0xf]
    %v2704 = vld [vmem:[%s2658 + $0xb4] sm:$0xf]
    %v2705 = vld [vmem:[%s2658 + $0xb8] sm:$0xf]
    %v2706 = vld [vmem:[%s2658 + $0xbc] sm:$0xf]
    %v2755 = vunpack.c.l.b16 %v2659
    %v2756 = vunpack.c.l.b16 %v2660
    %v2757 = vunpack.c.l.b16 %v2661
    %v2758 = vunpack.c.l.b16 %v2662
    %v2759 = vunpack.c.l.b16 %v2663
    %v2760 = vunpack.c.l.b16 %v2664
    %v2761 = vunpack.c.l.b16 %v2665
    %v2762 = vunpack.c.l.b16 %v2666
    %v2763 = vunpack.c.l.b16 %v2667
    %v2764 = vunpack.c.l.b16 %v2668
    %v2765 = vunpack.c.l.b16 %v2669
    %v2766 = vunpack.c.l.b16 %v2670
    %v2767 = vunpack.c.l.b16 %v2671
    %v2768 = vunpack.c.l.b16 %v2672
    %v2769 = vunpack.c.l.b16 %v2673
    %v2770 = vunpack.c.l.b16 %v2674
    %v2771 = vunpack.c.l.b16 %v2675
    %v2772 = vunpack.c.l.b16 %v2676
    %v2773 = vunpack.c.l.b16 %v2677
    %v2774 = vunpack.c.l.b16 %v2678
    %v2775 = vunpack.c.l.b16 %v2679
    %v2776 = vunpack.c.l.b16 %v2680
    %v2777 = vunpack.c.l.b16 %v2681
    %v2778 = vunpack.c.l.b16 %v2682
    %v2779 = vunpack.c.l.b16 %v2683
    %v2780 = vunpack.c.l.b16 %v2684
    %v2781 = vunpack.c.l.b16 %v2685
    %v2782 = vunpack.c.l.b16 %v2686
    %v2783 = vunpack.c.l.b16 %v2687
    %v2784 = vunpack.c.l.b16 %v2688
    %v2785 = vunpack.c.l.b16 %v2689
    %v2786 = vunpack.c.l.b16 %v2690
    %v2787 = vunpack.c.l.b16 %v2691
    %v2788 = vunpack.c.l.b16 %v2692
    %v2789 = vunpack.c.l.b16 %v2693
    %v2790 = vunpack.c.l.b16 %v2694
    %v2791 = vunpack.c.l.b16 %v2695
    %v2792 = vunpack.c.l.b16 %v2696
    %v2793 = vunpack.c.l.b16 %v2697
    %v2794 = vunpack.c.l.b16 %v2698
    %v2795 = vunpack.c.l.b16 %v2699
    %v2796 = vunpack.c.l.b16 %v2700
    %v2797 = vunpack.c.l.b16 %v2701
    %v2798 = vunpack.c.l.b16 %v2702
    %v2799 = vunpack.c.l.b16 %v2703
    %v2800 = vunpack.c.l.b16 %v2704
    %v2801 = vunpack.c.l.b16 %v2705
    %v2802 = vunpack.c.l.b16 %v2706
    %v2803 = vpack.c.b16 %v2756, %v2755
    %v2804 = vpack.c.b16 %v2758, %v2757
    %v2805 = vpack.c.b16 %v2760, %v2759
    %v2806 = vpack.c.b16 %v2762, %v2761
    %v2807 = vpack.c.b16 %v2764, %v2763
    %v2808 = vpack.c.b16 %v2766, %v2765
    %v2809 = vpack.c.b16 %v2768, %v2767
    %v2810 = vpack.c.b16 %v2770, %v2769
    %v2811 = vpack.c.b16 %v2772, %v2771
    %v2812 = vpack.c.b16 %v2774, %v2773
    %v2813 = vpack.c.b16 %v2776, %v2775
    %v2814 = vpack.c.b16 %v2778, %v2777
    %v2815 = vpack.c.b16 %v2780, %v2779
    %v2816 = vpack.c.b16 %v2782, %v2781
    %v2817 = vpack.c.b16 %v2784, %v2783
    %v2818 = vpack.c.b16 %v2786, %v2785
    %v2819 = vpack.c.b16 %v2788, %v2787
    %v2820 = vpack.c.b16 %v2790, %v2789
    %v2821 = vpack.c.b16 %v2792, %v2791
    %v2822 = vpack.c.b16 %v2794, %v2793
    %v2823 = vpack.c.b16 %v2796, %v2795
    %v2824 = vpack.c.b16 %v2798, %v2797
    %v2825 = vpack.c.b16 %v2800, %v2799
    %v2826 = vpack.c.b16 %v2802, %v2801
    %2851 = vmatprep.subr.bf16.mxu0 0
    %2852 = vmatpush1.bf16.msra.mxu0 %v2810
    %2853 = vmatprep.subr.bf16.mxu0 0
    %2854 = vmatpush1.bf16.msra.mxu0 %v2809
    %2855 = vmatprep.subr.bf16.mxu0 0
    %2856 = vmatpush1.bf16.msra.mxu0 %v2808
    %2857 = vmatprep.subr.bf16.mxu0 0
    %2858 = vmatpush1.bf16.msra.mxu0 %v2807
    %2859 = vmatprep.subr.bf16.mxu0 0
    %2860 = vmatpush1.bf16.msra.mxu0 %v2806
    %2861 = vmatprep.subr.bf16.mxu0 0
    %2862 = vmatpush1.bf16.msra.mxu0 %v2805
    %2863 = vmatprep.subr.bf16.mxu0 0
    %2864 = vmatpush1.bf16.msra.mxu0 %v2804
    %2865 = vmatprep.subr.bf16.mxu0 0
    %2866 = vmatpush1.bf16.msra.mxu0 %v2803
    %2867 = vmatprep.subr.bf16.mxu0 0
    %2868 = vmatpush2.bf16.msra.mxu0 %v2818
    %2869 = vmatprep.subr.bf16.mxu0 0
    %2870 = vmatpush2.bf16.msra.mxu0 %v2817
    %2871 = vmatprep.subr.bf16.mxu0 0
    %2872 = vmatpush2.bf16.msra.mxu0 %v2816
    %2873 = vmatprep.subr.bf16.mxu0 0
    %2874 = vmatpush2.bf16.msra.mxu0 %v2815
    %2875 = vmatprep.subr.bf16.mxu0 0
    %2876 = vmatpush2.bf16.msra.mxu0 %v2814
    %2877 = vmatprep.subr.bf16.mxu0 0
    %2878 = vmatpush2.bf16.msra.mxu0 %v2813
    %2879 = vmatprep.subr.bf16.mxu0 0
    %2880 = vmatpush2.bf16.msra.mxu0 %v2812
    %2881 = vmatprep.subr.bf16.mxu0 0
    %2882 = vmatpush2.bf16.msra.mxu0 %v2811
    %2883 = vmatprep.mubr.bf16.mxu0 %v2631
    %2884 = vmatmul.mubr.bf16.gmra.mxu0 %v2624
    %v2885 = vpop.f32.mrf.mxu0
    %v2886 = vadd.f32 0.0, %v2885
    %v2887 = vpop.f32.mrf.mxu0
    %v2888 = vpop.f32.mrf.mxu0
    %v2889 = vadd.f32 0.0, %v2888
    %v2890 = vpop.f32.mrf.mxu0
    %2891 = vmatprep.mubr.bf16.mxu0 %v2638
    %2892 = vmatmul.mubr.bf16.gmra.mxu0 %v2624
    %v2893 = vpop.f32.mrf.mxu0
    %v2894 = vadd.f32 0.0, %v2893
    %v2895 = vpop.f32.mrf.mxu0
    %v2896 = vpop.f32.mrf.mxu0
    %v2897 = vadd.f32 0.0, %v2896
    %v2898 = vpop.f32.mrf.mxu0
    %2899 = vdwg.mxu0
    %2900 = vmatprep.subr.bf16.mxu0 0
    %2901 = vmatpush1.bf16.msra.mxu0 %v2826
    %2902 = vmatprep.subr.bf16.mxu0 0
    %2903 = vmatpush1.bf16.msra.mxu0 %v2825
    %2904 = vmatprep.subr.bf16.mxu0 0
    %2905 = vmatpush1.bf16.msra.mxu0 %v2824
    %2906 = vmatprep.subr.bf16.mxu0 0
    %2907 = vmatpush1.bf16.msra.mxu0 %v2823
    %2908 = vmatprep.subr.bf16.mxu0 0
    %2909 = vmatpush1.bf16.msra.mxu0 %v2822
    %2910 = vmatprep.subr.bf16.mxu0 0
    %2911 = vmatpush1.bf16.msra.mxu0 %v2821
    %2912 = vmatprep.subr.bf16.mxu0 0
    %2913 = vmatpush1.bf16.msra.mxu0 %v2820
    %2914 = vmatprep.subr.bf16.mxu0 0
    %2915 = vmatpush1.bf16.msra.mxu0 %v2819
    %2916 = vmatprep.subr.bf16.mxu0 0
    %2917 = vmatpush2.bf16.msra.mxu0 0
    %2918 = vmatprep.subr.bf16.mxu0 0
    %2919 = vmatpush2.bf16.msra.mxu0 0
    %2920 = vmatprep.subr.bf16.mxu0 0
    %2921 = vmatpush2.bf16.msra.mxu0 0
    %2922 = vmatprep.subr.bf16.mxu0 0
    %2923 = vmatpush2.bf16.msra.mxu0 0
    %2924 = vmatprep.subr.bf16.mxu0 0
    %2925 = vmatpush2.bf16.msra.mxu0 0
    %2926 = vmatprep.subr.bf16.mxu0 0
    %2927 = vmatpush2.bf16.msra.mxu0 0
    %2928 = vmatprep.subr.bf16.mxu0 0
    %2929 = vmatpush2.bf16.msra.mxu0 0
    %2930 = vmatprep.subr.bf16.mxu0 0
    %2931 = vmatpush2.bf16.msra.mxu0 0
    %2932 = vmatprep.mubr.bf16.mxu0 0
    %2933 = vmatmul.mubr.bf16.gmra.mxu0 %v2624
    %v2934 = vpop.f32.mrf.mxu0
    %v2935 = vadd.f32 %v2886, %v2934
    %v2936 = vpop.f32.mrf.mxu0
    %v2937 = vpop.f32.mrf.mxu0
    %v2938 = vadd.f32 %v2889, %v2937
    %v2939 = vpop.f32.mrf.mxu0
    %2940 = vmatprep.mubr.bf16.mxu0 0
    %2941 = vmatmul.mubr.bf16.gmra.mxu0 %v2624
    %v2942 = vpop.f32.mrf.mxu0
    %v2943 = vadd.f32 %v2894, %v2942
    %v2944 = vpop.f32.mrf.mxu0
    %v2945 = vpop.f32.mrf.mxu0
    %v2946 = vadd.f32 %v2897, %v2945
    %v2947 = vpop.f32.mrf.mxu0
    %2948 = vdwg.mxu0
    %v2949 = vadd.f32 %v2616, %v2935
    %v2950 = vadd.f32 %v2617, %v2938
    %v2951 = vadd.f32 %v2618, %v2943
    %v2952 = vadd.f32 %v2619, %v2946
    %s2953 = scalar_lea.vmem [#allocation3], 2112
    %v2954 = vld [vmem:[%s2953] sm:$0xf]
    %v2955 = vld [vmem:[%s2953 + $0x4] sm:$0xf]
    %v2956 = vld [vmem:[%s2953 + $0x8] sm:$0xf]
    %v2957 = vld [vmem:[%s2953 + $0xc] sm:$0xf]
    %v2958 = vld [vmem:[%s2953 + $0x10] sm:$0xf]
    %v2959 = vld [vmem:[%s2953 + $0x14] sm:$0xf]
    %v2960 = vld [vmem:[%s2953 + $0x18] sm:$0xf]
    %v2961 = vld [vmem:[%s2953 + $0x1c] sm:$0xf]
    %v2962 = vld [vmem:[%s2953 + $0x20] sm:$0xf]
    %v2963 = vld [vmem:[%s2953 + $0x24] sm:$0xf]
    %v2964 = vld [vmem:[%s2953 + $0x28] sm:$0xf]
    %v2965 = vld [vmem:[%s2953 + $0x2c] sm:$0xf]
    %v2966 = vld [vmem:[%s2953 + $0x30] sm:$0xf]
    %v2967 = vld [vmem:[%s2953 + $0x34] sm:$0xf]
    %v2968 = vld [vmem:[%s2953 + $0x38] sm:$0xf]
    %v2969 = vld [vmem:[%s2953 + $0x3c] sm:$0xf]
    %v2970 = vld [vmem:[%s2953 + $0x40] sm:$0xf]
    %v2971 = vld [vmem:[%s2953 + $0x44] sm:$0xf]
    %v2972 = vld [vmem:[%s2953 + $0x48] sm:$0xf]
    %v2973 = vld [vmem:[%s2953 + $0x4c] sm:$0xf]
    %v2974 = vld [vmem:[%s2953 + $0x50] sm:$0xf]
    %v2975 = vld [vmem:[%s2953 + $0x54] sm:$0xf]
    %v2976 = vld [vmem:[%s2953 + $0x58] sm:$0xf]
    %v2977 = vld [vmem:[%s2953 + $0x5c] sm:$0xf]
    %v2978 = vld [vmem:[%s2953 + $0x60] sm:$0xf]
    %v2979 = vld [vmem:[%s2953 + $0x64] sm:$0xf]
    %v2980 = vld [vmem:[%s2953 + $0x68] sm:$0xf]
    %v2981 = vld [vmem:[%s2953 + $0x6c] sm:$0xf]
    %v2982 = vld [vmem:[%s2953 + $0x70] sm:$0xf]
    %v2983 = vld [vmem:[%s2953 + $0x74] sm:$0xf]
    %v2984 = vld [vmem:[%s2953 + $0x78] sm:$0xf]
    %v2985 = vld [vmem:[%s2953 + $0x7c] sm:$0xf]
    %v2986 = vld [vmem:[%s2953 + $0x80] sm:$0xf]
    %v2987 = vld [vmem:[%s2953 + $0x84] sm:$0xf]
    %v2988 = vld [vmem:[%s2953 + $0x88] sm:$0xf]
    %v2989 = vld [vmem:[%s2953 + $0x8c] sm:$0xf]
    %v2990 = vld [vmem:[%s2953 + $0x90] sm:$0xf]
    %v2991 = vld [vmem:[%s2953 + $0x94] sm:$0xf]
    %v2992 = vld [vmem:[%s2953 + $0x98] sm:$0xf]
    %v2993 = vld [vmem:[%s2953 + $0x9c] sm:$0xf]
    %v2994 = vld [vmem:[%s2953 + $0xa0] sm:$0xf]
    %v2995 = vld [vmem:[%s2953 + $0xa4] sm:$0xf]
    %v2996 = vld [vmem:[%s2953 + $0xa8] sm:$0xf]
    %v2997 = vld [vmem:[%s2953 + $0xac] sm:$0xf]
    %v2998 = vld [vmem:[%s2953 + $0xb0] sm:$0xf]
    %v2999 = vld [vmem:[%s2953 + $0xb4] sm:$0xf]
    %v3000 = vld [vmem:[%s2953 + $0xb8] sm:$0xf]
    %v3001 = vld [vmem:[%s2953 + $0xbc] sm:$0xf]
    %v3050 = vunpack.c.l.b16 %v2954
    %v3051 = vunpack.c.l.b16 %v2955
    %v3052 = vunpack.c.l.b16 %v2956
    %v3053 = vunpack.c.l.b16 %v2957
    %v3054 = vunpack.c.l.b16 %v2958
    %v3055 = vunpack.c.l.b16 %v2959
    %v3056 = vunpack.c.l.b16 %v2960
    %v3057 = vunpack.c.l.b16 %v2961
    %v3058 = vunpack.c.l.b16 %v2962
    %v3059 = vunpack.c.l.b16 %v2963
    %v3060 = vunpack.c.l.b16 %v2964
    %v3061 = vunpack.c.l.b16 %v2965
    %v3062 = vunpack.c.l.b16 %v2966
    %v3063 = vunpack.c.l.b16 %v2967
    %v3064 = vunpack.c.l.b16 %v2968
    %v3065 = vunpack.c.l.b16 %v2969
    %v3066 = vunpack.c.l.b16 %v2970
    %v3067 = vunpack.c.l.b16 %v2971
    %v3068 = vunpack.c.l.b16 %v2972
    %v3069 = vunpack.c.l.b16 %v2973
    %v3070 = vunpack.c.l.b16 %v2974
    %v3071 = vunpack.c.l.b16 %v2975
    %v3072 = vunpack.c.l.b16 %v2976
    %v3073 = vunpack.c.l.b16 %v2977
    %v3074 = vunpack.c.l.b16 %v2978
    %v3075 = vunpack.c.l.b16 %v2979
    %v3076 = vunpack.c.l.b16 %v2980
    %v3077 = vunpack.c.l.b16 %v2981
    %v3078 = vunpack.c.l.b16 %v2982
    %v3079 = vunpack.c.l.b16 %v2983
    %v3080 = vunpack.c.l.b16 %v2984
    %v3081 = vunpack.c.l.b16 %v2985
    %v3082 = vunpack.c.l.b16 %v2986
    %v3083 = vunpack.c.l.b16 %v2987
    %v3084 = vunpack.c.l.b16 %v2988
    %v3085 = vunpack.c.l.b16 %v2989
    %v3086 = vunpack.c.l.b16 %v2990
    %v3087 = vunpack.c.l.b16 %v2991
    %v3088 = vunpack.c.l.b16 %v2992
    %v3089 = vunpack.c.l.b16 %v2993
    %v3090 = vunpack.c.l.b16 %v2994
    %v3091 = vunpack.c.l.b16 %v2995
    %v3092 = vunpack.c.l.b16 %v2996
    %v3093 = vunpack.c.l.b16 %v2997
    %v3094 = vunpack.c.l.b16 %v2998
    %v3095 = vunpack.c.l.b16 %v2999
    %v3096 = vunpack.c.l.b16 %v3000
    %v3097 = vunpack.c.l.b16 %v3001
    %v3098 = vpack.c.b16 %v3051, %v3050
    %v3099 = vpack.c.b16 %v3053, %v3052
    %v3100 = vpack.c.b16 %v3055, %v3054
    %v3101 = vpack.c.b16 %v3057, %v3056
    %v3102 = vpack.c.b16 %v3059, %v3058
    %v3103 = vpack.c.b16 %v3061, %v3060
    %v3104 = vpack.c.b16 %v3063, %v3062
    %v3105 = vpack.c.b16 %v3065, %v3064
    %v3106 = vpack.c.b16 %v3067, %v3066
    %v3107 = vpack.c.b16 %v3069, %v3068
    %v3108 = vpack.c.b16 %v3071, %v3070
    %v3109 = vpack.c.b16 %v3073, %v3072
    %v3110 = vpack.c.b16 %v3075, %v3074
    %v3111 = vpack.c.b16 %v3077, %v3076
    %v3112 = vpack.c.b16 %v3079, %v3078
    %v3113 = vpack.c.b16 %v3081, %v3080
    %v3114 = vpack.c.b16 %v3083, %v3082
    %v3115 = vpack.c.b16 %v3085, %v3084
    %v3116 = vpack.c.b16 %v3087, %v3086
    %v3117 = vpack.c.b16 %v3089, %v3088
    %v3118 = vpack.c.b16 %v3091, %v3090
    %v3119 = vpack.c.b16 %v3093, %v3092
    %v3120 = vpack.c.b16 %v3095, %v3094
    %v3121 = vpack.c.b16 %v3097, %v3096
    %3146 = vmatprep.subr.bf16.mxu0 0
    %3147 = vmatpush1.bf16.msra.mxu0 %v3105
    %3148 = vmatprep.subr.bf16.mxu0 0
    %3149 = vmatpush1.bf16.msra.mxu0 %v3104
    %3150 = vmatprep.subr.bf16.mxu0 0
    %3151 = vmatpush1.bf16.msra.mxu0 %v3103
    %3152 = vmatprep.subr.bf16.mxu0 0
    %3153 = vmatpush1.bf16.msra.mxu0 %v3102
    %3154 = vmatprep.subr.bf16.mxu0 0
    %3155 = vmatpush1.bf16.msra.mxu0 %v3101
    %3156 = vmatprep.subr.bf16.mxu0 0
    %3157 = vmatpush1.bf16.msra.mxu0 %v3100
    %3158 = vmatprep.subr.bf16.mxu0 0
    %3159 = vmatpush1.bf16.msra.mxu0 %v3099
    %3160 = vmatprep.subr.bf16.mxu0 0
    %3161 = vmatpush1.bf16.msra.mxu0 %v3098
    %3162 = vmatprep.subr.bf16.mxu0 0
    %3163 = vmatpush2.bf16.msra.mxu0 %v3113
    %3164 = vmatprep.subr.bf16.mxu0 0
    %3165 = vmatpush2.bf16.msra.mxu0 %v3112
    %3166 = vmatprep.subr.bf16.mxu0 0
    %3167 = vmatpush2.bf16.msra.mxu0 %v3111
    %3168 = vmatprep.subr.bf16.mxu0 0
    %3169 = vmatpush2.bf16.msra.mxu0 %v3110
    %3170 = vmatprep.subr.bf16.mxu0 0
    %3171 = vmatpush2.bf16.msra.mxu0 %v3109
    %3172 = vmatprep.subr.bf16.mxu0 0
    %3173 = vmatpush2.bf16.msra.mxu0 %v3108
    %3174 = vmatprep.subr.bf16.mxu0 0
    %3175 = vmatpush2.bf16.msra.mxu0 %v3107
    %3176 = vmatprep.subr.bf16.mxu0 0
    %3177 = vmatpush2.bf16.msra.mxu0 %v3106
    %3178 = vmatprep.mubr.bf16.mxu0 %v2648
    %3179 = vmatmul.mubr.bf16.gmra.mxu0 %v2624
    %v3180 = vpop.f32.mrf.mxu0
    %v3181 = vadd.f32 0.0, %v3180
    %v3182 = vpop.f32.mrf.mxu0
    %v3183 = vpop.f32.mrf.mxu0
    %v3184 = vadd.f32 0.0, %v3183
    %v3185 = vpop.f32.mrf.mxu0
    %3186 = vmatprep.mubr.bf16.mxu0 %v2655
    %3187 = vmatmul.mubr.bf16.gmra.mxu0 %v2624
    %v3188 = vpop.f32.mrf.mxu0
    %v3189 = vadd.f32 0.0, %v3188
    %v3190 = vpop.f32.mrf.mxu0
    %v3191 = vpop.f32.mrf.mxu0
    %v3192 = vadd.f32 0.0, %v3191
    %v3193 = vpop.f32.mrf.mxu0
    %3194 = vdwg.mxu0
    %3195 = vmatprep.subr.bf16.mxu0 0
    %3196 = vmatpush1.bf16.msra.mxu0 %v3121
    %3197 = vmatprep.subr.bf16.mxu0 0
    %3198 = vmatpush1.bf16.msra.mxu0 %v3120
    %3199 = vmatprep.subr.bf16.mxu0 0
    %3200 = vmatpush1.bf16.msra.mxu0 %v3119
    %3201 = vmatprep.subr.bf16.mxu0 0
    %3202 = vmatpush1.bf16.msra.mxu0 %v3118
    %3203 = vmatprep.subr.bf16.mxu0 0
    %3204 = vmatpush1.bf16.msra.mxu0 %v3117
    %3205 = vmatprep.subr.bf16.mxu0 0
    %3206 = vmatpush1.bf16.msra.mxu0 %v3116
    %3207 = vmatprep.subr.bf16.mxu0 0
    %3208 = vmatpush1.bf16.msra.mxu0 %v3115
    %3209 = vmatprep.subr.bf16.mxu0 0
    %3210 = vmatpush1.bf16.msra.mxu0 %v3114
    %3211 = vmatprep.subr.bf16.mxu0 0
    %3212 = vmatpush2.bf16.msra.mxu0 0
    %3213 = vmatprep.subr.bf16.mxu0 0
    %3214 = vmatpush2.bf16.msra.mxu0 0
    %3215 = vmatprep.subr.bf16.mxu0 0
    %3216 = vmatpush2.bf16.msra.mxu0 0
    %3217 = vmatprep.subr.bf16.mxu0 0
    %3218 = vmatpush2.bf16.msra.mxu0 0
    %3219 = vmatprep.subr.bf16.mxu0 0
    %3220 = vmatpush2.bf16.msra.mxu0 0
    %3221 = vmatprep.subr.bf16.mxu0 0
    %3222 = vmatpush2.bf16.msra.mxu0 0
    %3223 = vmatprep.subr.bf16.mxu0 0
    %3224 = vmatpush2.bf16.msra.mxu0 0
    %3225 = vmatprep.subr.bf16.mxu0 0
    %3226 = vmatpush2.bf16.msra.mxu0 0
    %3227 = vmatprep.mubr.bf16.mxu0 0
    %3228 = vmatmul.mubr.bf16.gmra.mxu0 %v2624
    %v3229 = vpop.f32.mrf.mxu0
    %v3230 = vadd.f32 %v3181, %v3229
    %v3231 = vpop.f32.mrf.mxu0
    %v3232 = vpop.f32.mrf.mxu0
    %v3233 = vadd.f32 %v3184, %v3232
    %v3234 = vpop.f32.mrf.mxu0
    %3235 = vmatprep.mubr.bf16.mxu0 0
    %3236 = vmatmul.mubr.bf16.gmra.mxu0 %v2624
    %v3237 = vpop.f32.mrf.mxu0
    %v3238 = vadd.f32 %v3189, %v3237
    %v3239 = vpop.f32.mrf.mxu0
    %v3240 = vpop.f32.mrf.mxu0
    %v3241 = vadd.f32 %v3192, %v3240
    %v3242 = vpop.f32.mrf.mxu0
    %3243 = vdwg.mxu0
    %v3244 = vadd.f32 %v2949, %v3230
    %v3245 = vadd.f32 %v2950, %v3233
    %v3246 = vadd.f32 %v2951, %v3238
    %v3247 = vadd.f32 %v2952, %v3241
    %vm3248 = vcmask 1042432
    %v3249 = vrot.slane %v89, 5
    %v3250 = vsel %vm3248, %v3249, %v3249
    %v3251 = vrot.slane %v90, 5
    %v3252 = vrot.slane %v91, 5
    %v3253 = vsel %vm3248, %v3251, %v3252
    %v3254 = vrot.slane %v92, 5
    %v3255 = vrot.slane %v93, 5
    %v3256 = vsel %vm3248, %v3254, %v3255
    %v3260 = vrot.slane %v94, 5
    %v3261 = vrot.slane %v95, 5
    %v3262 = vsel %vm3248, %v3260, %v3261
    %v3263 = vrot.slane %v96, 5
    %v3264 = vrot.slane %v97, 5
    %v3265 = vsel %vm3248, %v3263, %v3264
    %s3268 = scalar_lea.vmem [#allocation3], 960
    %v3269 = vld [vmem:[%s3268] sm:$0xf]
    %v3270 = vld [vmem:[%s3268 + $0x4] sm:$0xf]
    %v3271 = vld [vmem:[%s3268 + $0x8] sm:$0xf]
    %v3272 = vld [vmem:[%s3268 + $0xc] sm:$0xf]
    %v3273 = vld [vmem:[%s3268 + $0x10] sm:$0xf]
    %v3274 = vld [vmem:[%s3268 + $0x14] sm:$0xf]
    %v3275 = vld [vmem:[%s3268 + $0x18] sm:$0xf]
    %v3276 = vld [vmem:[%s3268 + $0x1c] sm:$0xf]
    %v3277 = vld [vmem:[%s3268 + $0x20] sm:$0xf]
    %v3278 = vld [vmem:[%s3268 + $0x24] sm:$0xf]
    %v3279 = vld [vmem:[%s3268 + $0x28] sm:$0xf]
    %v3280 = vld [vmem:[%s3268 + $0x2c] sm:$0xf]
    %v3281 = vld [vmem:[%s3268 + $0x30] sm:$0xf]
    %v3282 = vld [vmem:[%s3268 + $0x34] sm:$0xf]
    %v3283 = vld [vmem:[%s3268 + $0x38] sm:$0xf]
    %v3284 = vld [vmem:[%s3268 + $0x3c] sm:$0xf]
    %v3285 = vld [vmem:[%s3268 + $0x40] sm:$0xf]
    %v3286 = vld [vmem:[%s3268 + $0x44] sm:$0xf]
    %v3287 = vld [vmem:[%s3268 + $0x48] sm:$0xf]
    %v3288 = vld [vmem:[%s3268 + $0x4c] sm:$0xf]
    %v3289 = vld [vmem:[%s3268 + $0x50] sm:$0xf]
    %v3290 = vld [vmem:[%s3268 + $0x54] sm:$0xf]
    %v3291 = vld [vmem:[%s3268 + $0x58] sm:$0xf]
    %v3292 = vld [vmem:[%s3268 + $0x5c] sm:$0xf]
    %v3293 = vld [vmem:[%s3268 + $0x60] sm:$0xf]
    %v3294 = vld [vmem:[%s3268 + $0x64] sm:$0xf]
    %v3295 = vld [vmem:[%s3268 + $0x68] sm:$0xf]
    %v3296 = vld [vmem:[%s3268 + $0x6c] sm:$0xf]
    %v3297 = vld [vmem:[%s3268 + $0x70] sm:$0xf]
    %v3298 = vld [vmem:[%s3268 + $0x74] sm:$0xf]
    %v3299 = vld [vmem:[%s3268 + $0x78] sm:$0xf]
    %v3300 = vld [vmem:[%s3268 + $0x7c] sm:$0xf]
    %v3301 = vld [vmem:[%s3268 + $0x80] sm:$0xf]
    %v3302 = vld [vmem:[%s3268 + $0x84] sm:$0xf]
    %v3303 = vld [vmem:[%s3268 + $0x88] sm:$0xf]
    %v3304 = vld [vmem:[%s3268 + $0x8c] sm:$0xf]
    %v3305 = vld [vmem:[%s3268 + $0x90] sm:$0xf]
    %v3306 = vld [vmem:[%s3268 + $0x94] sm:$0xf]
    %v3307 = vld [vmem:[%s3268 + $0x98] sm:$0xf]
    %v3308 = vld [vmem:[%s3268 + $0x9c] sm:$0xf]
    %v3309 = vld [vmem:[%s3268 + $0xa0] sm:$0xf]
    %v3310 = vld [vmem:[%s3268 + $0xa4] sm:$0xf]
    %v3311 = vld [vmem:[%s3268 + $0xa8] sm:$0xf]
    %v3312 = vld [vmem:[%s3268 + $0xac] sm:$0xf]
    %v3313 = vld [vmem:[%s3268 + $0xb0] sm:$0xf]
    %v3314 = vld [vmem:[%s3268 + $0xb4] sm:$0xf]
    %v3315 = vld [vmem:[%s3268 + $0xb8] sm:$0xf]
    %v3316 = vld [vmem:[%s3268 + $0xbc] sm:$0xf]
    %v3365 = vunpack.c.l.b16 %v3269
    %v3366 = vunpack.c.l.b16 %v3270
    %v3367 = vunpack.c.l.b16 %v3271
    %v3368 = vunpack.c.l.b16 %v3272
    %v3369 = vunpack.c.l.b16 %v3273
    %v3370 = vunpack.c.l.b16 %v3274
    %v3371 = vunpack.c.l.b16 %v3275
    %v3372 = vunpack.c.l.b16 %v3276
    %v3373 = vunpack.c.l.b16 %v3277
    %v3374 = vunpack.c.l.b16 %v3278
    %v3375 = vunpack.c.l.b16 %v3279
    %v3376 = vunpack.c.l.b16 %v3280
    %v3377 = vunpack.c.l.b16 %v3281
    %v3378 = vunpack.c.l.b16 %v3282
    %v3379 = vunpack.c.l.b16 %v3283
    %v3380 = vunpack.c.l.b16 %v3284
    %v3381 = vunpack.c.l.b16 %v3285
    %v3382 = vunpack.c.l.b16 %v3286
    %v3383 = vunpack.c.l.b16 %v3287
    %v3384 = vunpack.c.l.b16 %v3288
    %v3385 = vunpack.c.l.b16 %v3289
    %v3386 = vunpack.c.l.b16 %v3290
    %v3387 = vunpack.c.l.b16 %v3291
    %v3388 = vunpack.c.l.b16 %v3292
    %v3389 = vunpack.c.l.b16 %v3293
    %v3390 = vunpack.c.l.b16 %v3294
    %v3391 = vunpack.c.l.b16 %v3295
    %v3392 = vunpack.c.l.b16 %v3296
    %v3393 = vunpack.c.l.b16 %v3297
    %v3394 = vunpack.c.l.b16 %v3298
    %v3395 = vunpack.c.l.b16 %v3299
    %v3396 = vunpack.c.l.b16 %v3300
    %v3397 = vunpack.c.l.b16 %v3301
    %v3398 = vunpack.c.l.b16 %v3302
    %v3399 = vunpack.c.l.b16 %v3303
    %v3400 = vunpack.c.l.b16 %v3304
    %v3401 = vunpack.c.l.b16 %v3305
    %v3402 = vunpack.c.l.b16 %v3306
    %v3403 = vunpack.c.l.b16 %v3307
    %v3404 = vunpack.c.l.b16 %v3308
    %v3405 = vunpack.c.l.b16 %v3309
    %v3406 = vunpack.c.l.b16 %v3310
    %v3407 = vunpack.c.l.b16 %v3311
    %v3408 = vunpack.c.l.b16 %v3312
    %v3409 = vunpack.c.l.b16 %v3313
    %v3410 = vunpack.c.l.b16 %v3314
    %v3411 = vunpack.c.l.b16 %v3315
    %v3412 = vunpack.c.l.b16 %v3316
    %v3413 = vpack.c.b16 %v3366, %v3365
    %v3414 = vpack.c.b16 %v3368, %v3367
    %v3415 = vpack.c.b16 %v3370, %v3369
    %v3416 = vpack.c.b16 %v3372, %v3371
    %v3417 = vpack.c.b16 %v3374, %v3373
    %v3418 = vpack.c.b16 %v3376, %v3375
    %v3419 = vpack.c.b16 %v3378, %v3377
    %v3420 = vpack.c.b16 %v3380, %v3379
    %v3421 = vpack.c.b16 %v3382, %v3381
    %v3422 = vpack.c.b16 %v3384, %v3383
    %v3423 = vpack.c.b16 %v3386, %v3385
    %v3424 = vpack.c.b16 %v3388, %v3387
    %v3425 = vpack.c.b16 %v3390, %v3389
    %v3426 = vpack.c.b16 %v3392, %v3391
    %v3427 = vpack.c.b16 %v3394, %v3393
    %v3428 = vpack.c.b16 %v3396, %v3395
    %v3429 = vpack.c.b16 %v3398, %v3397
    %v3430 = vpack.c.b16 %v3400, %v3399
    %v3431 = vpack.c.b16 %v3402, %v3401
    %v3432 = vpack.c.b16 %v3404, %v3403
    %v3433 = vpack.c.b16 %v3406, %v3405
    %v3434 = vpack.c.b16 %v3408, %v3407
    %v3435 = vpack.c.b16 %v3410, %v3409
    %v3436 = vpack.c.b16 %v3412, %v3411
    %3461 = vmatprep.subr.bf16.mxu0 0
    %3462 = vmatpush1.bf16.msra.mxu0 %v3420
    %3463 = vmatprep.subr.bf16.mxu0 0
    %3464 = vmatpush1.bf16.msra.mxu0 %v3419
    %3465 = vmatprep.subr.bf16.mxu0 0
    %3466 = vmatpush1.bf16.msra.mxu0 %v3418
    %3467 = vmatprep.subr.bf16.mxu0 0
    %3468 = vmatpush1.bf16.msra.mxu0 %v3417
    %3469 = vmatprep.subr.bf16.mxu0 0
    %3470 = vmatpush1.bf16.msra.mxu0 %v3416
    %3471 = vmatprep.subr.bf16.mxu0 0
    %3472 = vmatpush1.bf16.msra.mxu0 %v3415
    %3473 = vmatprep.subr.bf16.mxu0 0
    %3474 = vmatpush1.bf16.msra.mxu0 %v3414
    %3475 = vmatprep.subr.bf16.mxu0 0
    %3476 = vmatpush1.bf16.msra.mxu0 %v3413
    %3477 = vmatprep.subr.bf16.mxu0 0
    %3478 = vmatpush2.bf16.msra.mxu0 %v3428
    %3479 = vmatprep.subr.bf16.mxu0 0
    %3480 = vmatpush2.bf16.msra.mxu0 %v3427
    %3481 = vmatprep.subr.bf16.mxu0 0
    %3482 = vmatpush2.bf16.msra.mxu0 %v3426
    %3483 = vmatprep.subr.bf16.mxu0 0
    %3484 = vmatpush2.bf16.msra.mxu0 %v3425
    %3485 = vmatprep.subr.bf16.mxu0 0
    %3486 = vmatpush2.bf16.msra.mxu0 %v3424
    %3487 = vmatprep.subr.bf16.mxu0 0
    %3488 = vmatpush2.bf16.msra.mxu0 %v3423
    %3489 = vmatprep.subr.bf16.mxu0 0
    %3490 = vmatpush2.bf16.msra.mxu0 %v3422
    %3491 = vmatprep.subr.bf16.mxu0 0
    %3492 = vmatpush2.bf16.msra.mxu0 %v3421
    %3493 = vmatprep.mubr.bf16.mxu0 %v3253
    %3494 = vmatmul.mubr.bf16.gmra.mxu0 %v3250
    %v3495 = vpop.f32.mrf.mxu0
    %v3496 = vadd.f32 0.0, %v3495
    %v3497 = vpop.f32.mrf.mxu0
    %v3498 = vpop.f32.mrf.mxu0
    %v3499 = vadd.f32 0.0, %v3498
    %v3500 = vpop.f32.mrf.mxu0
    %3501 = vmatprep.mubr.bf16.mxu0 %v3256
    %3502 = vmatmul.mubr.bf16.gmra.mxu0 %v3250
    %v3503 = vpop.f32.mrf.mxu0
    %v3504 = vadd.f32 0.0, %v3503
    %v3505 = vpop.f32.mrf.mxu0
    %v3506 = vpop.f32.mrf.mxu0
    %v3507 = vadd.f32 0.0, %v3506
    %v3508 = vpop.f32.mrf.mxu0
    %3509 = vdwg.mxu0
    %3510 = vmatprep.subr.bf16.mxu0 0
    %3511 = vmatpush1.bf16.msra.mxu0 %v3436
    %3512 = vmatprep.subr.bf16.mxu0 0
    %3513 = vmatpush1.bf16.msra.mxu0 %v3435
    %3514 = vmatprep.subr.bf16.mxu0 0
    %3515 = vmatpush1.bf16.msra.mxu0 %v3434
    %3516 = vmatprep.subr.bf16.mxu0 0
    %3517 = vmatpush1.bf16.msra.mxu0 %v3433
    %3518 = vmatprep.subr.bf16.mxu0 0
    %3519 = vmatpush1.bf16.msra.mxu0 %v3432
    %3520 = vmatprep.subr.bf16.mxu0 0
    %3521 = vmatpush1.bf16.msra.mxu0 %v3431
    %3522 = vmatprep.subr.bf16.mxu0 0
    %3523 = vmatpush1.bf16.msra.mxu0 %v3430
    %3524 = vmatprep.subr.bf16.mxu0 0
    %3525 = vmatpush1.bf16.msra.mxu0 %v3429
    %3526 = vmatprep.subr.bf16.mxu0 0
    %3527 = vmatpush2.bf16.msra.mxu0 0
    %3528 = vmatprep.subr.bf16.mxu0 0
    %3529 = vmatpush2.bf16.msra.mxu0 0
    %3530 = vmatprep.subr.bf16.mxu0 0
    %3531 = vmatpush2.bf16.msra.mxu0 0
    %3532 = vmatprep.subr.bf16.mxu0 0
    %3533 = vmatpush2.bf16.msra.mxu0 0
    %3534 = vmatprep.subr.bf16.mxu0 0
    %3535 = vmatpush2.bf16.msra.mxu0 0
    %3536 = vmatprep.subr.bf16.mxu0 0
    %3537 = vmatpush2.bf16.msra.mxu0 0
    %3538 = vmatprep.subr.bf16.mxu0 0
    %3539 = vmatpush2.bf16.msra.mxu0 0
    %3540 = vmatprep.subr.bf16.mxu0 0
    %3541 = vmatpush2.bf16.msra.mxu0 0
    %3542 = vmatprep.mubr.bf16.mxu0 0
    %3543 = vmatmul.mubr.bf16.gmra.mxu0 %v3250
    %v3544 = vpop.f32.mrf.mxu0
    %v3545 = vadd.f32 %v3496, %v3544
    %v3546 = vpop.f32.mrf.mxu0
    %v3547 = vpop.f32.mrf.mxu0
    %v3548 = vadd.f32 %v3499, %v3547
    %v3549 = vpop.f32.mrf.mxu0
    %3550 = vmatprep.mubr.bf16.mxu0 0
    %3551 = vmatmul.mubr.bf16.gmra.mxu0 %v3250
    %v3552 = vpop.f32.mrf.mxu0
    %v3553 = vadd.f32 %v3504, %v3552
    %v3554 = vpop.f32.mrf.mxu0
    %v3555 = vpop.f32.mrf.mxu0
    %v3556 = vadd.f32 %v3507, %v3555
    %v3557 = vpop.f32.mrf.mxu0
    %3558 = vdwg.mxu0
    %v3559 = vadd.f32 %v3244, %v3545
    %v3560 = vadd.f32 %v3245, %v3548
    %v3561 = vadd.f32 %v3246, %v3553
    %v3562 = vadd.f32 %v3247, %v3556
    %s3563 = scalar_lea.vmem [#allocation3], 2304
    %v3564 = vld [vmem:[%s3563] sm:$0xf]
    %v3565 = vld [vmem:[%s3563 + $0x4] sm:$0xf]
    %v3566 = vld [vmem:[%s3563 + $0x8] sm:$0xf]
    %v3567 = vld [vmem:[%s3563 + $0xc] sm:$0xf]
    %v3568 = vld [vmem:[%s3563 + $0x10] sm:$0xf]
    %v3569 = vld [vmem:[%s3563 + $0x14] sm:$0xf]
    %v3570 = vld [vmem:[%s3563 + $0x18] sm:$0xf]
    %v3571 = vld [vmem:[%s3563 + $0x1c] sm:$0xf]
    %v3572 = vld [vmem:[%s3563 + $0x20] sm:$0xf]
    %v3573 = vld [vmem:[%s3563 + $0x24] sm:$0xf]
    %v3574 = vld [vmem:[%s3563 + $0x28] sm:$0xf]
    %v3575 = vld [vmem:[%s3563 + $0x2c] sm:$0xf]
    %v3576 = vld [vmem:[%s3563 + $0x30] sm:$0xf]
    %v3577 = vld [vmem:[%s3563 + $0x34] sm:$0xf]
    %v3578 = vld [vmem:[%s3563 + $0x38] sm:$0xf]
    %v3579 = vld [vmem:[%s3563 + $0x3c] sm:$0xf]
    %v3580 = vld [vmem:[%s3563 + $0x40] sm:$0xf]
    %v3581 = vld [vmem:[%s3563 + $0x44] sm:$0xf]
    %v3582 = vld [vmem:[%s3563 + $0x48] sm:$0xf]
    %v3583 = vld [vmem:[%s3563 + $0x4c] sm:$0xf]
    %v3584 = vld [vmem:[%s3563 + $0x50] sm:$0xf]
    %v3585 = vld [vmem:[%s3563 + $0x54] sm:$0xf]
    %v3586 = vld [vmem:[%s3563 + $0x58] sm:$0xf]
    %v3587 = vld [vmem:[%s3563 + $0x5c] sm:$0xf]
    %v3588 = vld [vmem:[%s3563 + $0x60] sm:$0xf]
    %v3589 = vld [vmem:[%s3563 + $0x64] sm:$0xf]
    %v3590 = vld [vmem:[%s3563 + $0x68] sm:$0xf]
    %v3591 = vld [vmem:[%s3563 + $0x6c] sm:$0xf]
    %v3592 = vld [vmem:[%s3563 + $0x70] sm:$0xf]
    %v3593 = vld [vmem:[%s3563 + $0x74] sm:$0xf]
    %v3594 = vld [vmem:[%s3563 + $0x78] sm:$0xf]
    %v3595 = vld [vmem:[%s3563 + $0x7c] sm:$0xf]
    %v3596 = vld [vmem:[%s3563 + $0x80] sm:$0xf]
    %v3597 = vld [vmem:[%s3563 + $0x84] sm:$0xf]
    %v3598 = vld [vmem:[%s3563 + $0x88] sm:$0xf]
    %v3599 = vld [vmem:[%s3563 + $0x8c] sm:$0xf]
    %v3600 = vld [vmem:[%s3563 + $0x90] sm:$0xf]
    %v3601 = vld [vmem:[%s3563 + $0x94] sm:$0xf]
    %v3602 = vld [vmem:[%s3563 + $0x98] sm:$0xf]
    %v3603 = vld [vmem:[%s3563 + $0x9c] sm:$0xf]
    %v3604 = vld [vmem:[%s3563 + $0xa0] sm:$0xf]
    %v3605 = vld [vmem:[%s3563 + $0xa4] sm:$0xf]
    %v3606 = vld [vmem:[%s3563 + $0xa8] sm:$0xf]
    %v3607 = vld [vmem:[%s3563 + $0xac] sm:$0xf]
    %v3608 = vld [vmem:[%s3563 + $0xb0] sm:$0xf]
    %v3609 = vld [vmem:[%s3563 + $0xb4] sm:$0xf]
    %v3610 = vld [vmem:[%s3563 + $0xb8] sm:$0xf]
    %v3611 = vld [vmem:[%s3563 + $0xbc] sm:$0xf]
    %v3660 = vunpack.c.l.b16 %v3564
    %v3661 = vunpack.c.l.b16 %v3565
    %v3662 = vunpack.c.l.b16 %v3566
    %v3663 = vunpack.c.l.b16 %v3567
    %v3664 = vunpack.c.l.b16 %v3568
    %v3665 = vunpack.c.l.b16 %v3569
    %v3666 = vunpack.c.l.b16 %v3570
    %v3667 = vunpack.c.l.b16 %v3571
    %v3668 = vunpack.c.l.b16 %v3572
    %v3669 = vunpack.c.l.b16 %v3573
    %v3670 = vunpack.c.l.b16 %v3574
    %v3671 = vunpack.c.l.b16 %v3575
    %v3672 = vunpack.c.l.b16 %v3576
    %v3673 = vunpack.c.l.b16 %v3577
    %v3674 = vunpack.c.l.b16 %v3578
    %v3675 = vunpack.c.l.b16 %v3579
    %v3676 = vunpack.c.l.b16 %v3580
    %v3677 = vunpack.c.l.b16 %v3581
    %v3678 = vunpack.c.l.b16 %v3582
    %v3679 = vunpack.c.l.b16 %v3583
    %v3680 = vunpack.c.l.b16 %v3584
    %v3681 = vunpack.c.l.b16 %v3585
    %v3682 = vunpack.c.l.b16 %v3586
    %v3683 = vunpack.c.l.b16 %v3587
    %v3684 = vunpack.c.l.b16 %v3588
    %v3685 = vunpack.c.l.b16 %v3589
    %v3686 = vunpack.c.l.b16 %v3590
    %v3687 = vunpack.c.l.b16 %v3591
    %v3688 = vunpack.c.l.b16 %v3592
    %v3689 = vunpack.c.l.b16 %v3593
    %v3690 = vunpack.c.l.b16 %v3594
    %v3691 = vunpack.c.l.b16 %v3595
    %v3692 = vunpack.c.l.b16 %v3596
    %v3693 = vunpack.c.l.b16 %v3597
    %v3694 = vunpack.c.l.b16 %v3598
    %v3695 = vunpack.c.l.b16 %v3599
    %v3696 = vunpack.c.l.b16 %v3600
    %v3697 = vunpack.c.l.b16 %v3601
    %v3698 = vunpack.c.l.b16 %v3602
    %v3699 = vunpack.c.l.b16 %v3603
    %v3700 = vunpack.c.l.b16 %v3604
    %v3701 = vunpack.c.l.b16 %v3605
    %v3702 = vunpack.c.l.b16 %v3606
    %v3703 = vunpack.c.l.b16 %v3607
    %v3704 = vunpack.c.l.b16 %v3608
    %v3705 = vunpack.c.l.b16 %v3609
    %v3706 = vunpack.c.l.b16 %v3610
    %v3707 = vunpack.c.l.b16 %v3611
    %v3708 = vpack.c.b16 %v3661, %v3660
    %v3709 = vpack.c.b16 %v3663, %v3662
    %v3710 = vpack.c.b16 %v3665, %v3664
    %v3711 = vpack.c.b16 %v3667, %v3666
    %v3712 = vpack.c.b16 %v3669, %v3668
    %v3713 = vpack.c.b16 %v3671, %v3670
    %v3714 = vpack.c.b16 %v3673, %v3672
    %v3715 = vpack.c.b16 %v3675, %v3674
    %v3716 = vpack.c.b16 %v3677, %v3676
    %v3717 = vpack.c.b16 %v3679, %v3678
    %v3718 = vpack.c.b16 %v3681, %v3680
    %v3719 = vpack.c.b16 %v3683, %v3682
    %v3720 = vpack.c.b16 %v3685, %v3684
    %v3721 = vpack.c.b16 %v3687, %v3686
    %v3722 = vpack.c.b16 %v3689, %v3688
    %v3723 = vpack.c.b16 %v3691, %v3690
    %v3724 = vpack.c.b16 %v3693, %v3692
    %v3725 = vpack.c.b16 %v3695, %v3694
    %v3726 = vpack.c.b16 %v3697, %v3696
    %v3727 = vpack.c.b16 %v3699, %v3698
    %v3728 = vpack.c.b16 %v3701, %v3700
    %v3729 = vpack.c.b16 %v3703, %v3702
    %v3730 = vpack.c.b16 %v3705, %v3704
    %v3731 = vpack.c.b16 %v3707, %v3706
    %3756 = vmatprep.subr.bf16.mxu0 0
    %3757 = vmatpush1.bf16.msra.mxu0 %v3715
    %3758 = vmatprep.subr.bf16.mxu0 0
    %3759 = vmatpush1.bf16.msra.mxu0 %v3714
    %3760 = vmatprep.subr.bf16.mxu0 0
    %3761 = vmatpush1.bf16.msra.mxu0 %v3713
    %3762 = vmatprep.subr.bf16.mxu0 0
    %3763 = vmatpush1.bf16.msra.mxu0 %v3712
    %3764 = vmatprep.subr.bf16.mxu0 0
    %3765 = vmatpush1.bf16.msra.mxu0 %v3711
    %3766 = vmatprep.subr.bf16.mxu0 0
    %3767 = vmatpush1.bf16.msra.mxu0 %v3710
    %3768 = vmatprep.subr.bf16.mxu0 0
    %3769 = vmatpush1.bf16.msra.mxu0 %v3709
    %3770 = vmatprep.subr.bf16.mxu0 0
    %3771 = vmatpush1.bf16.msra.mxu0 %v3708
    %3772 = vmatprep.subr.bf16.mxu0 0
    %3773 = vmatpush2.bf16.msra.mxu0 %v3723
    %3774 = vmatprep.subr.bf16.mxu0 0
    %3775 = vmatpush2.bf16.msra.mxu0 %v3722
    %3776 = vmatprep.subr.bf16.mxu0 0
    %3777 = vmatpush2.bf16.msra.mxu0 %v3721
    %3778 = vmatprep.subr.bf16.mxu0 0
    %3779 = vmatpush2.bf16.msra.mxu0 %v3720
    %3780 = vmatprep.subr.bf16.mxu0 0
    %3781 = vmatpush2.bf16.msra.mxu0 %v3719
    %3782 = vmatprep.subr.bf16.mxu0 0
    %3783 = vmatpush2.bf16.msra.mxu0 %v3718
    %3784 = vmatprep.subr.bf16.mxu0 0
    %3785 = vmatpush2.bf16.msra.mxu0 %v3717
    %3786 = vmatprep.subr.bf16.mxu0 0
    %3787 = vmatpush2.bf16.msra.mxu0 %v3716
    %3788 = vmatprep.mubr.bf16.mxu0 %v3262
    %3789 = vmatmul.mubr.bf16.gmra.mxu0 %v3250
    %v3790 = vpop.f32.mrf.mxu0
    %v3791 = vadd.f32 0.0, %v3790
    %v3792 = vpop.f32.mrf.mxu0
    %v3793 = vpop.f32.mrf.mxu0
    %v3794 = vadd.f32 0.0, %v3793
    %v3795 = vpop.f32.mrf.mxu0
    %3796 = vmatprep.mubr.bf16.mxu0 %v3265
    %3797 = vmatmul.mubr.bf16.gmra.mxu0 %v3250
    %v3798 = vpop.f32.mrf.mxu0
    %v3799 = vadd.f32 0.0, %v3798
    %v3800 = vpop.f32.mrf.mxu0
    %v3801 = vpop.f32.mrf.mxu0
    %v3802 = vadd.f32 0.0, %v3801
    %v3803 = vpop.f32.mrf.mxu0
    %3804 = vdwg.mxu0
    %3805 = vmatprep.subr.bf16.mxu0 0
    %3806 = vmatpush1.bf16.msra.mxu0 %v3731
    %3807 = vmatprep.subr.bf16.mxu0 0
    %3808 = vmatpush1.bf16.msra.mxu0 %v3730
    %3809 = vmatprep.subr.bf16.mxu0 0
    %3810 = vmatpush1.bf16.msra.mxu0 %v3729
    %3811 = vmatprep.subr.bf16.mxu0 0
    %3812 = vmatpush1.bf16.msra.mxu0 %v3728
    %3813 = vmatprep.subr.bf16.mxu0 0
    %3814 = vmatpush1.bf16.msra.mxu0 %v3727
    %3815 = vmatprep.subr.bf16.mxu0 0
    %3816 = vmatpush1.bf16.msra.mxu0 %v3726
    %3817 = vmatprep.subr.bf16.mxu0 0
    %3818 = vmatpush1.bf16.msra.mxu0 %v3725
    %3819 = vmatprep.subr.bf16.mxu0 0
    %3820 = vmatpush1.bf16.msra.mxu0 %v3724
    %3821 = vmatprep.subr.bf16.mxu0 0
    %3822 = vmatpush2.bf16.msra.mxu0 0
    %3823 = vmatprep.subr.bf16.mxu0 0
    %3824 = vmatpush2.bf16.msra.mxu0 0
    %3825 = vmatprep.subr.bf16.mxu0 0
    %3826 = vmatpush2.bf16.msra.mxu0 0
    %3827 = vmatprep.subr.bf16.mxu0 0
    %3828 = vmatpush2.bf16.msra.mxu0 0
    %3829 = vmatprep.subr.bf16.mxu0 0
    %3830 = vmatpush2.bf16.msra.mxu0 0
    %3831 = vmatprep.subr.bf16.mxu0 0
    %3832 = vmatpush2.bf16.msra.mxu0 0
    %3833 = vmatprep.subr.bf16.mxu0 0
    %3834 = vmatpush2.bf16.msra.mxu0 0
    %3835 = vmatprep.subr.bf16.mxu0 0
    %3836 = vmatpush2.bf16.msra.mxu0 0
    %3837 = vmatprep.mubr.bf16.mxu0 0
    %3838 = vmatmul.mubr.bf16.gmra.mxu0 %v3250
    %v3839 = vpop.f32.mrf.mxu0
    %v3840 = vadd.f32 %v3791, %v3839
    %v3841 = vpop.f32.mrf.mxu0
    %v3842 = vpop.f32.mrf.mxu0
    %v3843 = vadd.f32 %v3794, %v3842
    %v3844 = vpop.f32.mrf.mxu0
    %3845 = vmatprep.mubr.bf16.mxu0 0
    %3846 = vmatmul.mubr.bf16.gmra.mxu0 %v3250
    %v3847 = vpop.f32.mrf.mxu0
    %v3848 = vadd.f32 %v3799, %v3847
    %v3849 = vpop.f32.mrf.mxu0
    %v3850 = vpop.f32.mrf.mxu0
    %v3851 = vadd.f32 %v3802, %v3850
    %v3852 = vpop.f32.mrf.mxu0
    %3853 = vdwg.mxu0
    %v3854 = vadd.f32 %v3559, %v3840
    %v3855 = vadd.f32 %v3560, %v3843
    %v3856 = vadd.f32 %v3561, %v3848
    %v3857 = vadd.f32 %v3562, %v3851
    %vm3858 = vsmask.f32 2304
    %v3859 = vrot.slane %v101, 5
    %v3860 = vrot.slane %v104, 6
    %v3861 = vor.u32 %v3859, %v3860
    %v3862 = vsel %vm3858, %v3861, %v3861
    %v3863 = vrot.slane %v110, 5
    %v3864 = vrot.slane %v113, 6
    %v3865 = vor.u32 %v3863, %v3864
    %v3866 = vrot.slane %v118, 5
    %v3867 = vrot.slane %v121, 6
    %v3868 = vor.u32 %v3866, %v3867
    %v3869 = vsel %vm3858, %v3865, %v3868
    %v3870 = vrot.slane %v127, 5
    %v3871 = vrot.slane %v130, 6
    %v3872 = vor.u32 %v3870, %v3871
    %v3873 = vrot.slane %v135, 5
    %v3874 = vrot.slane %v138, 6
    %v3875 = vor.u32 %v3873, %v3874
    %v3876 = vsel %vm3858, %v3872, %v3875
    %v3880 = vrot.slane %v147, 5
    %v3881 = vrot.slane %v150, 6
    %v3882 = vor.u32 %v3880, %v3881
    %v3883 = vrot.slane %v155, 5
    %v3884 = vrot.slane %v158, 6
    %v3885 = vor.u32 %v3883, %v3884
    %v3886 = vsel %vm3858, %v3882, %v3885
    %v3887 = vrot.slane %v164, 5
    %v3888 = vrot.slane %v167, 6
    %v3889 = vor.u32 %v3887, %v3888
    %v3890 = vrot.slane %v172, 5
    %v3891 = vrot.slane %v175, 6
    %v3892 = vor.u32 %v3890, %v3891
    %v3893 = vsel %vm3858, %v3889, %v3892
    %s3896 = scalar_lea.vmem [#allocation3], 1152
    %v3897 = vld [vmem:[%s3896] sm:$0xf]
    %v3898 = vld [vmem:[%s3896 + $0x4] sm:$0xf]
    %v3899 = vld [vmem:[%s3896 + $0x8] sm:$0xf]
    %v3900 = vld [vmem:[%s3896 + $0xc] sm:$0xf]
    %v3901 = vld [vmem:[%s3896 + $0x10] sm:$0xf]
    %v3902 = vld [vmem:[%s3896 + $0x14] sm:$0xf]
    %v3903 = vld [vmem:[%s3896 + $0x18] sm:$0xf]
    %v3904 = vld [vmem:[%s3896 + $0x1c] sm:$0xf]
    %v3905 = vld [vmem:[%s3896 + $0x20] sm:$0xf]
    %v3906 = vld [vmem:[%s3896 + $0x24] sm:$0xf]
    %v3907 = vld [vmem:[%s3896 + $0x28] sm:$0xf]
    %v3908 = vld [vmem:[%s3896 + $0x2c] sm:$0xf]
    %v3909 = vld [vmem:[%s3896 + $0x30] sm:$0xf]
    %v3910 = vld [vmem:[%s3896 + $0x34] sm:$0xf]
    %v3911 = vld [vmem:[%s3896 + $0x38] sm:$0xf]
    %v3912 = vld [vmem:[%s3896 + $0x3c] sm:$0xf]
    %v3913 = vld [vmem:[%s3896 + $0x40] sm:$0xf]
    %v3914 = vld [vmem:[%s3896 + $0x44] sm:$0xf]
    %v3915 = vld [vmem:[%s3896 + $0x48] sm:$0xf]
    %v3916 = vld [vmem:[%s3896 + $0x4c] sm:$0xf]
    %v3917 = vld [vmem:[%s3896 + $0x50] sm:$0xf]
    %v3918 = vld [vmem:[%s3896 + $0x54] sm:$0xf]
    %v3919 = vld [vmem:[%s3896 + $0x58] sm:$0xf]
    %v3920 = vld [vmem:[%s3896 + $0x5c] sm:$0xf]
    %v3921 = vld [vmem:[%s3896 + $0x60] sm:$0xf]
    %v3922 = vld [vmem:[%s3896 + $0x64] sm:$0xf]
    %v3923 = vld [vmem:[%s3896 + $0x68] sm:$0xf]
    %v3924 = vld [vmem:[%s3896 + $0x6c] sm:$0xf]
    %v3925 = vld [vmem:[%s3896 + $0x70] sm:$0xf]
    %v3926 = vld [vmem:[%s3896 + $0x74] sm:$0xf]
    %v3927 = vld [vmem:[%s3896 + $0x78] sm:$0xf]
    %v3928 = vld [vmem:[%s3896 + $0x7c] sm:$0xf]
    %v3929 = vld [vmem:[%s3896 + $0x80] sm:$0xf]
    %v3930 = vld [vmem:[%s3896 + $0x84] sm:$0xf]
    %v3931 = vld [vmem:[%s3896 + $0x88] sm:$0xf]
    %v3932 = vld [vmem:[%s3896 + $0x8c] sm:$0xf]
    %v3933 = vld [vmem:[%s3896 + $0x90] sm:$0xf]
    %v3934 = vld [vmem:[%s3896 + $0x94] sm:$0xf]
    %v3935 = vld [vmem:[%s3896 + $0x98] sm:$0xf]
    %v3936 = vld [vmem:[%s3896 + $0x9c] sm:$0xf]
    %v3937 = vld [vmem:[%s3896 + $0xa0] sm:$0xf]
    %v3938 = vld [vmem:[%s3896 + $0xa4] sm:$0xf]
    %v3939 = vld [vmem:[%s3896 + $0xa8] sm:$0xf]
    %v3940 = vld [vmem:[%s3896 + $0xac] sm:$0xf]
    %v3941 = vld [vmem:[%s3896 + $0xb0] sm:$0xf]
    %v3942 = vld [vmem:[%s3896 + $0xb4] sm:$0xf]
    %v3943 = vld [vmem:[%s3896 + $0xb8] sm:$0xf]
    %v3944 = vld [vmem:[%s3896 + $0xbc] sm:$0xf]
    %v3993 = vunpack.c.l.b16 %v3897
    %v3994 = vunpack.c.l.b16 %v3898
    %v3995 = vunpack.c.l.b16 %v3899
    %v3996 = vunpack.c.l.b16 %v3900
    %v3997 = vunpack.c.l.b16 %v3901
    %v3998 = vunpack.c.l.b16 %v3902
    %v3999 = vunpack.c.l.b16 %v3903
    %v4000 = vunpack.c.l.b16 %v3904
    %v4001 = vunpack.c.l.b16 %v3905
    %v4002 = vunpack.c.l.b16 %v3906
    %v4003 = vunpack.c.l.b16 %v3907
    %v4004 = vunpack.c.l.b16 %v3908
    %v4005 = vunpack.c.l.b16 %v3909
    %v4006 = vunpack.c.l.b16 %v3910
    %v4007 = vunpack.c.l.b16 %v3911
    %v4008 = vunpack.c.l.b16 %v3912
    %v4009 = vunpack.c.l.b16 %v3913
    %v4010 = vunpack.c.l.b16 %v3914
    %v4011 = vunpack.c.l.b16 %v3915
    %v4012 = vunpack.c.l.b16 %v3916
    %v4013 = vunpack.c.l.b16 %v3917
    %v4014 = vunpack.c.l.b16 %v3918
    %v4015 = vunpack.c.l.b16 %v3919
    %v4016 = vunpack.c.l.b16 %v3920
    %v4017 = vunpack.c.l.b16 %v3921
    %v4018 = vunpack.c.l.b16 %v3922
    %v4019 = vunpack.c.l.b16 %v3923
    %v4020 = vunpack.c.l.b16 %v3924
    %v4021 = vunpack.c.l.b16 %v3925
    %v4022 = vunpack.c.l.b16 %v3926
    %v4023 = vunpack.c.l.b16 %v3927
    %v4024 = vunpack.c.l.b16 %v3928
    %v4025 = vunpack.c.l.b16 %v3929
    %v4026 = vunpack.c.l.b16 %v3930
    %v4027 = vunpack.c.l.b16 %v3931
    %v4028 = vunpack.c.l.b16 %v3932
    %v4029 = vunpack.c.l.b16 %v3933
    %v4030 = vunpack.c.l.b16 %v3934
    %v4031 = vunpack.c.l.b16 %v3935
    %v4032 = vunpack.c.l.b16 %v3936
    %v4033 = vunpack.c.l.b16 %v3937
    %v4034 = vunpack.c.l.b16 %v3938
    %v4035 = vunpack.c.l.b16 %v3939
    %v4036 = vunpack.c.l.b16 %v3940
    %v4037 = vunpack.c.l.b16 %v3941
    %v4038 = vunpack.c.l.b16 %v3942
    %v4039 = vunpack.c.l.b16 %v3943
    %v4040 = vunpack.c.l.b16 %v3944
    %v4041 = vpack.c.b16 %v3994, %v3993
    %v4042 = vpack.c.b16 %v3996, %v3995
    %v4043 = vpack.c.b16 %v3998, %v3997
    %v4044 = vpack.c.b16 %v4000, %v3999
    %v4045 = vpack.c.b16 %v4002, %v4001
    %v4046 = vpack.c.b16 %v4004, %v4003
    %v4047 = vpack.c.b16 %v4006, %v4005
    %v4048 = vpack.c.b16 %v4008, %v4007
    %v4049 = vpack.c.b16 %v4010, %v4009
    %v4050 = vpack.c.b16 %v4012, %v4011
    %v4051 = vpack.c.b16 %v4014, %v4013
    %v4052 = vpack.c.b16 %v4016, %v4015
    %v4053 = vpack.c.b16 %v4018, %v4017
    %v4054 = vpack.c.b16 %v4020, %v4019
    %v4055 = vpack.c.b16 %v4022, %v4021
    %v4056 = vpack.c.b16 %v4024, %v4023
    %v4057 = vpack.c.b16 %v4026, %v4025
    %v4058 = vpack.c.b16 %v4028, %v4027
    %v4059 = vpack.c.b16 %v4030, %v4029
    %v4060 = vpack.c.b16 %v4032, %v4031
    %v4061 = vpack.c.b16 %v4034, %v4033
    %v4062 = vpack.c.b16 %v4036, %v4035
    %v4063 = vpack.c.b16 %v4038, %v4037
    %v4064 = vpack.c.b16 %v4040, %v4039
    %4089 = vmatprep.subr.bf16.mxu0 0
    %4090 = vmatpush1.bf16.msra.mxu0 %v4048
    %4091 = vmatprep.subr.bf16.mxu0 0
    %4092 = vmatpush1.bf16.msra.mxu0 %v4047
    %4093 = vmatprep.subr.bf16.mxu0 0
    %4094 = vmatpush1.bf16.msra.mxu0 %v4046
    %4095 = vmatprep.subr.bf16.mxu0 0
    %4096 = vmatpush1.bf16.msra.mxu0 %v4045
    %4097 = vmatprep.subr.bf16.mxu0 0
    %4098 = vmatpush1.bf16.msra.mxu0 %v4044
    %4099 = vmatprep.subr.bf16.mxu0 0
    %4100 = vmatpush1.bf16.msra.mxu0 %v4043
    %4101 = vmatprep.subr.bf16.mxu0 0
    %4102 = vmatpush1.bf16.msra.mxu0 %v4042
    %4103 = vmatprep.subr.bf16.mxu0 0
    %4104 = vmatpush1.bf16.msra.mxu0 %v4041
    %4105 = vmatprep.subr.bf16.mxu0 0
    %4106 = vmatpush2.bf16.msra.mxu0 %v4056
    %4107 = vmatprep.subr.bf16.mxu0 0
    %4108 = vmatpush2.bf16.msra.mxu0 %v4055
    %4109 = vmatprep.subr.bf16.mxu0 0
    %4110 = vmatpush2.bf16.msra.mxu0 %v4054
    %4111 = vmatprep.subr.bf16.mxu0 0
    %4112 = vmatpush2.bf16.msra.mxu0 %v4053
    %4113 = vmatprep.subr.bf16.mxu0 0
    %4114 = vmatpush2.bf16.msra.mxu0 %v4052
    %4115 = vmatprep.subr.bf16.mxu0 0
    %4116 = vmatpush2.bf16.msra.mxu0 %v4051
    %4117 = vmatprep.subr.bf16.mxu0 0
    %4118 = vmatpush2.bf16.msra.mxu0 %v4050
    %4119 = vmatprep.subr.bf16.mxu0 0
    %4120 = vmatpush2.bf16.msra.mxu0 %v4049
    %4121 = vmatprep.mubr.bf16.mxu0 %v3869
    %4122 = vmatmul.mubr.bf16.gmra.mxu0 %v3862
    %v4123 = vpop.f32.mrf.mxu0
    %v4124 = vadd.f32 0.0, %v4123
    %v4125 = vpop.f32.mrf.mxu0
    %v4126 = vpop.f32.mrf.mxu0
    %v4127 = vadd.f32 0.0, %v4126
    %v4128 = vpop.f32.mrf.mxu0
    %4129 = vmatprep.mubr.bf16.mxu0 %v3876
    %4130 = vmatmul.mubr.bf16.gmra.mxu0 %v3862
    %v4131 = vpop.f32.mrf.mxu0
    %v4132 = vadd.f32 0.0, %v4131
    %v4133 = vpop.f32.mrf.mxu0
    %v4134 = vpop.f32.mrf.mxu0
    %v4135 = vadd.f32 0.0, %v4134
    %v4136 = vpop.f32.mrf.mxu0
    %4137 = vdwg.mxu0
    %4138 = vmatprep.subr.bf16.mxu0 0
    %4139 = vmatpush1.bf16.msra.mxu0 %v4064
    %4140 = vmatprep.subr.bf16.mxu0 0
    %4141 = vmatpush1.bf16.msra.mxu0 %v4063
    %4142 = vmatprep.subr.bf16.mxu0 0
    %4143 = vmatpush1.bf16.msra.mxu0 %v4062
    %4144 = vmatprep.subr.bf16.mxu0 0
    %4145 = vmatpush1.bf16.msra.mxu0 %v4061
    %4146 = vmatprep.subr.bf16.mxu0 0
    %4147 = vmatpush1.bf16.msra.mxu0 %v4060
    %4148 = vmatprep.subr.bf16.mxu0 0
    %4149 = vmatpush1.bf16.msra.mxu0 %v4059
    %4150 = vmatprep.subr.bf16.mxu0 0
    %4151 = vmatpush1.bf16.msra.mxu0 %v4058
    %4152 = vmatprep.subr.bf16.mxu0 0
    %4153 = vmatpush1.bf16.msra.mxu0 %v4057
    %4154 = vmatprep.subr.bf16.mxu0 0
    %4155 = vmatpush2.bf16.msra.mxu0 0
    %4156 = vmatprep.subr.bf16.mxu0 0
    %4157 = vmatpush2.bf16.msra.mxu0 0
    %4158 = vmatprep.subr.bf16.mxu0 0
    %4159 = vmatpush2.bf16.msra.mxu0 0
    %4160 = vmatprep.subr.bf16.mxu0 0
    %4161 = vmatpush2.bf16.msra.mxu0 0
    %4162 = vmatprep.subr.bf16.mxu0 0
    %4163 = vmatpush2.bf16.msra.mxu0 0
    %4164 = vmatprep.subr.bf16.mxu0 0
    %4165 = vmatpush2.bf16.msra.mxu0 0
    %4166 = vmatprep.subr.bf16.mxu0 0
    %4167 = vmatpush2.bf16.msra.mxu0 0
    %4168 = vmatprep.subr.bf16.mxu0 0
    %4169 = vmatpush2.bf16.msra.mxu0 0
    %4170 = vmatprep.mubr.bf16.mxu0 0
    %4171 = vmatmul.mubr.bf16.gmra.mxu0 %v3862
    %v4172 = vpop.f32.mrf.mxu0
    %v4173 = vadd.f32 %v4124, %v4172
    %v4174 = vpop.f32.mrf.mxu0
    %v4175 = vpop.f32.mrf.mxu0
    %v4176 = vadd.f32 %v4127, %v4175
    %v4177 = vpop.f32.mrf.mxu0
    %4178 = vmatprep.mubr.bf16.mxu0 0
    %4179 = vmatmul.mubr.bf16.gmra.mxu0 %v3862
    %v4180 = vpop.f32.mrf.mxu0
    %v4181 = vadd.f32 %v4132, %v4180
    %v4182 = vpop.f32.mrf.mxu0
    %v4183 = vpop.f32.mrf.mxu0
    %v4184 = vadd.f32 %v4135, %v4183
    %v4185 = vpop.f32.mrf.mxu0
    %4186 = vdwg.mxu0
    %v4187 = vadd.f32 %v3854, %v4173
    %v4188 = vadd.f32 %v3855, %v4176
    %v4189 = vadd.f32 %v3856, %v4181
    %v4190 = vadd.f32 %v3857, %v4184
    %s4191 = scalar_lea.vmem [#allocation3], 2496
    %v4192 = vld [vmem:[%s4191] sm:$0xf]
    %v4193 = vld [vmem:[%s4191 + $0x4] sm:$0xf]
    %v4194 = vld [vmem:[%s4191 + $0x8] sm:$0xf]
    %v4195 = vld [vmem:[%s4191 + $0xc] sm:$0xf]
    %v4196 = vld [vmem:[%s4191 + $0x10] sm:$0xf]
    %v4197 = vld [vmem:[%s4191 + $0x14] sm:$0xf]
    %v4198 = vld [vmem:[%s4191 + $0x18] sm:$0xf]
    %v4199 = vld [vmem:[%s4191 + $0x1c] sm:$0xf]
    %v4200 = vld [vmem:[%s4191 + $0x20] sm:$0xf]
    %v4201 = vld [vmem:[%s4191 + $0x24] sm:$0xf]
    %v4202 = vld [vmem:[%s4191 + $0x28] sm:$0xf]
    %v4203 = vld [vmem:[%s4191 + $0x2c] sm:$0xf]
    %v4204 = vld [vmem:[%s4191 + $0x30] sm:$0xf]
    %v4205 = vld [vmem:[%s4191 + $0x34] sm:$0xf]
    %v4206 = vld [vmem:[%s4191 + $0x38] sm:$0xf]
    %v4207 = vld [vmem:[%s4191 + $0x3c] sm:$0xf]
    %v4208 = vld [vmem:[%s4191 + $0x40] sm:$0xf]
    %v4209 = vld [vmem:[%s4191 + $0x44] sm:$0xf]
    %v4210 = vld [vmem:[%s4191 + $0x48] sm:$0xf]
    %v4211 = vld [vmem:[%s4191 + $0x4c] sm:$0xf]
    %v4212 = vld [vmem:[%s4191 + $0x50] sm:$0xf]
    %v4213 = vld [vmem:[%s4191 + $0x54] sm:$0xf]
    %v4214 = vld [vmem:[%s4191 + $0x58] sm:$0xf]
    %v4215 = vld [vmem:[%s4191 + $0x5c] sm:$0xf]
    %v4216 = vld [vmem:[%s4191 + $0x60] sm:$0xf]
    %v4217 = vld [vmem:[%s4191 + $0x64] sm:$0xf]
    %v4218 = vld [vmem:[%s4191 + $0x68] sm:$0xf]
    %v4219 = vld [vmem:[%s4191 + $0x6c] sm:$0xf]
    %v4220 = vld [vmem:[%s4191 + $0x70] sm:$0xf]
    %v4221 = vld [vmem:[%s4191 + $0x74] sm:$0xf]
    %v4222 = vld [vmem:[%s4191 + $0x78] sm:$0xf]
    %v4223 = vld [vmem:[%s4191 + $0x7c] sm:$0xf]
    %v4224 = vld [vmem:[%s4191 + $0x80] sm:$0xf]
    %v4225 = vld [vmem:[%s4191 + $0x84] sm:$0xf]
    %v4226 = vld [vmem:[%s4191 + $0x88] sm:$0xf]
    %v4227 = vld [vmem:[%s4191 + $0x8c] sm:$0xf]
    %v4228 = vld [vmem:[%s4191 + $0x90] sm:$0xf]
    %v4229 = vld [vmem:[%s4191 + $0x94] sm:$0xf]
    %v4230 = vld [vmem:[%s4191 + $0x98] sm:$0xf]
    %v4231 = vld [vmem:[%s4191 + $0x9c] sm:$0xf]
    %v4232 = vld [vmem:[%s4191 + $0xa0] sm:$0xf]
    %v4233 = vld [vmem:[%s4191 + $0xa4] sm:$0xf]
    %v4234 = vld [vmem:[%s4191 + $0xa8] sm:$0xf]
    %v4235 = vld [vmem:[%s4191 + $0xac] sm:$0xf]
    %v4236 = vld [vmem:[%s4191 + $0xb0] sm:$0xf]
    %v4237 = vld [vmem:[%s4191 + $0xb4] sm:$0xf]
    %v4238 = vld [vmem:[%s4191 + $0xb8] sm:$0xf]
    %v4239 = vld [vmem:[%s4191 + $0xbc] sm:$0xf]
    %v4288 = vunpack.c.l.b16 %v4192
    %v4289 = vunpack.c.l.b16 %v4193
    %v4290 = vunpack.c.l.b16 %v4194
    %v4291 = vunpack.c.l.b16 %v4195
    %v4292 = vunpack.c.l.b16 %v4196
    %v4293 = vunpack.c.l.b16 %v4197
    %v4294 = vunpack.c.l.b16 %v4198
    %v4295 = vunpack.c.l.b16 %v4199
    %v4296 = vunpack.c.l.b16 %v4200
    %v4297 = vunpack.c.l.b16 %v4201
    %v4298 = vunpack.c.l.b16 %v4202
    %v4299 = vunpack.c.l.b16 %v4203
    %v4300 = vunpack.c.l.b16 %v4204
    %v4301 = vunpack.c.l.b16 %v4205
    %v4302 = vunpack.c.l.b16 %v4206
    %v4303 = vunpack.c.l.b16 %v4207
    %v4304 = vunpack.c.l.b16 %v4208
    %v4305 = vunpack.c.l.b16 %v4209
    %v4306 = vunpack.c.l.b16 %v4210
    %v4307 = vunpack.c.l.b16 %v4211
    %v4308 = vunpack.c.l.b16 %v4212
    %v4309 = vunpack.c.l.b16 %v4213
    %v4310 = vunpack.c.l.b16 %v4214
    %v4311 = vunpack.c.l.b16 %v4215
    %v4312 = vunpack.c.l.b16 %v4216
    %v4313 = vunpack.c.l.b16 %v4217
    %v4314 = vunpack.c.l.b16 %v4218
    %v4315 = vunpack.c.l.b16 %v4219
    %v4316 = vunpack.c.l.b16 %v4220
    %v4317 = vunpack.c.l.b16 %v4221
    %v4318 = vunpack.c.l.b16 %v4222
    %v4319 = vunpack.c.l.b16 %v4223
    %v4320 = vunpack.c.l.b16 %v4224
    %v4321 = vunpack.c.l.b16 %v4225
    %v4322 = vunpack.c.l.b16 %v4226
    %v4323 = vunpack.c.l.b16 %v4227
    %v4324 = vunpack.c.l.b16 %v4228
    %v4325 = vunpack.c.l.b16 %v4229
    %v4326 = vunpack.c.l.b16 %v4230
    %v4327 = vunpack.c.l.b16 %v4231
    %v4328 = vunpack.c.l.b16 %v4232
    %v4329 = vunpack.c.l.b16 %v4233
    %v4330 = vunpack.c.l.b16 %v4234
    %v4331 = vunpack.c.l.b16 %v4235
    %v4332 = vunpack.c.l.b16 %v4236
    %v4333 = vunpack.c.l.b16 %v4237
    %v4334 = vunpack.c.l.b16 %v4238
    %v4335 = vunpack.c.l.b16 %v4239
    %v4336 = vpack.c.b16 %v4289, %v4288
    %v4337 = vpack.c.b16 %v4291, %v4290
    %v4338 = vpack.c.b16 %v4293, %v4292
    %v4339 = vpack.c.b16 %v4295, %v4294
    %v4340 = vpack.c.b16 %v4297, %v4296
    %v4341 = vpack.c.b16 %v4299, %v4298
    %v4342 = vpack.c.b16 %v4301, %v4300
    %v4343 = vpack.c.b16 %v4303, %v4302
    %v4344 = vpack.c.b16 %v4305, %v4304
    %v4345 = vpack.c.b16 %v4307, %v4306
    %v4346 = vpack.c.b16 %v4309, %v4308
    %v4347 = vpack.c.b16 %v4311, %v4310
    %v4348 = vpack.c.b16 %v4313, %v4312
    %v4349 = vpack.c.b16 %v4315, %v4314
    %v4350 = vpack.c.b16 %v4317, %v4316
    %v4351 = vpack.c.b16 %v4319, %v4318
    %v4352 = vpack.c.b16 %v4321, %v4320
    %v4353 = vpack.c.b16 %v4323, %v4322
    %v4354 = vpack.c.b16 %v4325, %v4324
    %v4355 = vpack.c.b16 %v4327, %v4326
    %v4356 = vpack.c.b16 %v4329, %v4328
    %v4357 = vpack.c.b16 %v4331, %v4330
    %v4358 = vpack.c.b16 %v4333, %v4332
    %v4359 = vpack.c.b16 %v4335, %v4334
    %4384 = vmatprep.subr.bf16.mxu0 0
    %4385 = vmatpush1.bf16.msra.mxu0 %v4343
    %4386 = vmatprep.subr.bf16.mxu0 0
    %4387 = vmatpush1.bf16.msra.mxu0 %v4342
    %4388 = vmatprep.subr.bf16.mxu0 0
    %4389 = vmatpush1.bf16.msra.mxu0 %v4341
    %4390 = vmatprep.subr.bf16.mxu0 0
    %4391 = vmatpush1.bf16.msra.mxu0 %v4340
    %4392 = vmatprep.subr.bf16.mxu0 0
    %4393 = vmatpush1.bf16.msra.mxu0 %v4339
    %4394 = vmatprep.subr.bf16.mxu0 0
    %4395 = vmatpush1.bf16.msra.mxu0 %v4338
    %4396 = vmatprep.subr.bf16.mxu0 0
    %4397 = vmatpush1.bf16.msra.mxu0 %v4337
    %4398 = vmatprep.subr.bf16.mxu0 0
    %4399 = vmatpush1.bf16.msra.mxu0 %v4336
    %4400 = vmatprep.subr.bf16.mxu0 0
    %4401 = vmatpush2.bf16.msra.mxu0 %v4351
    %4402 = vmatprep.subr.bf16.mxu0 0
    %4403 = vmatpush2.bf16.msra.mxu0 %v4350
    %4404 = vmatprep.subr.bf16.mxu0 0
    %4405 = vmatpush2.bf16.msra.mxu0 %v4349
    %4406 = vmatprep.subr.bf16.mxu0 0
    %4407 = vmatpush2.bf16.msra.mxu0 %v4348
    %4408 = vmatprep.subr.bf16.mxu0 0
    %4409 = vmatpush2.bf16.msra.mxu0 %v4347
    %4410 = vmatprep.subr.bf16.mxu0 0
    %4411 = vmatpush2.bf16.msra.mxu0 %v4346
    %4412 = vmatprep.subr.bf16.mxu0 0
    %4413 = vmatpush2.bf16.msra.mxu0 %v4345
    %4414 = vmatprep.subr.bf16.mxu0 0
    %4415 = vmatpush2.bf16.msra.mxu0 %v4344
    %4416 = vmatprep.mubr.bf16.mxu0 %v3886
    %4417 = vmatmul.mubr.bf16.gmra.mxu0 %v3862
    %v4418 = vpop.f32.mrf.mxu0
    %v4419 = vadd.f32 0.0, %v4418
    %v4420 = vpop.f32.mrf.mxu0
    %v4421 = vpop.f32.mrf.mxu0
    %v4422 = vadd.f32 0.0, %v4421
    %v4423 = vpop.f32.mrf.mxu0
    %4424 = vmatprep.mubr.bf16.mxu0 %v3893
    %4425 = vmatmul.mubr.bf16.gmra.mxu0 %v3862
    %v4426 = vpop.f32.mrf.mxu0
    %v4427 = vadd.f32 0.0, %v4426
    %v4428 = vpop.f32.mrf.mxu0
    %v4429 = vpop.f32.mrf.mxu0
    %v4430 = vadd.f32 0.0, %v4429
    %v4431 = vpop.f32.mrf.mxu0
    %4432 = vdwg.mxu0
    %4433 = vmatprep.subr.bf16.mxu0 0
    %4434 = vmatpush1.bf16.msra.mxu0 %v4359
    %4435 = vmatprep.subr.bf16.mxu0 0
    %4436 = vmatpush1.bf16.msra.mxu0 %v4358
    %4437 = vmatprep.subr.bf16.mxu0 0
    %4438 = vmatpush1.bf16.msra.mxu0 %v4357
    %4439 = vmatprep.subr.bf16.mxu0 0
    %4440 = vmatpush1.bf16.msra.mxu0 %v4356
    %4441 = vmatprep.subr.bf16.mxu0 0
    %4442 = vmatpush1.bf16.msra.mxu0 %v4355
    %4443 = vmatprep.subr.bf16.mxu0 0
    %4444 = vmatpush1.bf16.msra.mxu0 %v4354
    %4445 = vmatprep.subr.bf16.mxu0 0
    %4446 = vmatpush1.bf16.msra.mxu0 %v4353
    %4447 = vmatprep.subr.bf16.mxu0 0
    %4448 = vmatpush1.bf16.msra.mxu0 %v4352
    %4449 = vmatprep.subr.bf16.mxu0 0
    %4450 = vmatpush2.bf16.msra.mxu0 0
    %4451 = vmatprep.subr.bf16.mxu0 0
    %4452 = vmatpush2.bf16.msra.mxu0 0
    %4453 = vmatprep.subr.bf16.mxu0 0
    %4454 = vmatpush2.bf16.msra.mxu0 0
    %4455 = vmatprep.subr.bf16.mxu0 0
    %4456 = vmatpush2.bf16.msra.mxu0 0
    %4457 = vmatprep.subr.bf16.mxu0 0
    %4458 = vmatpush2.bf16.msra.mxu0 0
    %4459 = vmatprep.subr.bf16.mxu0 0
    %4460 = vmatpush2.bf16.msra.mxu0 0
    %4461 = vmatprep.subr.bf16.mxu0 0
    %4462 = vmatpush2.bf16.msra.mxu0 0
    %4463 = vmatprep.subr.bf16.mxu0 0
    %4464 = vmatpush2.bf16.msra.mxu0 0
    %4465 = vmatprep.mubr.bf16.mxu0 0
    %4466 = vmatmul.mubr.bf16.gmra.mxu0 %v3862
    %v4467 = vpop.f32.mrf.mxu0
    %v4468 = vadd.f32 %v4419, %v4467
    %v4469 = vpop.f32.mrf.mxu0
    %v4470 = vpop.f32.mrf.mxu0
    %v4471 = vadd.f32 %v4422, %v4470
    %v4472 = vpop.f32.mrf.mxu0
    %4473 = vmatprep.mubr.bf16.mxu0 0
    %4474 = vmatmul.mubr.bf16.gmra.mxu0 %v3862
    %v4475 = vpop.f32.mrf.mxu0
    %v4476 = vadd.f32 %v4427, %v4475
    %v4477 = vpop.f32.mrf.mxu0
    %v4478 = vpop.f32.mrf.mxu0
    %v4479 = vadd.f32 %v4430, %v4478
    %v4480 = vpop.f32.mrf.mxu0
    %4481 = vdwg.mxu0
    %v4482 = vadd.f32 %v4187, %v4468
    %v4483 = vadd.f32 %v4188, %v4471
    %v4484 = vadd.f32 %v4189, %v4476
    %v4485 = vadd.f32 %v4190, %v4479
    %v4486 = vstv %s98
    %v4487 = vadd.f32 %v4482, %v4486
    %v4488 = vadd.f32 %v4483, %v4486
    %v4489 = vadd.f32 %v4484, %v4486
    %v4490 = vadd.f32 %v4485, %v4486
    %v4491 = vxor.u32 %v4487, 2147483648
    %v4492 = vxor.u32 %v4488, 2147483648
    %v4493 = vxor.u32 %v4489, 2147483648
    %v4494 = vxor.u32 %v4490, 2147483648
    %v4495 = vmul.f32 %v4491, 1.442695
    %v4496 = vpow.pop %v4495
    %v4497 = vmul.f32 %v4492, 1.442695
    %v4498 = vpow.pop %v4497
    %v4499 = vmul.f32 %v4493, 1.442695
    %v4500 = vpow.pop %v4499
    %v4501 = vmul.f32 %v4494, 1.442695
    %v4502 = vpow.pop %v4501
    %v4503 = vadd.f32 %v4496, 1.0
    %v4504 = vadd.f32 %v4498, 1.0
    %v4505 = vadd.f32 %v4500, 1.0
    %v4506 = vadd.f32 %v4502, 1.0
    %v4507 = vrcp.pop %v4503
    %v4508 = vmul.f32 1.0, %v4507
    %v4509 = vrcp.pop %v4504
    %v4510 = vmul.f32 1.0, %v4509
    %v4511 = vrcp.pop %v4505
    %v4512 = vmul.f32 1.0, %v4511
    %v4513 = vrcp.pop %v4506
    %v4514 = vmul.f32 1.0, %v4513
    %v4515 = vmul.f32 %v4487, %v4508
    %v4516 = vmul.f32 %v4488, %v4510
    %v4517 = vmul.f32 %v4489, %v4512
    %v4518 = vmul.f32 %v4490, %v4514
    %4519 = vst [vmem:[#allocation8] sm:$0xff] %v4515
    %4520 = vst [vmem:[#allocation8 + $0x8] sm:$0xff] %v4516
    %4521 = vst [vmem:[#allocation8 + $0x10] sm:$0xff] %v4517
    %4522 = vst [vmem:[#allocation8 + $0x18] sm:$0xff] %v4518
    // Predicated region
    $region22: #{tpu_custom_call.1} parent=1 // pred_check
      _
    $region23: #{tpu_custom_call.1} parent=1 // pred_check_branch
      %4524 = sbr.rel (0) target = $region25
    $region24: #{tpu_custom_call.1} parent=1 // pred_region
      %s4526 = ssub.s32 512, 512
      %4527 = vsyncadd [#allocation5], %s4526
      %s4528 = sshll.u32 [#allocation8], 4
      %s4529 = int_to_ptr.vmem [resolvable:$true] %s4528
      %4534 = dma.vmem_to_hbm [thread:$0]  %s4529, 512, %s3, [#allocation5], 128, 128, 8
    $region25: #{tpu_custom_call.1} parent=1 // pred_fallthru
      _
    // Predicated region
    $region26: #{tpu_custom_call.1} parent=1 // pred_check
      _
    $region27: #{tpu_custom_call.1} parent=1 // pred_check_branch
      %4536 = sbr.rel (0) target = $region29
    $region28: #{tpu_custom_call.1} parent=1 // pred_region
      %4537 = dma.done [#allocation5], 512
    $region29: #{tpu_custom_call.1} parent=1 // pred_fallthru
      _
    %4538 = vsyncpa [#allocation4], 1
    %4539 = vsyncpa [#allocation7], 1
    %4540 = vsyncpa [#allocation5], 1

</llo_original>
